<compile_context>
chip_gen: v7x
topology: tpu7x:2x2x1
jax: 0.10.0
libtpu: 0.0.40
codegen_flags: <defaults>
</compile_context>

<pallas_src>
import math

import jax
import jax.numpy as jnp
from jax import lax
from jax.experimental import pallas as pl
from jax.experimental.pallas import tpu as pltpu

_GN_EPS = 1e-5            # nn.GroupNorm default eps
_SIGMA = 25.0             # SDE sigma used by marginal_prob_std

_CHANNELS = (32, 64, 128, 256)
_EMBED_DIM = 256
_IM_CH = 3
_DENSE_OUT = (_CHANNELS[0], _CHANNELS[1], _CHANNELS[2], _CHANNELS[3],
              _CHANNELS[2], _CHANNELS[1], _CHANNELS[0])        # sum = 704
_DENSE_PAD = 768                                               # 6 * 128 lanes
_GROUPS = (4, 32, 32, 32, 32, 32, 32)
# (name, channels, groups) per GroupNorm stage, in forward order.
_GN_STAGES = (("gn1", 32, 4), ("gn2", 64, 32), ("gn3", 128, 32),
              ("gn4", 256, 32), ("tgn4", 128, 32), ("tgn3", 64, 32),
              ("tgn2", 32, 32))


def _swish(z):
    return z * (1.0 / (1.0 + jnp.exp(-z)))


def marginal_prob_std(t):
    return jnp.sqrt((_SIGMA ** (2.0 * t) - 1.0) / (2.0 * math.log(_SIGMA)))


# ---------------------------------------------------------------------------
# Kernel 1: fused time embedding + all seven Dense projections (one MXU call).
# ---------------------------------------------------------------------------
def _embed_dense_kernel(t_ref, wg_ref, we_ref, be_ref, wa_ref, ba_ref, o_ref):
    # t_ref : (B, 1)   f32         wg_ref: (1, E//2) f32
    # we_ref: (E, E)   bf16  (in, out) -- pre-transposed at init
    # be_ref: (1, E)   f32
    # wa_ref: (E, Cp)  bf16  (in, out) -- pre-transposed, zero-padded to Cp=768
    # ba_ref: (1, Cp)  f32
    # o_ref : (B, Cp)  f32   (lane-dense: Cp = 6 * 128)
    x_proj = t_ref[...] * wg_ref[...] * (2.0 * math.pi)                 # (B, E//2)
    gfp = jnp.concatenate([jnp.sin(x_proj), jnp.cos(x_proj)], axis=-1)  # (B, E)
    e = jnp.dot(gfp.astype(jnp.bfloat16), we_ref[...],
                preferred_element_type=jnp.float32) + be_ref[...]
    emb = _swish(e)                                                     # (B, E)
    d = jnp.dot(emb.astype(jnp.bfloat16), wa_ref[...],
                preferred_element_type=jnp.float32) + ba_ref[...]
    o_ref[...] = d.astype(o_ref.dtype)


def fused_embed_dense(t, w_gfp, w_embed_t, b_embed, w_all_t, b_all):
    """t: (B,). Returns (B, 768) = zero-padded concat_i Dense_i(swish(Linear(GFP(t))))."""
    B = t.shape[0]
    half = w_gfp.shape[0]
    E = w_embed_t.shape[0]
    Cp = w_all_t.shape[1]
    cost = pl.CostEstimate(
        flops=2 * B * E * E + 2 * B * E * Cp + 8 * B * E,
        transcendentals=2 * B * E,
        bytes_accessed=(4 * B + 4 * half + 2 * E * E + 4 * E
                        + 2 * E * Cp + 4 * Cp + 4 * B * Cp))
    return pl.pallas_call(
        _embed_dense_kernel,
        out_shape=jax.ShapeDtypeStruct((B, Cp), jnp.float32),
        grid_spec=pltpu.PrefetchScalarGridSpec(
            num_scalar_prefetch=0,
            grid=(1,),
            in_specs=[
                pl.BlockSpec((B, 1), lambda i: (0, 0)),
                pl.BlockSpec((1, half), lambda i: (0, 0)),
                pl.BlockSpec((E, E), lambda i: (0, 0)),
                pl.BlockSpec((1, E), lambda i: (0, 0)),
                pl.BlockSpec((E, Cp), lambda i: (0, 0)),
                pl.BlockSpec((1, Cp), lambda i: (0, 0)),
            ],
            out_specs=pl.BlockSpec((B, Cp), lambda i: (0, 0)),
        ),
        compiler_params=pltpu.CompilerParams(
            dimension_semantics=("arbitrary",),
            vmem_limit_bytes=16 * 1024 * 1024),
        cost_estimate=cost,
    )(t.reshape(B, 1).astype(jnp.float32), w_gfp.reshape(1, half),
      w_embed_t, b_embed.reshape(1, E), w_all_t, b_all.reshape(1, Cp))


# ---------------------------------------------------------------------------
# Kernel 2: fused  (h + dense_bias) -> GroupNorm -> swish  (lane-dense layout).
# ---------------------------------------------------------------------------
def _gn_bias_swish_kernel(h_ref, d_ref, g_ref, b_ref, o_ref):
    # h_ref/d_ref/o_ref: (1, G, Cg*HW)  -- one sample per grid step
    # g_ref/b_ref      : (1, G, Cg*HW)  -- batch-invariant (pinned index_map)
    y = h_ref[...] + d_ref[...]
    mean = jnp.mean(y, axis=-1, keepdims=True)           # single-axis reduce
    dev = y - mean
    var = jnp.mean(dev * dev, axis=-1, keepdims=True)
    z = dev * lax.rsqrt(var + _GN_EPS) * g_ref[...] + b_ref[...]
    o_ref[...] = _swish(z).astype(o_ref.dtype)


def fused_bias_groupnorm_swish(h, dense_bias, gamma_b, beta_b, num_groups):
    """h: (B,C,H,W); dense_bias: (B,C); gamma_b/beta_b: (1,G,Cg*H*W) pre-broadcast.
    GroupNorm(num_groups) applied to (h + dense_bias[..., None, None]), then swish."""
    B, C, H, W = h.shape
    G = num_groups
    Cg = C // G
    L = Cg * H * W
    # Free row-major merges — lane-dense last axis for unmasked vector stores.
    h3 = h.reshape(B, G, L)
    d3 = jnp.broadcast_to(dense_bias.reshape(B, G, Cg, 1),
                          (B, G, Cg, H * W)).reshape(B, G, L)
    N = B * C * H * W
    cost = pl.CostEstimate(
        flops=12 * N, transcendentals=N + B * G,
        bytes_accessed=4 * (3 * N + 2 * G * L))
    out = pl.pallas_call(
        _gn_bias_swish_kernel,
        out_shape=jax.ShapeDtypeStruct((B, G, L), h.dtype),
        grid_spec=pltpu.PrefetchScalarGridSpec(
            num_scalar_prefetch=0,
            grid=(B,),                                     # parallel over batch
            in_specs=[
                pl.BlockSpec((1, G, L), lambda b: (b, 0, 0)),
                pl.BlockSpec((1, G, L), lambda b: (b, 0, 0)),
                pl.BlockSpec((1, G, L), lambda b: (0, 0, 0)),
                pl.BlockSpec((1, G, L), lambda b: (0, 0, 0)),
            ],
            out_specs=pl.BlockSpec((1, G, L), lambda b: (b, 0, 0)),
        ),
        compiler_params=pltpu.CompilerParams(
            dimension_semantics=("parallel",),
            vmem_limit_bytes=16 * 1024 * 1024),
        cost_estimate=cost,
    )(h3, d3, gamma_b, beta_b)
    return out.reshape(B, C, H, W)


# ---------------------------------------------------------------------------
# Spatial convolutions (left to XLA) and pure-JAX references for the kernels.
# ---------------------------------------------------------------------------
def _conv2d(x, w, stride, padding):
    return lax.conv_general_dilated(
        x, w, window_strides=(stride, stride),
        padding=[(padding, padding), (padding, padding)],
        dimension_numbers=("NCHW", "OIHW", "NCHW"))


def _conv_transpose2d(x, w, stride, padding):
    # PyTorch ConvTranspose2d (weight (C_in, C_out, kH, kW)) as a dilated conv.
    k = w.shape[2]
    w_oihw = jnp.transpose(jnp.flip(w, axis=(2, 3)), (1, 0, 2, 3))
    pad = k - 1 - padding
    return lax.conv_general_dilated(
        x, w_oihw, window_strides=(1, 1),
        padding=[(pad, pad), (pad, pad)],
        lhs_dilation=(stride, stride),
        dimension_numbers=("NCHW", "OIHW", "NCHW"))


def _ref_embed_dense(t, w_gfp, w_embed_t, b_embed, w_all_t, b_all):
    # Same bf16-input / f32-accumulation precision as the Pallas kernel.
    x_proj = t[:, None] * w_gfp[None, :] * (2.0 * math.pi)
    gfp = jnp.concatenate([jnp.sin(x_proj), jnp.cos(x_proj)], axis=-1)
    e = jnp.dot(gfp.astype(jnp.bfloat16), w_embed_t,
                preferred_element_type=jnp.float32) + b_embed[None, :]
    emb = _swish(e)
    return jnp.dot(emb.astype(jnp.bfloat16), w_all_t,
                   preferred_element_type=jnp.float32) + b_all[None, :]


def _ref_bias_groupnorm_swish(h, dense_bias, gamma, beta, num_groups):
    B, C, H, W = h.shape
    y = h + dense_bias[:, :, None, None]
    yg = y.reshape(B, num_groups, -1)
    mean = jnp.mean(yg, axis=2, keepdims=True)
    var = jnp.mean((yg - mean) ** 2, axis=2, keepdims=True)
    yn = ((yg - mean) * lax.rsqrt(var + _GN_EPS)).reshape(B, C, H, W)
    z = yn * gamma[None, :, None, None] + beta[None, :, None, None]
    return _swish(z)


# ---------------------------------------------------------------------------
# Full ScoreNet forward.
# ---------------------------------------------------------------------------
def scorenet_forward(params, x, t, use_pallas=True):
    if use_pallas:
        dense_all = fused_embed_dense(
            t, params["gfp_w"], params["embed_w_t"], params["embed_b"],
            params["dense_w_all_t"], params["dense_b_all"])

        def gn(h, db, name, groups):
            return fused_bias_groupnorm_swish(
                h, db, params[name + "_gb"], params[name + "_bb"], groups)
    else:
        dense_all = _ref_embed_dense(
            t, params["gfp_w"], params["embed_w_t"], params["embed_b"],
            params["dense_w_all_t"], params["dense_b_all"])

        def gn(h, db, name, groups):
            return _ref_bias_groupnorm_swish(
                h, db, params[name + "_g"], params[name + "_b"], groups)

    # Split the packed (B, 768) dense projections back per layer (cols 704:768
    # are zero padding and never read).
    dense_slices, off = [], 0
    for c in _DENSE_OUT:
        dense_slices.append(dense_all[:, off:off + c])
        off += c

    h1 = _conv2d(x, params["conv1_w"], 1, 1)
    h1 = gn(h1, dense_slices[0], "gn1", _GROUPS[0])
    h2 = _conv2d(h1, params["conv2_w"], 2, 1)
    h2 = gn(h2, dense_slices[1], "gn2", _GROUPS[1])
    h3 = _conv2d(h2, params["conv3_w"], 2, 1)
    h3 = gn(h3, dense_slices[2], "gn3", _GROUPS[2])
    h4 = _conv2d(h3, params["conv4_w"], 2, 1)
    h4 = gn(h4, dense_slices[3], "gn4", _GROUPS[3])

    h = _conv_transpose2d(h4, params["tconv4_w"], 2, 1)
    h = gn(h, dense_slices[4], "tgn4", _GROUPS[4])
    h = _conv_transpose2d(jnp.concatenate([h, h3], axis=1), params["tconv3_w"], 2, 1)
    h = gn(h, dense_slices[5], "tgn3", _GROUPS[5])
    h = _conv_transpose2d(jnp.concatenate([h, h2], axis=1), params["tconv2_w"], 2, 1)
    h = gn(h, dense_slices[6], "tgn2", _GROUPS[6])
    h = _conv_transpose2d(jnp.concatenate([h, h1], axis=1), params["tconv1_w"], 1, 1)
    h = h + params["tconv1_b"][None, :, None, None]
    h = h / marginal_prob_std(t)[:, None, None, None]
    return h


# ---------------------------------------------------------------------------
# Deterministic parameter init (pre-transposed / padded / bf16 packed weights).
# ---------------------------------------------------------------------------
def init_scorenet_params(key):
    c1, c2, c3, c4 = _CHANNELS
    E = _EMBED_DIM
    keys = iter(jax.random.split(key, 32))

    def linear(k, out_dim, in_dim):
        bound = 1.0 / math.sqrt(in_dim)
        kw, kb = jax.random.split(k)
        w = jax.random.uniform(kw, (out_dim, in_dim), jnp.float32, -bound, bound)
        b = jax.random.uniform(kb, (out_dim,), jnp.float32, -bound, bound)
        return w, b

    def conv_w(k, shape):
        fan_in = shape[1] * shape[2] * shape[3]
        bound = 1.0 / math.sqrt(fan_in)
        return jax.random.uniform(k, shape, jnp.float32, -bound, bound)

    p = {}
    p["gfp_w"] = 30.0 * jax.random.normal(next(keys), (E // 2,), jnp.float32)
    we, p["embed_b"] = linear(next(keys), E, E)
    p["embed_w_t"] = we.T.astype(jnp.bfloat16)             # (in, out), bf16

    dw, db = [], []
    for c in _DENSE_OUT:                      # pack the 7 Dense layers once.
        w, b = linear(next(keys), c, E)
        dw.append(w)
        db.append(b)
    w_all = jnp.concatenate(dw, axis=0)                    # (704, 256)
    b_all = jnp.concatenate(db, axis=0)                    # (704,)
    pad = _DENSE_PAD - w_all.shape[0]
    # Pre-transposed (in, out) and zero-padded 704 -> 768 for full-lane stores.
    p["dense_w_all_t"] = jnp.pad(w_all, ((0, pad), (0, 0))).T.astype(jnp.bfloat16)
    p["dense_b_all"] = jnp.pad(b_all, (0, pad))            # (768,) f32

    p["conv1_w"] = conv_w(next(keys), (c1, _IM_CH, 3, 3))
    p["conv2_w"] = conv_w(next(keys), (c2, c1, 4, 4))
    p["conv3_w"] = conv_w(next(keys), (c3, c2, 4, 4))
    p["conv4_w"] = conv_w(next(keys), (c4, c3, 4, 4))
    # ConvTranspose2d weights keep the PyTorch (C_in, C_out, kH, kW) layout.
    p["tconv4_w"] = conv_w(next(keys), (c4, c3, 4, 4))
    p["tconv3_w"] = conv_w(next(keys), (c3 + c3, c2, 4, 4))
    p["tconv2_w"] = conv_w(next(keys), (c2 + c2, c1, 4, 4))
    p["tconv1_w"] = conv_w(next(keys), (c1 + c1, _IM_CH, 3, 3))
    p["tconv1_b"] = jax.random.uniform(next(keys), (_IM_CH,), jnp.float32, -0.1, 0.1)

    for name, c, _ in _GN_STAGES:
        kg, kb = jax.random.split(next(keys))
        p[name + "_g"] = 1.0 + 0.1 * jax.random.normal(kg, (c,), jnp.float32)
        p[name + "_b"] = 0.1 * jax.random.normal(kb, (c,), jnp.float32)
    return p


def prepare_gn_params(params, H, W):
    """Pre-broadcast the (static) GroupNorm affine params to the merged
    (1, G, Cg*H_s*W_s) layout used by the fused GN kernel.  Done ONCE outside
    jit, so the per-forward jnp.tile of gamma/beta is gone."""
    spatial = ((H, W), (H // 2, W // 2), (H // 4, W // 4), (H // 8, W // 8),
               (H // 4, W // 4), (H // 2, W // 2), (H, W))
    p = dict(params)
    for (name, C, G), (hs, ws) in zip(_GN_STAGES, spatial):
        Cg = C // G
        for sfx_in, sfx_out in (("_g", "_gb"), ("_b", "_bb")):
            v = params[name + sfx_in]
            p[name + sfx_out] = jnp.broadcast_to(
                v.reshape(G, Cg, 1), (G, Cg, hs * ws)).reshape(1, G, Cg * hs * ws)
    return p


if __name__ == "__main__":
    key = jax.random.PRNGKey(0)
    kp, kx, kt = jax.random.split(key, 3)
    params = prepare_gn_params(init_scorenet_params(kp), 16, 16)

    B, H = 2, 16
    x = jax.random.normal(kx, (B, _IM_CH, H, H), jnp.float32)
    t = jax.random.uniform(kt, (B,), jnp.float32, 0.2, 1.0)

    fwd = jax.jit(scorenet_forward, static_argnames=("use_pallas",))
    out = jax.block_until_ready(fwd(params, x, t, use_pallas=True))
    ref = jax.block_until_ready(fwd(params, x, t, use_pallas=False))

    assert out.shape == (B, _IM_CH, H, H), out.shape
    assert jnp.allclose(out, ref, atol=5e-3, rtol=5e-3), float(
        jnp.max(jnp.abs(out - ref)))
    print("KERNEL_OK")
</pallas_src>

<mosaic_0001>
module attributes {stable_mosaic.version = 11 : i64} {
  func.func @_embed_dense_kernel(%arg0: i32, %arg1: memref<2x1xf32, #tpu.memory_space<vmem>>, %arg2: memref<1x128xf32, #tpu.memory_space<vmem>>, %arg3: memref<256x256xbf16, #tpu.memory_space<vmem>>, %arg4: memref<1x256xf32, #tpu.memory_space<vmem>>, %arg5: memref<256x768xbf16, #tpu.memory_space<vmem>>, %arg6: memref<1x768xf32, #tpu.memory_space<vmem>>, %arg7: memref<2x768xf32, #tpu.memory_space<vmem>>) attributes {dimension_semantics = [#tpu.dimension_semantics<arbitrary>], iteration_bounds = array<i64: 1>, scalar_prefetch = 0 : i64, scratch_operands = 0 : i64, tpu.core_type = #tpu.core_type<tc>, window_params = [{pipeline_mode = #tpu.pipeline_mode<synchronous>, transform_indices = @transform_0, window_bounds = array<i64: 2, 1>}, {pipeline_mode = #tpu.pipeline_mode<synchronous>, transform_indices = @transform_1, window_bounds = array<i64: 1, 128>}, {pipeline_mode = #tpu.pipeline_mode<synchronous>, transform_indices = @transform_2, window_bounds = array<i64: 256, 256>}, {pipeline_mode = #tpu.pipeline_mode<synchronous>, transform_indices = @transform_3, window_bounds = array<i64: 1, 256>}, {pipeline_mode = #tpu.pipeline_mode<synchronous>, transform_indices = @transform_4, window_bounds = array<i64: 256, 768>}, {pipeline_mode = #tpu.pipeline_mode<synchronous>, transform_indices = @transform_5, window_bounds = array<i64: 1, 768>}, {pipeline_mode = #tpu.pipeline_mode<synchronous>, transform_indices = @transform_6, window_bounds = array<i64: 2, 768>}]} {
    %c0 = arith.constant 0 : index
    %c0_0 = arith.constant 0 : index
    %0 = vector.load %arg1[%c0, %c0_0] : memref<2x1xf32, #tpu.memory_space<vmem>>, vector<2x1xf32>
    %c0_1 = arith.constant 0 : index
    %c0_2 = arith.constant 0 : index
    %1 = vector.load %arg2[%c0_1, %c0_2] : memref<1x128xf32, #tpu.memory_space<vmem>>, vector<1x128xf32>
    %2 = vector.broadcast %0 : vector<2x1xf32> to vector<2x128xf32>
    %3 = vector.broadcast %1 : vector<1x128xf32> to vector<2x128xf32>
    %4 = arith.mulf %2, %3 : vector<2x128xf32>
    %cst = arith.constant 6.28318548 : f32
    %5 = vector.broadcast %cst : f32 to vector<2x128xf32>
    %6 = arith.mulf %4, %5 : vector<2x128xf32>
    %7 = math.sin %6 : vector<2x128xf32>
    %8 = math.cos %6 : vector<2x128xf32>
    %9 = tpu.concatenate %7, %8 in 1 : vector<2x128xf32>, vector<2x128xf32> -> vector<2x256xf32>
    %10 = arith.truncf %9 : vector<2x256xf32> to vector<2x256xbf16>
    %c0_3 = arith.constant 0 : index
    %c0_4 = arith.constant 0 : index
    %11 = vector.load %arg3[%c0_3, %c0_4] : memref<256x256xbf16, #tpu.memory_space<vmem>>, vector<256x256xbf16>
    %cst_5 = arith.constant dense<0.000000e+00> : vector<2x256xf32>
    %12 = tpu.matmul %10, %11, %cst_5 {dimension_numbers = #tpu.dot_dimension_numbers<[1], [0], [0], [1], [0, 0, 1, 1], [], []>} : vector<2x256xbf16>, vector<256x256xbf16>, vector<2x256xf32> -> vector<2x256xf32>
    %c0_6 = arith.constant 0 : index
    %c0_7 = arith.constant 0 : index
    %13 = vector.load %arg4[%c0_6, %c0_7] : memref<1x256xf32, #tpu.memory_space<vmem>>, vector<1x256xf32>
    %14 = vector.broadcast %13 : vector<1x256xf32> to vector<2x256xf32>
    %15 = arith.addf %12, %14 : vector<2x256xf32>
    %cst_8 = arith.constant 0.000000e+00 : f32
    %16 = vector.broadcast %cst_8 : f32 to vector<2x256xf32>
    %17 = arith.subf %16, %15 : vector<2x256xf32>
    %18 = math.exp %17 : vector<2x256xf32>
    %cst_9 = arith.constant 1.000000e+00 : f32
    %19 = vector.broadcast %cst_9 : f32 to vector<2x256xf32>
    %20 = arith.addf %19, %18 : vector<2x256xf32>
    %cst_10 = arith.constant 1.000000e+00 : f32
    %21 = vector.broadcast %cst_10 : f32 to vector<2x256xf32>
    %22 = arith.divf %21, %20 : vector<2x256xf32>
    %23 = arith.mulf %15, %22 : vector<2x256xf32>
    %24 = arith.truncf %23 : vector<2x256xf32> to vector<2x256xbf16>
    %c0_11 = arith.constant 0 : index
    %c0_12 = arith.constant 0 : index
    %25 = vector.load %arg5[%c0_11, %c0_12] : memref<256x768xbf16, #tpu.memory_space<vmem>>, vector<256x768xbf16>
    %cst_13 = arith.constant dense<0.000000e+00> : vector<2x768xf32>
    %26 = tpu.matmul %24, %25, %cst_13 {dimension_numbers = #tpu.dot_dimension_numbers<[1], [0], [0], [1], [0, 0, 1, 1], [], []>} : vector<2x256xbf16>, vector<256x768xbf16>, vector<2x768xf32> -> vector<2x768xf32>
    %c0_14 = arith.constant 0 : index
    %c0_15 = arith.constant 0 : index
    %27 = vector.load %arg6[%c0_14, %c0_15] : memref<1x768xf32, #tpu.memory_space<vmem>>, vector<1x768xf32>
    %28 = vector.broadcast %27 : vector<1x768xf32> to vector<2x768xf32>
    %29 = arith.addf %26, %28 : vector<2x768xf32>
    %c0_16 = arith.constant 0 : index
    %c0_17 = arith.constant 0 : index
    %30 = vector.load %arg7[%c0_16, %c0_17] : memref<2x768xf32, #tpu.memory_space<vmem>>, vector<2x768xf32>
    tpu.vector_store %arg7[%c0_16, %c0_17], %29 {strides = array<i32>} : memref<2x768xf32, #tpu.memory_space<vmem>>, vector<2x768xf32>,
    return
  }
  func.func @transform_0(%arg0: i32) -> (i32, i32) {
    %c0_i32 = arith.constant 0 : i32
    %c0_i32_0 = arith.constant 0 : i32
    %c0_i32_1 = arith.constant 0 : i32
    return %c0_i32, %c0_i32_0 : i32, i32
  }
  func.func @transform_1(%arg0: i32) -> (i32, i32) {
    %c0_i32 = arith.constant 0 : i32
    %c0_i32_0 = arith.constant 0 : i32
    %c0_i32_1 = arith.constant 0 : i32
    return %c0_i32, %c0_i32_0 : i32, i32
  }
  func.func @transform_2(%arg0: i32) -> (i32, i32) {
    %c0_i32 = arith.constant 0 : i32
    %c0_i32_0 = arith.constant 0 : i32
    %c0_i32_1 = arith.constant 0 : i32
    return %c0_i32, %c0_i32_0 : i32, i32
  }
  func.func @transform_3(%arg0: i32) -> (i32, i32) {
    %c0_i32 = arith.constant 0 : i32
    %c0_i32_0 = arith.constant 0 : i32
    %c0_i32_1 = arith.constant 0 : i32
    return %c0_i32, %c0_i32_0 : i32, i32
  }
  func.func @transform_4(%arg0: i32) -> (i32, i32) {
    %c0_i32 = arith.constant 0 : i32
    %c0_i32_0 = arith.constant 0 : i32
    %c0_i32_1 = arith.constant 0 : i32
    return %c0_i32, %c0_i32_0 : i32, i32
  }
  func.func @transform_5(%arg0: i32) -> (i32, i32) {
    %c0_i32 = arith.constant 0 : i32
    %c0_i32_0 = arith.constant 0 : i32
    %c0_i32_1 = arith.constant 0 : i32
    return %c0_i32, %c0_i32_0 : i32, i32
  }
  func.func @transform_6(%arg0: i32) -> (i32, i32) {
    %c0_i32 = arith.constant 0 : i32
    %c0_i32_0 = arith.constant 0 : i32
    %c0_i32_1 = arith.constant 0 : i32
    return %c0_i32, %c0_i32_0 : i32, i32
  }
}

module attributes {stable_mosaic.version = 11 : i64} {
  func.func @_gn_bias_swish_kernel(%arg0: i32, %arg1: memref<1x4x2048xf32, #tpu.memory_space<vmem>>, %arg2: memref<1x4x2048xf32, #tpu.memory_space<vmem>>, %arg3: memref<1x4x2048xf32, #tpu.memory_space<vmem>>, %arg4: memref<1x4x2048xf32, #tpu.memory_space<vmem>>, %arg5: memref<1x4x2048xf32, #tpu.memory_space<vmem>>) attributes {dimension_semantics = [#tpu.dimension_semantics<parallel>], iteration_bounds = array<i64: 2>, scalar_prefetch = 0 : i64, scratch_operands = 0 : i64, tpu.core_type = #tpu.core_type<tc>, window_params = [{transform_indices = @transform_0, window_bounds = array<i64: 1, 4, 2048>}, {transform_indices = @transform_1, window_bounds = array<i64: 1, 4, 2048>}, {pipeline_mode = #tpu.pipeline_mode<synchronous>, transform_indices = @transform_2, window_bounds = array<i64: 1, 4, 2048>}, {pipeline_mode = #tpu.pipeline_mode<synchronous>, transform_indices = @transform_3, window_bounds = array<i64: 1, 4, 2048>}, {transform_indices = @transform_4, window_bounds = array<i64: 1, 4, 2048>}]} {
    %c0 = arith.constant 0 : index
    %c0_0 = arith.constant 0 : index
    %c0_1 = arith.constant 0 : index
    %0 = vector.load %arg1[%c0, %c0_0, %c0_1] : memref<1x4x2048xf32, #tpu.memory_space<vmem>>, vector<1x4x2048xf32>
    %c0_2 = arith.constant 0 : index
    %c0_3 = arith.constant 0 : index
    %c0_4 = arith.constant 0 : index
    %1 = vector.load %arg2[%c0_2, %c0_3, %c0_4] : memref<1x4x2048xf32, #tpu.memory_space<vmem>>, vector<1x4x2048xf32>
    %2 = arith.addf %0, %1 : vector<1x4x2048xf32>
    %cst = arith.constant dense<0.000000e+00> : vector<1x4xf32>
    %3 = vector.multi_reduction <add>, %2, %cst [2] : vector<1x4x2048xf32> to vector<1x4xf32>
    %4 = vector.shape_cast %3 : vector<1x4xf32> to vector<1x4x1xf32>
    %cst_5 = arith.constant 2.048000e+03 : f32
    %5 = vector.broadcast %cst_5 : f32 to vector<1x4x1xf32>
    %6 = arith.divf %4, %5 : vector<1x4x1xf32>
    %7 = vector.broadcast %6 : vector<1x4x1xf32> to vector<1x4x2048xf32>
    %8 = arith.subf %2, %7 : vector<1x4x2048xf32>
    %9 = arith.mulf %8, %8 : vector<1x4x2048xf32>
    %cst_6 = arith.constant dense<0.000000e+00> : vector<1x4xf32>
    %10 = vector.multi_reduction <add>, %9, %cst_6 [2] : vector<1x4x2048xf32> to vector<1x4xf32>
    %11 = vector.shape_cast %10 : vector<1x4xf32> to vector<1x4x1xf32>
    %cst_7 = arith.constant 2.048000e+03 : f32
    %12 = vector.broadcast %cst_7 : f32 to vector<1x4x1xf32>
    %13 = arith.divf %11, %12 : vector<1x4x1xf32>
    %cst_8 = arith.constant 9.99999974E-6 : f32
    %14 = vector.broadcast %cst_8 : f32 to vector<1x4x1xf32>
    %15 = arith.addf %13, %14 : vector<1x4x1xf32>
    %16 = math.rsqrt %15 : vector<1x4x1xf32>
    %17 = vector.broadcast %16 : vector<1x4x1xf32> to vector<1x4x2048xf32>
    %18 = arith.mulf %8, %17 : vector<1x4x2048xf32>
    %c0_9 = arith.constant 0 : index
    %c0_10 = arith.constant 0 : index
    %c0_11 = arith.constant 0 : index
    %19 = vector.load %arg3[%c0_9, %c0_10, %c0_11] : memref<1x4x2048xf32, #tpu.memory_space<vmem>>, vector<1x4x2048xf32>
    %20 = arith.mulf %18, %19 : vector<1x4x2048xf32>
    %c0_12 = arith.constant 0 : index
    %c0_13 = arith.constant 0 : index
    %c0_14 = arith.constant 0 : index
    %21 = vector.load %arg4[%c0_12, %c0_13, %c0_14] : memref<1x4x2048xf32, #tpu.memory_space<vmem>>, vector<1x4x2048xf32>
    %22 = arith.addf %20, %21 : vector<1x4x2048xf32>
    %cst_15 = arith.constant 0.000000e+00 : f32
    %23 = vector.broadcast %cst_15 : f32 to vector<1x4x2048xf32>
    %24 = arith.subf %23, %22 : vector<1x4x2048xf32>
    %25 = math.exp %24 : vector<1x4x2048xf32>
    %cst_16 = arith.constant 1.000000e+00 : f32
    %26 = vector.broadcast %cst_16 : f32 to vector<1x4x2048xf32>
    %27 = arith.addf %26, %25 : vector<1x4x2048xf32>
    %cst_17 = arith.constant 1.000000e+00 : f32
    %28 = vector.broadcast %cst_17 : f32 to vector<1x4x2048xf32>
    %29 = arith.divf %28, %27 : vector<1x4x2048xf32>
    %30 = arith.mulf %22, %29 : vector<1x4x2048xf32>
    %c0_18 = arith.constant 0 : index
    %c0_19 = arith.constant 0 : index
    %c0_20 = arith.constant 0 : index
    %31 = vector.load %arg5[%c0_18, %c0_19, %c0_20] : memref<1x4x2048xf32, #tpu.memory_space<vmem>>, vector<1x4x2048xf32>
    tpu.vector_store %arg5[%c0_18, %c0_19, %c0_20], %30 {strides = array<i32>} : memref<1x4x2048xf32, #tpu.memory_space<vmem>>, vector<1x4x2048xf32>,
    return
  }
  func.func @transform_0(%arg0: i32) -> (i32, i32, i32) {
    %c0_i32 = arith.constant 0 : i32
    %c0_i32_0 = arith.constant 0 : i32
    %c0_i32_1 = arith.constant 0 : i32
    return %arg0, %c0_i32, %c0_i32_0 : i32, i32, i32
  }
  func.func @transform_1(%arg0: i32) -> (i32, i32, i32) {
    %c0_i32 = arith.constant 0 : i32
    %c0_i32_0 = arith.constant 0 : i32
    %c0_i32_1 = arith.constant 0 : i32
    return %arg0, %c0_i32, %c0_i32_0 : i32, i32, i32
  }
  func.func @transform_2(%arg0: i32) -> (i32, i32, i32) {
    %c0_i32 = arith.constant 0 : i32
    %c0_i32_0 = arith.constant 0 : i32
    %c0_i32_1 = arith.constant 0 : i32
    %c0_i32_2 = arith.constant 0 : i32
    return %c0_i32, %c0_i32_0, %c0_i32_1 : i32, i32, i32
  }
  func.func @transform_3(%arg0: i32) -> (i32, i32, i32) {
    %c0_i32 = arith.constant 0 : i32
    %c0_i32_0 = arith.constant 0 : i32
    %c0_i32_1 = arith.constant 0 : i32
    %c0_i32_2 = arith.constant 0 : i32
    return %c0_i32, %c0_i32_0, %c0_i32_1 : i32, i32, i32
  }
  func.func @transform_4(%arg0: i32) -> (i32, i32, i32) {
    %c0_i32 = arith.constant 0 : i32
    %c0_i32_0 = arith.constant 0 : i32
    %c0_i32_1 = arith.constant 0 : i32
    return %arg0, %c0_i32, %c0_i32_0 : i32, i32, i32
  }
}

module attributes {stable_mosaic.version = 11 : i64} {
  func.func @_gn_bias_swish_kernel(%arg0: i32, %arg1: memref<1x32x128xf32, #tpu.memory_space<vmem>>, %arg2: memref<1x32x128xf32, #tpu.memory_space<vmem>>, %arg3: memref<1x32x128xf32, #tpu.memory_space<vmem>>, %arg4: memref<1x32x128xf32, #tpu.memory_space<vmem>>, %arg5: memref<1x32x128xf32, #tpu.memory_space<vmem>>) attributes {dimension_semantics = [#tpu.dimension_semantics<parallel>], iteration_bounds = array<i64: 2>, scalar_prefetch = 0 : i64, scratch_operands = 0 : i64, tpu.core_type = #tpu.core_type<tc>, window_params = [{transform_indices = @transform_0, window_bounds = array<i64: 1, 32, 128>}, {transform_indices = @transform_1, window_bounds = array<i64: 1, 32, 128>}, {pipeline_mode = #tpu.pipeline_mode<synchronous>, transform_indices = @transform_2, window_bounds = array<i64: 1, 32, 128>}, {pipeline_mode = #tpu.pipeline_mode<synchronous>, transform_indices = @transform_3, window_bounds = array<i64: 1, 32, 128>}, {transform_indices = @transform_4, window_bounds = array<i64: 1, 32, 128>}]} {
    %c0 = arith.constant 0 : index
    %c0_0 = arith.constant 0 : index
    %c0_1 = arith.constant 0 : index
    %0 = vector.load %arg1[%c0, %c0_0, %c0_1] : memref<1x32x128xf32, #tpu.memory_space<vmem>>, vector<1x32x128xf32>
    %c0_2 = arith.constant 0 : index
    %c0_3 = arith.constant 0 : index
    %c0_4 = arith.constant 0 : index
    %1 = vector.load %arg2[%c0_2, %c0_3, %c0_4] : memref<1x32x128xf32, #tpu.memory_space<vmem>>, vector<1x32x128xf32>
    %2 = arith.addf %0, %1 : vector<1x32x128xf32>
    %cst = arith.constant dense<0.000000e+00> : vector<1x32xf32>
    %3 = vector.multi_reduction <add>, %2, %cst [2] : vector<1x32x128xf32> to vector<1x32xf32>
    %4 = vector.shape_cast %3 : vector<1x32xf32> to vector<1x32x1xf32>
    %cst_5 = arith.constant 1.280000e+02 : f32
    %5 = vector.broadcast %cst_5 : f32 to vector<1x32x1xf32>
    %6 = arith.divf %4, %5 : vector<1x32x1xf32>
    %7 = vector.broadcast %6 : vector<1x32x1xf32> to vector<1x32x128xf32>
    %8 = arith.subf %2, %7 : vector<1x32x128xf32>
    %9 = arith.mulf %8, %8 : vector<1x32x128xf32>
    %cst_6 = arith.constant dense<0.000000e+00> : vector<1x32xf32>
    %10 = vector.multi_reduction <add>, %9, %cst_6 [2] : vector<1x32x128xf32> to vector<1x32xf32>
    %11 = vector.shape_cast %10 : vector<1x32xf32> to vector<1x32x1xf32>
    %cst_7 = arith.constant 1.280000e+02 : f32
    %12 = vector.broadcast %cst_7 : f32 to vector<1x32x1xf32>
    %13 = arith.divf %11, %12 : vector<1x32x1xf32>
    %cst_8 = arith.constant 9.99999974E-6 : f32
    %14 = vector.broadcast %cst_8 : f32 to vector<1x32x1xf32>
    %15 = arith.addf %13, %14 : vector<1x32x1xf32>
    %16 = math.rsqrt %15 : vector<1x32x1xf32>
    %17 = vector.broadcast %16 : vector<1x32x1xf32> to vector<1x32x128xf32>
    %18 = arith.mulf %8, %17 : vector<1x32x128xf32>
    %c0_9 = arith.constant 0 : index
    %c0_10 = arith.constant 0 : index
    %c0_11 = arith.constant 0 : index
    %19 = vector.load %arg3[%c0_9, %c0_10, %c0_11] : memref<1x32x128xf32, #tpu.memory_space<vmem>>, vector<1x32x128xf32>
    %20 = arith.mulf %18, %19 : vector<1x32x128xf32>
    %c0_12 = arith.constant 0 : index
    %c0_13 = arith.constant 0 : index
    %c0_14 = arith.constant 0 : index
    %21 = vector.load %arg4[%c0_12, %c0_13, %c0_14] : memref<1x32x128xf32, #tpu.memory_space<vmem>>, vector<1x32x128xf32>
    %22 = arith.addf %20, %21 : vector<1x32x128xf32>
    %cst_15 = arith.constant 0.000000e+00 : f32
    %23 = vector.broadcast %cst_15 : f32 to vector<1x32x128xf32>
    %24 = arith.subf %23, %22 : vector<1x32x128xf32>
    %25 = math.exp %24 : vector<1x32x128xf32>
    %cst_16 = arith.constant 1.000000e+00 : f32
    %26 = vector.broadcast %cst_16 : f32 to vector<1x32x128xf32>
    %27 = arith.addf %26, %25 : vector<1x32x128xf32>
    %cst_17 = arith.constant 1.000000e+00 : f32
    %28 = vector.broadcast %cst_17 : f32 to vector<1x32x128xf32>
    %29 = arith.divf %28, %27 : vector<1x32x128xf32>
    %30 = arith.mulf %22, %29 : vector<1x32x128xf32>
    %c0_18 = arith.constant 0 : index
    %c0_19 = arith.constant 0 : index
    %c0_20 = arith.constant 0 : index
    %31 = vector.load %arg5[%c0_18, %c0_19, %c0_20] : memref<1x32x128xf32, #tpu.memory_space<vmem>>, vector<1x32x128xf32>
    tpu.vector_store %arg5[%c0_18, %c0_19, %c0_20], %30 {strides = array<i32>} : memref<1x32x128xf32, #tpu.memory_space<vmem>>, vector<1x32x128xf32>,
    return
  }
  func.func @transform_0(%arg0: i32) -> (i32, i32, i32) {
    %c0_i32 = arith.constant 0 : i32
    %c0_i32_0 = arith.constant 0 : i32
    %c0_i32_1 = arith.constant 0 : i32
    return %arg0, %c0_i32, %c0_i32_0 : i32, i32, i32
  }
  func.func @transform_1(%arg0: i32) -> (i32, i32, i32) {
    %c0_i32 = arith.constant 0 : i32
    %c0_i32_0 = arith.constant 0 : i32
    %c0_i32_1 = arith.constant 0 : i32
    return %arg0, %c0_i32, %c0_i32_0 : i32, i32, i32
  }
  func.func @transform_2(%arg0: i32) -> (i32, i32, i32) {
    %c0_i32 = arith.constant 0 : i32
    %c0_i32_0 = arith.constant 0 : i32
    %c0_i32_1 = arith.constant 0 : i32
    %c0_i32_2 = arith.constant 0 : i32
    return %c0_i32, %c0_i32_0, %c0_i32_1 : i32, i32, i32
  }
  func.func @transform_3(%arg0: i32) -> (i32, i32, i32) {
    %c0_i32 = arith.constant 0 : i32
    %c0_i32_0 = arith.constant 0 : i32
    %c0_i32_1 = arith.constant 0 : i32
    %c0_i32_2 = arith.constant 0 : i32
    return %c0_i32, %c0_i32_0, %c0_i32_1 : i32, i32, i32
  }
  func.func @transform_4(%arg0: i32) -> (i32, i32, i32) {
    %c0_i32 = arith.constant 0 : i32
    %c0_i32_0 = arith.constant 0 : i32
    %c0_i32_1 = arith.constant 0 : i32
    return %arg0, %c0_i32, %c0_i32_0 : i32, i32, i32
  }
}

module attributes {stable_mosaic.version = 11 : i64} {
  func.func @_gn_bias_swish_kernel(%arg0: i32, %arg1: memref<1x32x64xf32, #tpu.memory_space<vmem>>, %arg2: memref<1x32x64xf32, #tpu.memory_space<vmem>>, %arg3: memref<1x32x64xf32, #tpu.memory_space<vmem>>, %arg4: memref<1x32x64xf32, #tpu.memory_space<vmem>>, %arg5: memref<1x32x64xf32, #tpu.memory_space<vmem>>) attributes {dimension_semantics = [#tpu.dimension_semantics<parallel>], iteration_bounds = array<i64: 2>, scalar_prefetch = 0 : i64, scratch_operands = 0 : i64, tpu.core_type = #tpu.core_type<tc>, window_params = [{transform_indices = @transform_0, window_bounds = array<i64: 1, 32, 64>}, {transform_indices = @transform_1, window_bounds = array<i64: 1, 32, 64>}, {pipeline_mode = #tpu.pipeline_mode<synchronous>, transform_indices = @transform_2, window_bounds = array<i64: 1, 32, 64>}, {pipeline_mode = #tpu.pipeline_mode<synchronous>, transform_indices = @transform_3, window_bounds = array<i64: 1, 32, 64>}, {transform_indices = @transform_4, window_bounds = array<i64: 1, 32, 64>}]} {
    %c0 = arith.constant 0 : index
    %c0_0 = arith.constant 0 : index
    %c0_1 = arith.constant 0 : index
    %0 = vector.load %arg1[%c0, %c0_0, %c0_1] : memref<1x32x64xf32, #tpu.memory_space<vmem>>, vector<1x32x64xf32>
    %c0_2 = arith.constant 0 : index
    %c0_3 = arith.constant 0 : index
    %c0_4 = arith.constant 0 : index
    %1 = vector.load %arg2[%c0_2, %c0_3, %c0_4] : memref<1x32x64xf32, #tpu.memory_space<vmem>>, vector<1x32x64xf32>
    %2 = arith.addf %0, %1 : vector<1x32x64xf32>
    %cst = arith.constant dense<0.000000e+00> : vector<1x32xf32>
    %3 = vector.multi_reduction <add>, %2, %cst [2] : vector<1x32x64xf32> to vector<1x32xf32>
    %4 = vector.shape_cast %3 : vector<1x32xf32> to vector<1x32x1xf32>
    %cst_5 = arith.constant 6.400000e+01 : f32
    %5 = vector.broadcast %cst_5 : f32 to vector<1x32x1xf32>
    %6 = arith.divf %4, %5 : vector<1x32x1xf32>
    %7 = vector.broadcast %6 : vector<1x32x1xf32> to vector<1x32x64xf32>
    %8 = arith.subf %2, %7 : vector<1x32x64xf32>
    %9 = arith.mulf %8, %8 : vector<1x32x64xf32>
    %cst_6 = arith.constant dense<0.000000e+00> : vector<1x32xf32>
    %10 = vector.multi_reduction <add>, %9, %cst_6 [2] : vector<1x32x64xf32> to vector<1x32xf32>
    %11 = vector.shape_cast %10 : vector<1x32xf32> to vector<1x32x1xf32>
    %cst_7 = arith.constant 6.400000e+01 : f32
    %12 = vector.broadcast %cst_7 : f32 to vector<1x32x1xf32>
    %13 = arith.divf %11, %12 : vector<1x32x1xf32>
    %cst_8 = arith.constant 9.99999974E-6 : f32
    %14 = vector.broadcast %cst_8 : f32 to vector<1x32x1xf32>
    %15 = arith.addf %13, %14 : vector<1x32x1xf32>
    %16 = math.rsqrt %15 : vector<1x32x1xf32>
    %17 = vector.broadcast %16 : vector<1x32x1xf32> to vector<1x32x64xf32>
    %18 = arith.mulf %8, %17 : vector<1x32x64xf32>
    %c0_9 = arith.constant 0 : index
    %c0_10 = arith.constant 0 : index
    %c0_11 = arith.constant 0 : index
    %19 = vector.load %arg3[%c0_9, %c0_10, %c0_11] : memref<1x32x64xf32, #tpu.memory_space<vmem>>, vector<1x32x64xf32>
    %20 = arith.mulf %18, %19 : vector<1x32x64xf32>
    %c0_12 = arith.constant 0 : index
    %c0_13 = arith.constant 0 : index
    %c0_14 = arith.constant 0 : index
    %21 = vector.load %arg4[%c0_12, %c0_13, %c0_14] : memref<1x32x64xf32, #tpu.memory_space<vmem>>, vector<1x32x64xf32>
    %22 = arith.addf %20, %21 : vector<1x32x64xf32>
    %cst_15 = arith.constant 0.000000e+00 : f32
    %23 = vector.broadcast %cst_15 : f32 to vector<1x32x64xf32>
    %24 = arith.subf %23, %22 : vector<1x32x64xf32>
    %25 = math.exp %24 : vector<1x32x64xf32>
    %cst_16 = arith.constant 1.000000e+00 : f32
    %26 = vector.broadcast %cst_16 : f32 to vector<1x32x64xf32>
    %27 = arith.addf %26, %25 : vector<1x32x64xf32>
    %cst_17 = arith.constant 1.000000e+00 : f32
    %28 = vector.broadcast %cst_17 : f32 to vector<1x32x64xf32>
    %29 = arith.divf %28, %27 : vector<1x32x64xf32>
    %30 = arith.mulf %22, %29 : vector<1x32x64xf32>
    %c0_18 = arith.constant 0 : index
    %c0_19 = arith.constant 0 : index
    %c0_20 = arith.constant 0 : index
    %31 = vector.load %arg5[%c0_18, %c0_19, %c0_20] : memref<1x32x64xf32, #tpu.memory_space<vmem>>, vector<1x32x64xf32>
    tpu.vector_store %arg5[%c0_18, %c0_19, %c0_20], %30 {strides = array<i32>} : memref<1x32x64xf32, #tpu.memory_space<vmem>>, vector<1x32x64xf32>,
    return
  }
  func.func @transform_0(%arg0: i32) -> (i32, i32, i32) {
    %c0_i32 = arith.constant 0 : i32
    %c0_i32_0 = arith.constant 0 : i32
    %c0_i32_1 = arith.constant 0 : i32
    return %arg0, %c0_i32, %c0_i32_0 : i32, i32, i32
  }
  func.func @transform_1(%arg0: i32) -> (i32, i32, i32) {
    %c0_i32 = arith.constant 0 : i32
    %c0_i32_0 = arith.constant 0 : i32
    %c0_i32_1 = arith.constant 0 : i32
    return %arg0, %c0_i32, %c0_i32_0 : i32, i32, i32
  }
  func.func @transform_2(%arg0: i32) -> (i32, i32, i32) {
    %c0_i32 = arith.constant 0 : i32
    %c0_i32_0 = arith.constant 0 : i32
    %c0_i32_1 = arith.constant 0 : i32
    %c0_i32_2 = arith.constant 0 : i32
    return %c0_i32, %c0_i32_0, %c0_i32_1 : i32, i32, i32
  }
  func.func @transform_3(%arg0: i32) -> (i32, i32, i32) {
    %c0_i32 = arith.constant 0 : i32
    %c0_i32_0 = arith.constant 0 : i32
    %c0_i32_1 = arith.constant 0 : i32
    %c0_i32_2 = arith.constant 0 : i32
    return %c0_i32, %c0_i32_0, %c0_i32_1 : i32, i32, i32
  }
  func.func @transform_4(%arg0: i32) -> (i32, i32, i32) {
    %c0_i32 = arith.constant 0 : i32
    %c0_i32_0 = arith.constant 0 : i32
    %c0_i32_1 = arith.constant 0 : i32
    return %arg0, %c0_i32, %c0_i32_0 : i32, i32, i32
  }
}

module attributes {stable_mosaic.version = 11 : i64} {
  func.func @_gn_bias_swish_kernel(%arg0: i32, %arg1: memref<1x32x32xf32, #tpu.memory_space<vmem>>, %arg2: memref<1x32x32xf32, #tpu.memory_space<vmem>>, %arg3: memref<1x32x32xf32, #tpu.memory_space<vmem>>, %arg4: memref<1x32x32xf32, #tpu.memory_space<vmem>>, %arg5: memref<1x32x32xf32, #tpu.memory_space<vmem>>) attributes {dimension_semantics = [#tpu.dimension_semantics<parallel>], iteration_bounds = array<i64: 2>, scalar_prefetch = 0 : i64, scratch_operands = 0 : i64, tpu.core_type = #tpu.core_type<tc>, window_params = [{transform_indices = @transform_0, window_bounds = array<i64: 1, 32, 32>}, {transform_indices = @transform_1, window_bounds = array<i64: 1, 32, 32>}, {pipeline_mode = #tpu.pipeline_mode<synchronous>, transform_indices = @transform_2, window_bounds = array<i64: 1, 32, 32>}, {pipeline_mode = #tpu.pipeline_mode<synchronous>, transform_indices = @transform_3, window_bounds = array<i64: 1, 32, 32>}, {transform_indices = @transform_4, window_bounds = array<i64: 1, 32, 32>}]} {
    %c0 = arith.constant 0 : index
    %c0_0 = arith.constant 0 : index
    %c0_1 = arith.constant 0 : index
    %0 = vector.load %arg1[%c0, %c0_0, %c0_1] : memref<1x32x32xf32, #tpu.memory_space<vmem>>, vector<1x32x32xf32>
    %c0_2 = arith.constant 0 : index
    %c0_3 = arith.constant 0 : index
    %c0_4 = arith.constant 0 : index
    %1 = vector.load %arg2[%c0_2, %c0_3, %c0_4] : memref<1x32x32xf32, #tpu.memory_space<vmem>>, vector<1x32x32xf32>
    %2 = arith.addf %0, %1 : vector<1x32x32xf32>
    %cst = arith.constant dense<0.000000e+00> : vector<1x32xf32>
    %3 = vector.multi_reduction <add>, %2, %cst [2] : vector<1x32x32xf32> to vector<1x32xf32>
    %4 = vector.shape_cast %3 : vector<1x32xf32> to vector<1x32x1xf32>
    %cst_5 = arith.constant 3.200000e+01 : f32
    %5 = vector.broadcast %cst_5 : f32 to vector<1x32x1xf32>
    %6 = arith.divf %4, %5 : vector<1x32x1xf32>
    %7 = vector.broadcast %6 : vector<1x32x1xf32> to vector<1x32x32xf32>
    %8 = arith.subf %2, %7 : vector<1x32x32xf32>
    %9 = arith.mulf %8, %8 : vector<1x32x32xf32>
    %cst_6 = arith.constant dense<0.000000e+00> : vector<1x32xf32>
    %10 = vector.multi_reduction <add>, %9, %cst_6 [2] : vector<1x32x32xf32> to vector<1x32xf32>
    %11 = vector.shape_cast %10 : vector<1x32xf32> to vector<1x32x1xf32>
    %cst_7 = arith.constant 3.200000e+01 : f32
    %12 = vector.broadcast %cst_7 : f32 to vector<1x32x1xf32>
    %13 = arith.divf %11, %12 : vector<1x32x1xf32>
    %cst_8 = arith.constant 9.99999974E-6 : f32
    %14 = vector.broadcast %cst_8 : f32 to vector<1x32x1xf32>
    %15 = arith.addf %13, %14 : vector<1x32x1xf32>
    %16 = math.rsqrt %15 : vector<1x32x1xf32>
    %17 = vector.broadcast %16 : vector<1x32x1xf32> to vector<1x32x32xf32>
    %18 = arith.mulf %8, %17 : vector<1x32x32xf32>
    %c0_9 = arith.constant 0 : index
    %c0_10 = arith.constant 0 : index
    %c0_11 = arith.constant 0 : index
    %19 = vector.load %arg3[%c0_9, %c0_10, %c0_11] : memref<1x32x32xf32, #tpu.memory_space<vmem>>, vector<1x32x32xf32>
    %20 = arith.mulf %18, %19 : vector<1x32x32xf32>
    %c0_12 = arith.constant 0 : index
    %c0_13 = arith.constant 0 : index
    %c0_14 = arith.constant 0 : index
    %21 = vector.load %arg4[%c0_12, %c0_13, %c0_14] : memref<1x32x32xf32, #tpu.memory_space<vmem>>, vector<1x32x32xf32>
    %22 = arith.addf %20, %21 : vector<1x32x32xf32>
    %cst_15 = arith.constant 0.000000e+00 : f32
    %23 = vector.broadcast %cst_15 : f32 to vector<1x32x32xf32>
    %24 = arith.subf %23, %22 : vector<1x32x32xf32>
    %25 = math.exp %24 : vector<1x32x32xf32>
    %cst_16 = arith.constant 1.000000e+00 : f32
    %26 = vector.broadcast %cst_16 : f32 to vector<1x32x32xf32>
    %27 = arith.addf %26, %25 : vector<1x32x32xf32>
    %cst_17 = arith.constant 1.000000e+00 : f32
    %28 = vector.broadcast %cst_17 : f32 to vector<1x32x32xf32>
    %29 = arith.divf %28, %27 : vector<1x32x32xf32>
    %30 = arith.mulf %22, %29 : vector<1x32x32xf32>
    %c0_18 = arith.constant 0 : index
    %c0_19 = arith.constant 0 : index
    %c0_20 = arith.constant 0 : index
    %31 = vector.load %arg5[%c0_18, %c0_19, %c0_20] : memref<1x32x32xf32, #tpu.memory_space<vmem>>, vector<1x32x32xf32>
    tpu.vector_store %arg5[%c0_18, %c0_19, %c0_20], %30 {strides = array<i32>} : memref<1x32x32xf32, #tpu.memory_space<vmem>>, vector<1x32x32xf32>,
    return
  }
  func.func @transform_0(%arg0: i32) -> (i32, i32, i32) {
    %c0_i32 = arith.constant 0 : i32
    %c0_i32_0 = arith.constant 0 : i32
    %c0_i32_1 = arith.constant 0 : i32
    return %arg0, %c0_i32, %c0_i32_0 : i32, i32, i32
  }
  func.func @transform_1(%arg0: i32) -> (i32, i32, i32) {
    %c0_i32 = arith.constant 0 : i32
    %c0_i32_0 = arith.constant 0 : i32
    %c0_i32_1 = arith.constant 0 : i32
    return %arg0, %c0_i32, %c0_i32_0 : i32, i32, i32
  }
  func.func @transform_2(%arg0: i32) -> (i32, i32, i32) {
    %c0_i32 = arith.constant 0 : i32
    %c0_i32_0 = arith.constant 0 : i32
    %c0_i32_1 = arith.constant 0 : i32
    %c0_i32_2 = arith.constant 0 : i32
    return %c0_i32, %c0_i32_0, %c0_i32_1 : i32, i32, i32
  }
  func.func @transform_3(%arg0: i32) -> (i32, i32, i32) {
    %c0_i32 = arith.constant 0 : i32
    %c0_i32_0 = arith.constant 0 : i32
    %c0_i32_1 = arith.constant 0 : i32
    %c0_i32_2 = arith.constant 0 : i32
    return %c0_i32, %c0_i32_0, %c0_i32_1 : i32, i32, i32
  }
  func.func @transform_4(%arg0: i32) -> (i32, i32, i32) {
    %c0_i32 = arith.constant 0 : i32
    %c0_i32_0 = arith.constant 0 : i32
    %c0_i32_1 = arith.constant 0 : i32
    return %arg0, %c0_i32, %c0_i32_0 : i32, i32, i32
  }
}

module attributes {stable_mosaic.version = 11 : i64} {
  func.func @_gn_bias_swish_kernel(%arg0: i32, %arg1: memref<1x32x256xf32, #tpu.memory_space<vmem>>, %arg2: memref<1x32x256xf32, #tpu.memory_space<vmem>>, %arg3: memref<1x32x256xf32, #tpu.memory_space<vmem>>, %arg4: memref<1x32x256xf32, #tpu.memory_space<vmem>>, %arg5: memref<1x32x256xf32, #tpu.memory_space<vmem>>) attributes {dimension_semantics = [#tpu.dimension_semantics<parallel>], iteration_bounds = array<i64: 2>, scalar_prefetch = 0 : i64, scratch_operands = 0 : i64, tpu.core_type = #tpu.core_type<tc>, window_params = [{transform_indices = @transform_0, window_bounds = array<i64: 1, 32, 256>}, {transform_indices = @transform_1, window_bounds = array<i64: 1, 32, 256>}, {pipeline_mode = #tpu.pipeline_mode<synchronous>, transform_indices = @transform_2, window_bounds = array<i64: 1, 32, 256>}, {pipeline_mode = #tpu.pipeline_mode<synchronous>, transform_indices = @transform_3, window_bounds = array<i64: 1, 32, 256>}, {transform_indices = @transform_4, window_bounds = array<i64: 1, 32, 256>}]} {
    %c0 = arith.constant 0 : index
    %c0_0 = arith.constant 0 : index
    %c0_1 = arith.constant 0 : index
    %0 = vector.load %arg1[%c0, %c0_0, %c0_1] : memref<1x32x256xf32, #tpu.memory_space<vmem>>, vector<1x32x256xf32>
    %c0_2 = arith.constant 0 : index
    %c0_3 = arith.constant 0 : index
    %c0_4 = arith.constant 0 : index
    %1 = vector.load %arg2[%c0_2, %c0_3, %c0_4] : memref<1x32x256xf32, #tpu.memory_space<vmem>>, vector<1x32x256xf32>
    %2 = arith.addf %0, %1 : vector<1x32x256xf32>
    %cst = arith.constant dense<0.000000e+00> : vector<1x32xf32>
    %3 = vector.multi_reduction <add>, %2, %cst [2] : vector<1x32x256xf32> to vector<1x32xf32>
    %4 = vector.shape_cast %3 : vector<1x32xf32> to vector<1x32x1xf32>
    %cst_5 = arith.constant 2.560000e+02 : f32
    %5 = vector.broadcast %cst_5 : f32 to vector<1x32x1xf32>
    %6 = arith.divf %4, %5 : vector<1x32x1xf32>
    %7 = vector.broadcast %6 : vector<1x32x1xf32> to vector<1x32x256xf32>
    %8 = arith.subf %2, %7 : vector<1x32x256xf32>
    %9 = arith.mulf %8, %8 : vector<1x32x256xf32>
    %cst_6 = arith.constant dense<0.000000e+00> : vector<1x32xf32>
    %10 = vector.multi_reduction <add>, %9, %cst_6 [2] : vector<1x32x256xf32> to vector<1x32xf32>
    %11 = vector.shape_cast %10 : vector<1x32xf32> to vector<1x32x1xf32>
    %cst_7 = arith.constant 2.560000e+02 : f32
    %12 = vector.broadcast %cst_7 : f32 to vector<1x32x1xf32>
    %13 = arith.divf %11, %12 : vector<1x32x1xf32>
    %cst_8 = arith.constant 9.99999974E-6 : f32
    %14 = vector.broadcast %cst_8 : f32 to vector<1x32x1xf32>
    %15 = arith.addf %13, %14 : vector<1x32x1xf32>
    %16 = math.rsqrt %15 : vector<1x32x1xf32>
    %17 = vector.broadcast %16 : vector<1x32x1xf32> to vector<1x32x256xf32>
    %18 = arith.mulf %8, %17 : vector<1x32x256xf32>
    %c0_9 = arith.constant 0 : index
    %c0_10 = arith.constant 0 : index
    %c0_11 = arith.constant 0 : index
    %19 = vector.load %arg3[%c0_9, %c0_10, %c0_11] : memref<1x32x256xf32, #tpu.memory_space<vmem>>, vector<1x32x256xf32>
    %20 = arith.mulf %18, %19 : vector<1x32x256xf32>
    %c0_12 = arith.constant 0 : index
    %c0_13 = arith.constant 0 : index
    %c0_14 = arith.constant 0 : index
    %21 = vector.load %arg4[%c0_12, %c0_13, %c0_14] : memref<1x32x256xf32, #tpu.memory_space<vmem>>, vector<1x32x256xf32>
    %22 = arith.addf %20, %21 : vector<1x32x256xf32>
    %cst_15 = arith.constant 0.000000e+00 : f32
    %23 = vector.broadcast %cst_15 : f32 to vector<1x32x256xf32>
    %24 = arith.subf %23, %22 : vector<1x32x256xf32>
    %25 = math.exp %24 : vector<1x32x256xf32>
    %cst_16 = arith.constant 1.000000e+00 : f32
    %26 = vector.broadcast %cst_16 : f32 to vector<1x32x256xf32>
    %27 = arith.addf %26, %25 : vector<1x32x256xf32>
    %cst_17 = arith.constant 1.000000e+00 : f32
    %28 = vector.broadcast %cst_17 : f32 to vector<1x32x256xf32>
    %29 = arith.divf %28, %27 : vector<1x32x256xf32>
    %30 = arith.mulf %22, %29 : vector<1x32x256xf32>
    %c0_18 = arith.constant 0 : index
    %c0_19 = arith.constant 0 : index
    %c0_20 = arith.constant 0 : index
    %31 = vector.load %arg5[%c0_18, %c0_19, %c0_20] : memref<1x32x256xf32, #tpu.memory_space<vmem>>, vector<1x32x256xf32>
    tpu.vector_store %arg5[%c0_18, %c0_19, %c0_20], %30 {strides = array<i32>} : memref<1x32x256xf32, #tpu.memory_space<vmem>>, vector<1x32x256xf32>,
    return
  }
  func.func @transform_0(%arg0: i32) -> (i32, i32, i32) {
    %c0_i32 = arith.constant 0 : i32
    %c0_i32_0 = arith.constant 0 : i32
    %c0_i32_1 = arith.constant 0 : i32
    return %arg0, %c0_i32, %c0_i32_0 : i32, i32, i32
  }
  func.func @transform_1(%arg0: i32) -> (i32, i32, i32) {
    %c0_i32 = arith.constant 0 : i32
    %c0_i32_0 = arith.constant 0 : i32
    %c0_i32_1 = arith.constant 0 : i32
    return %arg0, %c0_i32, %c0_i32_0 : i32, i32, i32
  }
  func.func @transform_2(%arg0: i32) -> (i32, i32, i32) {
    %c0_i32 = arith.constant 0 : i32
    %c0_i32_0 = arith.constant 0 : i32
    %c0_i32_1 = arith.constant 0 : i32
    %c0_i32_2 = arith.constant 0 : i32
    return %c0_i32, %c0_i32_0, %c0_i32_1 : i32, i32, i32
  }
  func.func @transform_3(%arg0: i32) -> (i32, i32, i32) {
    %c0_i32 = arith.constant 0 : i32
    %c0_i32_0 = arith.constant 0 : i32
    %c0_i32_1 = arith.constant 0 : i32
    %c0_i32_2 = arith.constant 0 : i32
    return %c0_i32, %c0_i32_0, %c0_i32_1 : i32, i32, i32
  }
  func.func @transform_4(%arg0: i32) -> (i32, i32, i32) {
    %c0_i32 = arith.constant 0 : i32
    %c0_i32_0 = arith.constant 0 : i32
    %c0_i32_1 = arith.constant 0 : i32
    return %arg0, %c0_i32, %c0_i32_0 : i32, i32, i32
  }
}

</mosaic_0001>

<llo_original>
// kernel: scorenet_forward.8
$region0: #{scorenet_forward.8}
  #allocation0 [shape = 'u32[]', space=smem, size = 0x4, offset = 0x4, fixed_abs, tag = 'smem constant byte address 0x4 - core index']
  #allocation1 [shape = 'u32[144,128]{1,0:T(1,128)}', space=vmem, size = 0x12000, scoped, tag = 'internal scratch']
  %s0 = inlined_call_operand.vmem [shape: f32[2,1], index: 0, kind: input, shape index: {}]
  %s1 = inlined_call_operand.hbm [shape: f32[1,128], index: 1, kind: input, shape index: {}]
  %s2 = inlined_call_operand.hbm [shape: bf16[256,256], index: 2, kind: input, shape index: {}]
  %s3 = inlined_call_operand.hbm [shape: f32[1,256], index: 3, kind: input, shape index: {}]
  %s4 = inlined_call_operand.hbm [shape: bf16[256,768], index: 4, kind: input, shape index: {}]
  %s5 = inlined_call_operand.vmem [shape: f32[1,768], index: 5, kind: input, shape index: {}]
  %s6 = inlined_call_operand.vmem [shape: f32[2,768], index: 6, kind: output, shape index: {}]
  %s7 = sld [smem:[#allocation0]]
  $region50: #{scorenet_forward.8} parent=0
    _
  %s9 = ssub.s32 1, %s7
  %s10 = scalar_select 0, %s9, %s7
  $region1: #{scorenet_forward.8} parent=0
    #allocation2 [shape = 'u8[512]{0}', space=vmem, size = 0x400, scoped, tag = 'input window, operand 1, single buffered']
    #allocation3 [shape = 's32[1]{0}', space=sflag, size = 0x4, scoped, tag = 'scoped memory for scorenet_forward.8']
    #allocation4 [shape = 'u8[131072]{0}', space=vmem, size = 0x20000, scoped, tag = 'input window, operand 2, single buffered']
    #allocation5 [shape = 's32[1]{0}', space=sflag, size = 0x4, scoped, tag = 'scoped memory for scorenet_forward.8']
    #allocation6 [shape = 'u8[1024]{0}', space=vmem, size = 0x400, scoped, tag = 'input window, operand 3, single buffered']
    #allocation7 [shape = 'u8[393216]{0}', space=vmem, size = 0x60000, scoped, tag = 'input window, operand 4, single buffered']
    #allocation8 [shape = 's32[1]{0}', space=sflag, size = 0x4, scoped, tag = 'scoped memory for scorenet_forward.8']
    %11 = vsyncpa [#allocation3], 0
    %12 = vsyncpa [#allocation5], 0
    %13 = vsyncpa [#allocation8], 0
    // Predicated region
    $region2: #{scorenet_forward.8} parent=1 // pred_check
      _
    $region3: #{scorenet_forward.8} parent=1 // pred_check_branch
      %15 = sbr.rel (0) target = $region5
    $region4: #{scorenet_forward.8} parent=1 // pred_region
      _
    $region5: #{scorenet_forward.8} parent=1 // pred_fallthru
      _
    // Predicated region
    $region6: #{scorenet_forward.8} parent=1 // pred_check
      _
    $region7: #{scorenet_forward.8} parent=1 // pred_check_branch
      %17 = sbr.rel (0) target = $region9
    $region8: #{scorenet_forward.8} parent=1 // pred_region
      %s19 = ssub.s32 16, 16
      %20 = vsyncadd [#allocation3], %s19
      %s22 = sshll.u32 [#allocation2], 4
      %s23 = int_to_ptr.vmem [resolvable:$true] %s22
      %25 = dma.hbm_to_vmem [thread:$0]  %s1, 16, %s23, [#allocation3]
    $region9: #{scorenet_forward.8} parent=1 // pred_fallthru
      _
    // Predicated region
    $region10: #{scorenet_forward.8} parent=1 // pred_check
      _
    $region11: #{scorenet_forward.8} parent=1 // pred_check_branch
      %27 = sbr.rel (0) target = $region13
    $region12: #{scorenet_forward.8} parent=1 // pred_region
      %s29 = ssub.s32 4096, 4096
      %30 = vsyncadd [#allocation5], %s29
      %s31 = sshll.u32 [#allocation4], 4
      %s32 = int_to_ptr.vmem [resolvable:$true] %s31
      %37 = dma.hbm_to_vmem [thread:$0]  %s2, 4096, %s32, [#allocation5], 128, 128, 8
    $region13: #{scorenet_forward.8} parent=1 // pred_fallthru
      _
    // Predicated region
    $region14: #{scorenet_forward.8} parent=1 // pred_check
      _
    $region15: #{scorenet_forward.8} parent=1 // pred_check_branch
      %39 = sbr.rel (0) target = $region17
    $region16: #{scorenet_forward.8} parent=1 // pred_region
      %s41 = ssub.s32 32, 32
      %42 = vsyncadd [#allocation5], %s41
      %s44 = sshll.u32 [#allocation6], 4
      %s45 = int_to_ptr.vmem [resolvable:$true] %s44
      %47 = dma.hbm_to_vmem [thread:$0]  %s3, 32, %s45, [#allocation5]
    $region17: #{scorenet_forward.8} parent=1 // pred_fallthru
      _
    // Predicated region
    $region18: #{scorenet_forward.8} parent=1 // pred_check
      _
    $region19: #{scorenet_forward.8} parent=1 // pred_check_branch
      %49 = sbr.rel (0) target = $region21
    $region20: #{scorenet_forward.8} parent=1 // pred_region
      %s51 = ssub.s32 12288, 12288
      %52 = vsyncadd [#allocation8], %s51
      %s53 = sshll.u32 [#allocation7], 4
      %s54 = int_to_ptr.vmem [resolvable:$true] %s53
      %59 = dma.hbm_to_vmem [thread:$0]  %s4, 12288, %s54, [#allocation8], 384, 384, 24
    $region21: #{scorenet_forward.8} parent=1 // pred_fallthru
      _
    // Predicated region
    $region22: #{scorenet_forward.8} parent=1 // pred_check
      _
    $region23: #{scorenet_forward.8} parent=1 // pred_check_branch
      %61 = sbr.rel (0) target = $region25
    $region24: #{scorenet_forward.8} parent=1 // pred_region
      _
    $region25: #{scorenet_forward.8} parent=1 // pred_fallthru
      _
    // Predicated region
    $region26: #{scorenet_forward.8} parent=1 // pred_check
      _
    $region27: #{scorenet_forward.8} parent=1 // pred_check_branch
      %63 = sbr.rel (0) target = $region29
    $region28: #{scorenet_forward.8} parent=1 // pred_region
      %64 = dma.done [#allocation3], 16
    $region29: #{scorenet_forward.8} parent=1 // pred_fallthru
      _
    // Predicated region
    $region30: #{scorenet_forward.8} parent=1 // pred_check
      _
    $region31: #{scorenet_forward.8} parent=1 // pred_check_branch
      %66 = sbr.rel (0) target = $region33
    $region32: #{scorenet_forward.8} parent=1 // pred_region
      %67 = dma.done [#allocation5], 4096
    $region33: #{scorenet_forward.8} parent=1 // pred_fallthru
      _
    // Predicated region
    $region34: #{scorenet_forward.8} parent=1 // pred_check
      _
    $region35: #{scorenet_forward.8} parent=1 // pred_check_branch
      %69 = sbr.rel (0) target = $region37
    $region36: #{scorenet_forward.8} parent=1 // pred_region
      %70 = dma.done [#allocation5], 32
    $region37: #{scorenet_forward.8} parent=1 // pred_fallthru
      _
    // Predicated region
    $region38: #{scorenet_forward.8} parent=1 // pred_check
      _
    $region39: #{scorenet_forward.8} parent=1 // pred_check_branch
      %72 = sbr.rel (0) target = $region41
    $region40: #{scorenet_forward.8} parent=1 // pred_region
      %73 = dma.done [#allocation8], 12288
    $region41: #{scorenet_forward.8} parent=1 // pred_fallthru
      _
    %v74 = vld [vmem:[%s0] sm:$0x3]
    %v75 = vld [vmem:[#allocation2] sm:$0x1]
    %77 = vset.pattern.permute.xlu0 0
    %78 = vperm.xlu0 %77, %v74
    %v79 = vpop.permute.xlu0 %78
    %v82 = vlaneseq
    %v83 = vshrl.u32 %v82, 7
    %v84 = vsub.s32 0, %v83
    %v85 = vrot.slane %v75, %v84
    %v87 = vmul.f32 %v79, %v85
    %v88 = vmul.f32 %v87, 6.2831855
    %v89 = vand.u32 2147483647, %v88
    %vm90 = vcmp.le.f32.partialorder %v89, 0.7853982
    %vm91 = vcmp.lt.s32.totalorder %v88, 0
    %v92 = vand.u32 %v88, 2139095040
    %v93 = vshrl.u32 %v92, 23
    %v94 = vsub.s32 %v93, 127
    %v95 = vand.u32 2147483647, %v88
    %v96 = vand.u32 %v95, 8388607
    %v97 = vor.u32 %v96, 8388608
    %v98 = vsub.s32 0, %v97
    %v99 = vadd.s32 %v94, 1
    %vm100 = vcmp.gt.s32.totalorder %v99, 0
    %v101 = vsel %vm100, %v99, 0
    %v102 = vshrl.u32 %v101, 5
    %v103 = vand.u32 %v101, 31
    %v104 = vsub.s32 32, %v103
    %v105 = vshrl.u32 683565275, %v104
    %v106 = vshll.u32 683565275, %v103
    %v107 = vshrl.u32 2475754826, %v104
    %v108 = vor.u32 %v106, %v107
    %v109 = vshll.u32 2475754826, %v103
    %v110 = vshrl.u32 2131351028, %v104
    %v111 = vor.u32 %v109, %v110
    %v112 = vshll.u32 2131351028, %v103
    %v113 = vshrl.u32 2102212464, %v104
    %v114 = vor.u32 %v112, %v113
    %v115 = vshll.u32 2102212464, %v103
    %v116 = vshrl.u32 920167782, %v104
    %v117 = vor.u32 %v115, %v116
    %v118 = vshll.u32 920167782, %v103
    %v119 = vshrl.u32 1326507024, %v104
    %v120 = vor.u32 %v118, %v119
    %vm121 = vcmp.lt.s32.totalorder %v102, 1
    %vm122 = vcmp.lt.s32.totalorder %v102, 2
    %vm123 = vcmp.lt.s32.totalorder %v102, 3
    %vm124 = vcmp.lt.s32.totalorder %v102, 4
    %v125 = vsel %vm121, %v105, %v108
    %v126 = vsel %vm124, %v114, 2102212464
    %v127 = vsel %vm123, %v111, %v126
    %v128 = vsel %vm122, %v125, %v127
    %v129 = vsel %vm121, %v108, %v111
    %v130 = vsel %vm124, %v117, 920167782
    %v131 = vsel %vm123, %v114, %v130
    %v132 = vsel %vm122, %v129, %v131
    %v133 = vsel %vm121, %v111, %v114
    %v134 = vsel %vm124, %v120, 1326507024
    %v135 = vsel %vm123, %v117, %v134
    %v136 = vsel %vm122, %v133, %v135
    %v137 = vshll.u32 %v97, 8
    %v138 = vmul.u32.u64.compose %v137, %v136
    %v139 = vextract.low.u32 %v138
    %v140 = vextract.high.u32 %v138
    %v141 = vmul.u32.u64.compose %v137, %v132
    %v142 = vextract.low.u32 %v141
    %v143 = vextract.high.u32 %v141
    %v144 = vmul.u32 %v137, %v128
    %v145 = vadd.s32 %v140, %v142
    %vm146 = vc.u32 %v140, %v142
    %v147 = vadd.s32 %v143, 1
    %v148 = vsel %vm146, %v147, %v143
    %v149 = vadd.s32 %v144, %v148
    %v150 = vadd.s32 %v149, 536870912
    %v151 = vshrl.u32 %v150, 30
    %v152 = vshll.u32 %v151, 30
    %v153 = vsub.s32 %v149, %v152
    %vm154 = vcmp.lt.s32.totalorder %v153, 0
    %v155 = vsub.s32 0, %v153
    %v156 = vsel %vm154, %v155, %v153
    %v157 = vclz %v156
    %v158 = vsub.s32 %v157, 2
    %vm159 = vcmp.gt.s32.totalorder 0, %v158
    %v160 = vsel %vm159, 0, %v158
    %v161 = vsub.s32 32, %v160
    %v162 = vshll.u32 %v153, %v160
    %v163 = vshrl.u32 %v145, %v161
    %v164 = vor.u32 %v162, %v163
    %v165 = vsub.s32 4294967266, %v160
    %v166 = vadd.s32 %v165, 127
    %v167 = vshll.u32 %v166, 23
    %v168 = vor.u32 4788187, %v167
    %v169 = vand.u32 2147483647, %v168
    %v171 = vcvt.s32.f32 %v164
    %v172 = vmul.f32 %v171, %v169
    %v173 = vxor.u32 %v172, 2147483648
    %v174 = vsel %vm91, %v173, %v172
    %v175 = vsub.s32 4, %v151
    %v176 = vsel %vm91, %v175, %v151
    %v177 = vsel %vm90, %v88, %v174
    %v178 = vsel %vm90, 0, %v176
    %v179 = vcosq.f32.pop %v177
    %v180 = vsinq.f32.pop %v177
    %vm181 = vweird.f32 %v88
    %v182 = vadd.s32 %v178, 3
    %v183 = vand.u32 %v182, 3
    %vm184 = vcmp.lt.s32.totalorder %v183, 2
    %vm185 = vcmp.eq.s32.totalorder %v183, 0
    %v186 = vxor.u32 %v180, 2147483648
    %v187 = vsel %vm185, %v179, %v186
    %vm188 = vcmp.eq.s32.totalorder %v183, 2
    %v189 = vxor.u32 %v179, 2147483648
    %v190 = vsel %vm188, %v189, %v180
    %v191 = vsel %vm184, %v187, %v190
    %v192 = vsel %vm181, nan, %v191
    %v193 = vand.u32 2147483647, %v88
    %vm194 = vcmp.le.f32.partialorder %v193, 0.7853982
    %vm195 = vcmp.lt.s32.totalorder %v88, 0
    %v196 = vand.u32 %v88, 2139095040
    %v197 = vshrl.u32 %v196, 23
    %v198 = vsub.s32 %v197, 127
    %v199 = vand.u32 2147483647, %v88
    %v200 = vand.u32 %v199, 8388607
    %v201 = vor.u32 %v200, 8388608
    %v202 = vsub.s32 0, %v201
    %v203 = vadd.s32 %v198, 1
    %vm204 = vcmp.gt.s32.totalorder %v203, 0
    %v205 = vsel %vm204, %v203, 0
    %v206 = vshrl.u32 %v205, 5
    %v207 = vand.u32 %v205, 31
    %v208 = vsub.s32 32, %v207
    %v209 = vshrl.u32 683565275, %v208
    %v210 = vshll.u32 683565275, %v207
    %v211 = vshrl.u32 2475754826, %v208
    %v212 = vor.u32 %v210, %v211
    %v213 = vshll.u32 2475754826, %v207
    %v214 = vshrl.u32 2131351028, %v208
    %v215 = vor.u32 %v213, %v214
    %v216 = vshll.u32 2131351028, %v207
    %v217 = vshrl.u32 2102212464, %v208
    %v218 = vor.u32 %v216, %v217
    %v219 = vshll.u32 2102212464, %v207
    %v220 = vshrl.u32 920167782, %v208
    %v221 = vor.u32 %v219, %v220
    %v222 = vshll.u32 920167782, %v207
    %v223 = vshrl.u32 1326507024, %v208
    %v224 = vor.u32 %v222, %v223
    %vm225 = vcmp.lt.s32.totalorder %v206, 1
    %vm226 = vcmp.lt.s32.totalorder %v206, 2
    %vm227 = vcmp.lt.s32.totalorder %v206, 3
    %vm228 = vcmp.lt.s32.totalorder %v206, 4
    %v229 = vsel %vm225, %v209, %v212
    %v230 = vsel %vm228, %v218, 2102212464
    %v231 = vsel %vm227, %v215, %v230
    %v232 = vsel %vm226, %v229, %v231
    %v233 = vsel %vm225, %v212, %v215
    %v234 = vsel %vm228, %v221, 920167782
    %v235 = vsel %vm227, %v218, %v234
    %v236 = vsel %vm226, %v233, %v235
    %v237 = vsel %vm225, %v215, %v218
    %v238 = vsel %vm228, %v224, 1326507024
    %v239 = vsel %vm227, %v221, %v238
    %v240 = vsel %vm226, %v237, %v239
    %v241 = vshll.u32 %v201, 8
    %v242 = vmul.u32.u64.compose %v241, %v240
    %v243 = vextract.low.u32 %v242
    %v244 = vextract.high.u32 %v242
    %v245 = vmul.u32.u64.compose %v241, %v236
    %v246 = vextract.low.u32 %v245
    %v247 = vextract.high.u32 %v245
    %v248 = vmul.u32 %v241, %v232
    %v249 = vadd.s32 %v244, %v246
    %vm250 = vc.u32 %v244, %v246
    %v251 = vadd.s32 %v247, 1
    %v252 = vsel %vm250, %v251, %v247
    %v253 = vadd.s32 %v248, %v252
    %v254 = vadd.s32 %v253, 536870912
    %v255 = vshrl.u32 %v254, 30
    %v256 = vshll.u32 %v255, 30
    %v257 = vsub.s32 %v253, %v256
    %vm258 = vcmp.lt.s32.totalorder %v257, 0
    %v259 = vsub.s32 0, %v257
    %v260 = vsel %vm258, %v259, %v257
    %v261 = vclz %v260
    %v262 = vsub.s32 %v261, 2
    %vm263 = vcmp.gt.s32.totalorder 0, %v262
    %v264 = vsel %vm263, 0, %v262
    %v265 = vsub.s32 32, %v264
    %v266 = vshll.u32 %v257, %v264
    %v267 = vshrl.u32 %v249, %v265
    %v268 = vor.u32 %v266, %v267
    %v269 = vsub.s32 4294967266, %v264
    %v270 = vadd.s32 %v269, 127
    %v271 = vshll.u32 %v270, 23
    %v272 = vor.u32 4788187, %v271
    %v273 = vand.u32 2147483647, %v272
    %v275 = vcvt.s32.f32 %v268
    %v276 = vmul.f32 %v275, %v273
    %v277 = vxor.u32 %v276, 2147483648
    %v278 = vsel %vm195, %v277, %v276
    %v279 = vsub.s32 4, %v255
    %v280 = vsel %vm195, %v279, %v255
    %v281 = vsel %vm194, %v88, %v278
    %v282 = vsel %vm194, 0, %v280
    %v283 = vcosq.f32.pop %v281
    %v284 = vsinq.f32.pop %v281
    %vm285 = vweird.f32 %v88
    %v286 = vand.u32 %v282, 3
    %vm287 = vcmp.lt.s32.totalorder %v286, 2
    %vm288 = vcmp.eq.s32.totalorder %v286, 0
    %v289 = vxor.u32 %v284, 2147483648
    %v290 = vsel %vm288, %v283, %v289
    %vm291 = vcmp.eq.s32.totalorder %v286, 2
    %v292 = vxor.u32 %v283, 2147483648
    %v293 = vsel %vm291, %v292, %v284
    %v294 = vsel %vm287, %v290, %v293
    %v295 = vsel %vm285, nan, %v294
    %v296 = vpack.c.bf16 %v192, %v192
    %v297 = vpack.c.bf16 %v295, %v295
    %v298 = vld [vmem:[#allocation4] sm:$0xff]
    %v299 = vld [vmem:[#allocation4 + $0x8] sm:$0xff]
    %v300 = vld [vmem:[#allocation4 + $0x10] sm:$0xff]
    %v301 = vld [vmem:[#allocation4 + $0x18] sm:$0xff]
    %v302 = vld [vmem:[#allocation4 + $0x20] sm:$0xff]
    %v303 = vld [vmem:[#allocation4 + $0x28] sm:$0xff]
    %v304 = vld [vmem:[#allocation4 + $0x30] sm:$0xff]
    %v305 = vld [vmem:[#allocation4 + $0x38] sm:$0xff]
    %v306 = vld [vmem:[#allocation4 + $0x40] sm:$0xff]
    %v307 = vld [vmem:[#allocation4 + $0x48] sm:$0xff]
    %v308 = vld [vmem:[#allocation4 + $0x50] sm:$0xff]
    %v309 = vld [vmem:[#allocation4 + $0x58] sm:$0xff]
    %v310 = vld [vmem:[#allocation4 + $0x60] sm:$0xff]
    %v311 = vld [vmem:[#allocation4 + $0x68] sm:$0xff]
    %v312 = vld [vmem:[#allocation4 + $0x70] sm:$0xff]
    %v313 = vld [vmem:[#allocation4 + $0x78] sm:$0xff]
    %v314 = vld [vmem:[#allocation4 + $0x80] sm:$0xff]
    %v315 = vld [vmem:[#allocation4 + $0x88] sm:$0xff]
    %v316 = vld [vmem:[#allocation4 + $0x90] sm:$0xff]
    %v317 = vld [vmem:[#allocation4 + $0x98] sm:$0xff]
    %v318 = vld [vmem:[#allocation4 + $0xa0] sm:$0xff]
    %v319 = vld [vmem:[#allocation4 + $0xa8] sm:$0xff]
    %v320 = vld [vmem:[#allocation4 + $0xb0] sm:$0xff]
    %v321 = vld [vmem:[#allocation4 + $0xb8] sm:$0xff]
    %v322 = vld [vmem:[#allocation4 + $0xc0] sm:$0xff]
    %v323 = vld [vmem:[#allocation4 + $0xc8] sm:$0xff]
    %v324 = vld [vmem:[#allocation4 + $0xd0] sm:$0xff]
    %v325 = vld [vmem:[#allocation4 + $0xd8] sm:$0xff]
    %v326 = vld [vmem:[#allocation4 + $0xe0] sm:$0xff]
    %v327 = vld [vmem:[#allocation4 + $0xe8] sm:$0xff]
    %v328 = vld [vmem:[#allocation4 + $0xf0] sm:$0xff]
    %v329 = vld [vmem:[#allocation4 + $0xf8] sm:$0xff]
    %v330 = vld [vmem:[#allocation6] sm:$0x3]
    %v332 = vlaneseq
    %v333 = vshrl.u32 %v332, 7
    %v334 = vsub.s32 0, %v333
    %v335 = vrot.slane %v330, %v334
    %v336 = vlaneseq
    %v337 = vshrl.u32 %v336, 7
    %v338 = vsub.s32 1, %v337
    %v339 = vrot.slane %v330, %v338
    %v374 = vunpack.c.l.b16 %v298
    %v375 = vunpack.c.h.b16 %v298
    %v376 = vunpack.c.l.b16 %v299
    %v377 = vunpack.c.h.b16 %v299
    %v378 = vunpack.c.l.b16 %v300
    %v379 = vunpack.c.h.b16 %v300
    %v380 = vunpack.c.l.b16 %v301
    %v381 = vunpack.c.h.b16 %v301
    %v382 = vunpack.c.l.b16 %v302
    %v383 = vunpack.c.h.b16 %v302
    %v384 = vunpack.c.l.b16 %v303
    %v385 = vunpack.c.h.b16 %v303
    %v386 = vunpack.c.l.b16 %v304
    %v387 = vunpack.c.h.b16 %v304
    %v388 = vunpack.c.l.b16 %v305
    %v389 = vunpack.c.h.b16 %v305
    %v390 = vunpack.c.l.b16 %v306
    %v391 = vunpack.c.h.b16 %v306
    %v392 = vunpack.c.l.b16 %v307
    %v393 = vunpack.c.h.b16 %v307
    %v394 = vunpack.c.l.b16 %v308
    %v395 = vunpack.c.h.b16 %v308
    %v396 = vunpack.c.l.b16 %v309
    %v397 = vunpack.c.h.b16 %v309
    %v398 = vunpack.c.l.b16 %v310
    %v399 = vunpack.c.h.b16 %v310
    %v400 = vunpack.c.l.b16 %v311
    %v401 = vunpack.c.h.b16 %v311
    %v402 = vunpack.c.l.b16 %v312
    %v403 = vunpack.c.h.b16 %v312
    %v404 = vunpack.c.l.b16 %v313
    %v405 = vunpack.c.h.b16 %v313
    %v406 = vunpack.c.l.b16 %v314
    %v407 = vunpack.c.h.b16 %v314
    %v408 = vunpack.c.l.b16 %v315
    %v409 = vunpack.c.h.b16 %v315
    %v410 = vunpack.c.l.b16 %v316
    %v411 = vunpack.c.h.b16 %v316
    %v412 = vunpack.c.l.b16 %v317
    %v413 = vunpack.c.h.b16 %v317
    %v414 = vunpack.c.l.b16 %v318
    %v415 = vunpack.c.h.b16 %v318
    %v416 = vunpack.c.l.b16 %v319
    %v417 = vunpack.c.h.b16 %v319
    %v418 = vunpack.c.l.b16 %v320
    %v419 = vunpack.c.h.b16 %v320
    %v420 = vunpack.c.l.b16 %v321
    %v421 = vunpack.c.h.b16 %v321
    %v422 = vunpack.c.l.b16 %v322
    %v423 = vunpack.c.h.b16 %v322
    %v424 = vunpack.c.l.b16 %v323
    %v425 = vunpack.c.h.b16 %v323
    %v426 = vunpack.c.l.b16 %v324
    %v427 = vunpack.c.h.b16 %v324
    %v428 = vunpack.c.l.b16 %v325
    %v429 = vunpack.c.h.b16 %v325
    %v430 = vunpack.c.l.b16 %v326
    %v431 = vunpack.c.h.b16 %v326
    %v432 = vunpack.c.l.b16 %v327
    %v433 = vunpack.c.h.b16 %v327
    %v434 = vunpack.c.l.b16 %v328
    %v435 = vunpack.c.h.b16 %v328
    %v436 = vunpack.c.l.b16 %v329
    %v437 = vunpack.c.h.b16 %v329
    %v438 = vpack.c.b16 %v376, %v374
    %v439 = vpack.c.b16 %v377, %v375
    %v440 = vpack.c.b16 %v380, %v378
    %v441 = vpack.c.b16 %v381, %v379
    %v442 = vpack.c.b16 %v384, %v382
    %v443 = vpack.c.b16 %v385, %v383
    %v444 = vpack.c.b16 %v388, %v386
    %v445 = vpack.c.b16 %v389, %v387
    %v446 = vpack.c.b16 %v392, %v390
    %v447 = vpack.c.b16 %v393, %v391
    %v448 = vpack.c.b16 %v396, %v394
    %v449 = vpack.c.b16 %v397, %v395
    %v450 = vpack.c.b16 %v400, %v398
    %v451 = vpack.c.b16 %v401, %v399
    %v452 = vpack.c.b16 %v404, %v402
    %v453 = vpack.c.b16 %v405, %v403
    %v454 = vpack.c.b16 %v408, %v406
    %v455 = vpack.c.b16 %v409, %v407
    %v456 = vpack.c.b16 %v412, %v410
    %v457 = vpack.c.b16 %v413, %v411
    %v458 = vpack.c.b16 %v416, %v414
    %v459 = vpack.c.b16 %v417, %v415
    %v460 = vpack.c.b16 %v420, %v418
    %v461 = vpack.c.b16 %v421, %v419
    %v462 = vpack.c.b16 %v424, %v422
    %v463 = vpack.c.b16 %v425, %v423
    %v464 = vpack.c.b16 %v428, %v426
    %v465 = vpack.c.b16 %v429, %v427
    %v466 = vpack.c.b16 %v432, %v430
    %v467 = vpack.c.b16 %v433, %v431
    %v468 = vpack.c.b16 %v436, %v434
    %v469 = vpack.c.b16 %v437, %v435
    %502 = vmatprep.subr.bf16.mxu0 %v439
    %503 = vmatpush1.bf16.msra.mxu0 %v438
    %504 = vmatprep.subr.bf16.mxu0 %v441
    %505 = vmatpush1.bf16.msra.mxu0 %v440
    %506 = vmatprep.subr.bf16.mxu0 %v443
    %507 = vmatpush1.bf16.msra.mxu0 %v442
    %508 = vmatprep.subr.bf16.mxu0 %v445
    %509 = vmatpush1.bf16.msra.mxu0 %v444
    %510 = vmatprep.subr.bf16.mxu0 %v447
    %511 = vmatpush1.bf16.msra.mxu0 %v446
    %512 = vmatprep.subr.bf16.mxu0 %v449
    %513 = vmatpush1.bf16.msra.mxu0 %v448
    %514 = vmatprep.subr.bf16.mxu0 %v451
    %515 = vmatpush1.bf16.msra.mxu0 %v450
    %516 = vmatprep.subr.bf16.mxu0 %v453
    %517 = vmatpush1.bf16.msra.mxu0 %v452
    %518 = vmatprep.subr.bf16.mxu0 %v455
    %519 = vmatpush1.bf16.msra.mxu0 %v454
    %520 = vmatprep.subr.bf16.mxu0 %v457
    %521 = vmatpush1.bf16.msra.mxu0 %v456
    %522 = vmatprep.subr.bf16.mxu0 %v459
    %523 = vmatpush1.bf16.msra.mxu0 %v458
    %524 = vmatprep.subr.bf16.mxu0 %v461
    %525 = vmatpush1.bf16.msra.mxu0 %v460
    %526 = vmatprep.subr.bf16.mxu0 %v463
    %527 = vmatpush1.bf16.msra.mxu0 %v462
    %528 = vmatprep.subr.bf16.mxu0 %v465
    %529 = vmatpush1.bf16.msra.mxu0 %v464
    %530 = vmatprep.subr.bf16.mxu0 %v467
    %531 = vmatpush1.bf16.msra.mxu0 %v466
    %532 = vmatprep.subr.bf16.mxu0 %v469
    %533 = vmatpush1.bf16.msra.mxu0 %v468
    %534 = vmatprep.mubr.bf16.mxu0 %v297
    %535 = vmatmul.mubr.bf16.gmra.mrb[0].mxu0 %v296
    %v536 = vpop.f32.mrb[0].mxu0
    %v537 = vadd.f32 %v335, %v536
    %v538 = vpop.f32.mrb[0].mxu0
    %v539 = vadd.f32 %v339, %v538
    %v540 = vpop.f32.mrb[0].mxu0
    %v541 = vpop.f32.mrb[0].mxu0
    %542 = vdwg.mxu0
    %v543 = vsub.f32 0.0, %v537
    %v544 = vsub.f32 0.0, %v539
    %v545 = vmul.f32 %v543, 1.442695
    %v546 = vpow.pop %v545
    %v547 = vmul.f32 %v544, 1.442695
    %v548 = vpow.pop %v547
    %v549 = vadd.f32 %v546, 1.0
    %v550 = vadd.f32 %v548, 1.0
    %v551 = vrcp.pop %v549
    %v552 = vmul.f32 1.0, %v551
    %v553 = vrcp.pop %v550
    %v554 = vmul.f32 1.0, %v553
    %v555 = vmul.f32 %v537, %v552
    %v556 = vmul.f32 %v539, %v554
    %v557 = vpack.c.bf16 %v555, %v555
    %v558 = vpack.c.bf16 %v556, %v556
    %v559 = vld [vmem:[#allocation7] sm:$0xff]
    %v560 = vld [vmem:[#allocation7 + $0x8] sm:$0xff]
    %v561 = vld [vmem:[#allocation7 + $0x10] sm:$0xff]
    %v562 = vld [vmem:[#allocation7 + $0x18] sm:$0xff]
    %v563 = vld [vmem:[#allocation7 + $0x20] sm:$0xff]
    %v564 = vld [vmem:[#allocation7 + $0x28] sm:$0xff]
    %v565 = vld [vmem:[#allocation7 + $0x30] sm:$0xff]
    %v566 = vld [vmem:[#allocation7 + $0x38] sm:$0xff]
    %v567 = vld [vmem:[#allocation7 + $0x40] sm:$0xff]
    %v568 = vld [vmem:[#allocation7 + $0x48] sm:$0xff]
    %v569 = vld [vmem:[#allocation7 + $0x50] sm:$0xff]
    %v570 = vld [vmem:[#allocation7 + $0x58] sm:$0xff]
    %v571 = vld [vmem:[#allocation7 + $0x60] sm:$0xff]
    %v572 = vld [vmem:[#allocation7 + $0x68] sm:$0xff]
    %v573 = vld [vmem:[#allocation7 + $0x70] sm:$0xff]
    %v574 = vld [vmem:[#allocation7 + $0x78] sm:$0xff]
    %v575 = vld [vmem:[#allocation7 + $0x80] sm:$0xff]
    %v576 = vld [vmem:[#allocation7 + $0x88] sm:$0xff]
    %v577 = vld [vmem:[#allocation7 + $0x90] sm:$0xff]
    %v578 = vld [vmem:[#allocation7 + $0x98] sm:$0xff]
    %v579 = vld [vmem:[#allocation7 + $0xa0] sm:$0xff]
    %v580 = vld [vmem:[#allocation7 + $0xa8] sm:$0xff]
    %v581 = vld [vmem:[#allocation7 + $0xb0] sm:$0xff]
    %v582 = vld [vmem:[#allocation7 + $0xb8] sm:$0xff]
    %v583 = vld [vmem:[#allocation7 + $0xc0] sm:$0xff]
    %v584 = vld [vmem:[#allocation7 + $0xc8] sm:$0xff]
    %v585 = vld [vmem:[#allocation7 + $0xd0] sm:$0xff]
    %v586 = vld [vmem:[#allocation7 + $0xd8] sm:$0xff]
    %v587 = vld [vmem:[#allocation7 + $0xe0] sm:$0xff]
    %v588 = vld [vmem:[#allocation7 + $0xe8] sm:$0xff]
    %v589 = vld [vmem:[#allocation7 + $0xf0] sm:$0xff]
    %v590 = vld [vmem:[#allocation7 + $0xf8] sm:$0xff]
    %v591 = vld [vmem:[#allocation7 + $0x100] sm:$0xff]
    %v592 = vld [vmem:[#allocation7 + $0x108] sm:$0xff]
    %v593 = vld [vmem:[#allocation7 + $0x110] sm:$0xff]
    %v594 = vld [vmem:[#allocation7 + $0x118] sm:$0xff]
    %v595 = vld [vmem:[#allocation7 + $0x120] sm:$0xff]
    %v596 = vld [vmem:[#allocation7 + $0x128] sm:$0xff]
    %v597 = vld [vmem:[#allocation7 + $0x130] sm:$0xff]
    %v598 = vld [vmem:[#allocation7 + $0x138] sm:$0xff]
    %v599 = vld [vmem:[#allocation7 + $0x140] sm:$0xff]
    %v600 = vld [vmem:[#allocation7 + $0x148] sm:$0xff]
    %v601 = vld [vmem:[#allocation7 + $0x150] sm:$0xff]
    %v602 = vld [vmem:[#allocation7 + $0x158] sm:$0xff]
    %v603 = vld [vmem:[#allocation7 + $0x160] sm:$0xff]
    %v604 = vld [vmem:[#allocation7 + $0x168] sm:$0xff]
    %v605 = vld [vmem:[#allocation7 + $0x170] sm:$0xff]
    %v606 = vld [vmem:[#allocation7 + $0x178] sm:$0xff]
    %v607 = vld [vmem:[#allocation7 + $0x180] sm:$0xff]
    %v608 = vld [vmem:[#allocation7 + $0x188] sm:$0xff]
    %v609 = vld [vmem:[#allocation7 + $0x190] sm:$0xff]
    %v610 = vld [vmem:[#allocation7 + $0x198] sm:$0xff]
    %v611 = vld [vmem:[#allocation7 + $0x1a0] sm:$0xff]
    %v612 = vld [vmem:[#allocation7 + $0x1a8] sm:$0xff]
    %v613 = vld [vmem:[#allocation7 + $0x1b0] sm:$0xff]
    %v614 = vld [vmem:[#allocation7 + $0x1b8] sm:$0xff]
    %v615 = vld [vmem:[#allocation7 + $0x1c0] sm:$0xff]
    %v616 = vld [vmem:[#allocation7 + $0x1c8] sm:$0xff]
    %v617 = vld [vmem:[#allocation7 + $0x1d0] sm:$0xff]
    %v618 = vld [vmem:[#allocation7 + $0x1d8] sm:$0xff]
    %v619 = vld [vmem:[#allocation7 + $0x1e0] sm:$0xff]
    %v620 = vld [vmem:[#allocation7 + $0x1e8] sm:$0xff]
    %v621 = vld [vmem:[#allocation7 + $0x1f0] sm:$0xff]
    %v622 = vld [vmem:[#allocation7 + $0x1f8] sm:$0xff]
    %v623 = vld [vmem:[#allocation7 + $0x200] sm:$0xff]
    %v624 = vld [vmem:[#allocation7 + $0x208] sm:$0xff]
    %v625 = vld [vmem:[#allocation7 + $0x210] sm:$0xff]
    %v626 = vld [vmem:[#allocation7 + $0x218] sm:$0xff]
    %v627 = vld [vmem:[#allocation7 + $0x220] sm:$0xff]
    %v628 = vld [vmem:[#allocation7 + $0x228] sm:$0xff]
    %v629 = vld [vmem:[#allocation7 + $0x230] sm:$0xff]
    %v630 = vld [vmem:[#allocation7 + $0x238] sm:$0xff]
    %v631 = vld [vmem:[#allocation7 + $0x240] sm:$0xff]
    %v632 = vld [vmem:[#allocation7 + $0x248] sm:$0xff]
    %v633 = vld [vmem:[#allocation7 + $0x250] sm:$0xff]
    %v634 = vld [vmem:[#allocation7 + $0x258] sm:$0xff]
    %v635 = vld [vmem:[#allocation7 + $0x260] sm:$0xff]
    %v636 = vld [vmem:[#allocation7 + $0x268] sm:$0xff]
    %v637 = vld [vmem:[#allocation7 + $0x270] sm:$0xff]
    %v638 = vld [vmem:[#allocation7 + $0x278] sm:$0xff]
    %v639 = vld [vmem:[#allocation7 + $0x280] sm:$0xff]
    %v640 = vld [vmem:[#allocation7 + $0x288] sm:$0xff]
    %v641 = vld [vmem:[#allocation7 + $0x290] sm:$0xff]
    %v642 = vld [vmem:[#allocation7 + $0x298] sm:$0xff]
    %v643 = vld [vmem:[#allocation7 + $0x2a0] sm:$0xff]
    %v644 = vld [vmem:[#allocation7 + $0x2a8] sm:$0xff]
    %v645 = vld [vmem:[#allocation7 + $0x2b0] sm:$0xff]
    %v646 = vld [vmem:[#allocation7 + $0x2b8] sm:$0xff]
    %v647 = vld [vmem:[#allocation7 + $0x2c0] sm:$0xff]
    %v648 = vld [vmem:[#allocation7 + $0x2c8] sm:$0xff]
    %v649 = vld [vmem:[#allocation7 + $0x2d0] sm:$0xff]
    %v650 = vld [vmem:[#allocation7 + $0x2d8] sm:$0xff]
    %v651 = vld [vmem:[#allocation7 + $0x2e0] sm:$0xff]
    %v652 = vld [vmem:[#allocation7 + $0x2e8] sm:$0xff]
    %v653 = vld [vmem:[#allocation7 + $0x2f0] sm:$0xff]
    %v654 = vld [vmem:[#allocation7 + $0x2f8] sm:$0xff]
    %v655 = vld [vmem:[%s5] sm:$0x3f]
    %v657 = vlaneseq
    %v658 = vshrl.u32 %v657, 7
    %v659 = vsub.s32 0, %v658
    %v660 = vrot.slane %v655, %v659
    %v661 = vlaneseq
    %v662 = vshrl.u32 %v661, 7
    %v663 = vsub.s32 1, %v662
    %v664 = vrot.slane %v655, %v663
    %v665 = vlaneseq
    %v666 = vshrl.u32 %v665, 7
    %v667 = vsub.s32 2, %v666
    %v668 = vrot.slane %v655, %v667
    %v669 = vlaneseq
    %v670 = vshrl.u32 %v669, 7
    %v671 = vsub.s32 3, %v670
    %v672 = vrot.slane %v655, %v671
    %v673 = vlaneseq
    %v674 = vshrl.u32 %v673, 7
    %v675 = vsub.s32 4, %v674
    %v676 = vrot.slane %v655, %v675
    %v677 = vlaneseq
    %v678 = vshrl.u32 %v677, 7
    %v679 = vsub.s32 5, %v678
    %v680 = vrot.slane %v655, %v679
    %v783 = vunpack.c.l.b16 %v559
    %v784 = vunpack.c.h.b16 %v559
    %v785 = vunpack.c.l.b16 %v560
    %v786 = vunpack.c.h.b16 %v560
    %v787 = vunpack.c.l.b16 %v561
    %v788 = vunpack.c.h.b16 %v561
    %v789 = vunpack.c.l.b16 %v562
    %v790 = vunpack.c.h.b16 %v562
    %v791 = vunpack.c.l.b16 %v563
    %v792 = vunpack.c.h.b16 %v563
    %v793 = vunpack.c.l.b16 %v564
    %v794 = vunpack.c.h.b16 %v564
    %v795 = vunpack.c.l.b16 %v565
    %v796 = vunpack.c.h.b16 %v565
    %v797 = vunpack.c.l.b16 %v566
    %v798 = vunpack.c.h.b16 %v566
    %v799 = vunpack.c.l.b16 %v567
    %v800 = vunpack.c.h.b16 %v567
    %v801 = vunpack.c.l.b16 %v568
    %v802 = vunpack.c.h.b16 %v568
    %v803 = vunpack.c.l.b16 %v569
    %v804 = vunpack.c.h.b16 %v569
    %v805 = vunpack.c.l.b16 %v570
    %v806 = vunpack.c.h.b16 %v570
    %v807 = vunpack.c.l.b16 %v571
    %v808 = vunpack.c.h.b16 %v571
    %v809 = vunpack.c.l.b16 %v572
    %v810 = vunpack.c.h.b16 %v572
    %v811 = vunpack.c.l.b16 %v573
    %v812 = vunpack.c.h.b16 %v573
    %v813 = vunpack.c.l.b16 %v574
    %v814 = vunpack.c.h.b16 %v574
    %v815 = vunpack.c.l.b16 %v575
    %v816 = vunpack.c.h.b16 %v575
    %v817 = vunpack.c.l.b16 %v576
    %v818 = vunpack.c.h.b16 %v576
    %v819 = vunpack.c.l.b16 %v577
    %v820 = vunpack.c.h.b16 %v577
    %v821 = vunpack.c.l.b16 %v578
    %v822 = vunpack.c.h.b16 %v578
    %v823 = vunpack.c.l.b16 %v579
    %v824 = vunpack.c.h.b16 %v579
    %v825 = vunpack.c.l.b16 %v580
    %v826 = vunpack.c.h.b16 %v580
    %v827 = vunpack.c.l.b16 %v581
    %v828 = vunpack.c.h.b16 %v581
    %v829 = vunpack.c.l.b16 %v582
    %v830 = vunpack.c.h.b16 %v582
    %v831 = vunpack.c.l.b16 %v583
    %v832 = vunpack.c.h.b16 %v583
    %v833 = vunpack.c.l.b16 %v584
    %v834 = vunpack.c.h.b16 %v584
    %v835 = vunpack.c.l.b16 %v585
    %v836 = vunpack.c.h.b16 %v585
    %v837 = vunpack.c.l.b16 %v586
    %v838 = vunpack.c.h.b16 %v586
    %v839 = vunpack.c.l.b16 %v587
    %v840 = vunpack.c.h.b16 %v587
    %v841 = vunpack.c.l.b16 %v588
    %v842 = vunpack.c.h.b16 %v588
    %v843 = vunpack.c.l.b16 %v589
    %v844 = vunpack.c.h.b16 %v589
    %v845 = vunpack.c.l.b16 %v590
    %v846 = vunpack.c.h.b16 %v590
    %v847 = vunpack.c.l.b16 %v591
    %v848 = vunpack.c.h.b16 %v591
    %v849 = vunpack.c.l.b16 %v592
    %v850 = vunpack.c.h.b16 %v592
    %v851 = vunpack.c.l.b16 %v593
    %v852 = vunpack.c.h.b16 %v593
    %v853 = vunpack.c.l.b16 %v594
    %v854 = vunpack.c.h.b16 %v594
    %v855 = vunpack.c.l.b16 %v595
    %v856 = vunpack.c.h.b16 %v595
    %v857 = vunpack.c.l.b16 %v596
    %v858 = vunpack.c.h.b16 %v596
    %v859 = vunpack.c.l.b16 %v597
    %v860 = vunpack.c.h.b16 %v597
    %v861 = vunpack.c.l.b16 %v598
    %v862 = vunpack.c.h.b16 %v598
    %v863 = vunpack.c.l.b16 %v599
    %v864 = vunpack.c.h.b16 %v599
    %v865 = vunpack.c.l.b16 %v600
    %v866 = vunpack.c.h.b16 %v600
    %v867 = vunpack.c.l.b16 %v601
    %v868 = vunpack.c.h.b16 %v601
    %v869 = vunpack.c.l.b16 %v602
    %v870 = vunpack.c.h.b16 %v602
    %v871 = vunpack.c.l.b16 %v603
    %v872 = vunpack.c.h.b16 %v603
    %v873 = vunpack.c.l.b16 %v604
    %v874 = vunpack.c.h.b16 %v604
    %v875 = vunpack.c.l.b16 %v605
    %v876 = vunpack.c.h.b16 %v605
    %v877 = vunpack.c.l.b16 %v606
    %v878 = vunpack.c.h.b16 %v606
    %v879 = vunpack.c.l.b16 %v607
    %v880 = vunpack.c.h.b16 %v607
    %v881 = vunpack.c.l.b16 %v608
    %v882 = vunpack.c.h.b16 %v608
    %v883 = vunpack.c.l.b16 %v609
    %v884 = vunpack.c.h.b16 %v609
    %v885 = vunpack.c.l.b16 %v610
    %v886 = vunpack.c.h.b16 %v610
    %v887 = vunpack.c.l.b16 %v611
    %v888 = vunpack.c.h.b16 %v611
    %v889 = vunpack.c.l.b16 %v612
    %v890 = vunpack.c.h.b16 %v612
    %v891 = vunpack.c.l.b16 %v613
    %v892 = vunpack.c.h.b16 %v613
    %v893 = vunpack.c.l.b16 %v614
    %v894 = vunpack.c.h.b16 %v614
    %v895 = vunpack.c.l.b16 %v615
    %v896 = vunpack.c.h.b16 %v615
    %v897 = vunpack.c.l.b16 %v616
    %v898 = vunpack.c.h.b16 %v616
    %v899 = vunpack.c.l.b16 %v617
    %v900 = vunpack.c.h.b16 %v617
    %v901 = vunpack.c.l.b16 %v618
    %v902 = vunpack.c.h.b16 %v618
    %v903 = vunpack.c.l.b16 %v619
    %v904 = vunpack.c.h.b16 %v619
    %v905 = vunpack.c.l.b16 %v620
    %v906 = vunpack.c.h.b16 %v620
    %v907 = vunpack.c.l.b16 %v621
    %v908 = vunpack.c.h.b16 %v621
    %v909 = vunpack.c.l.b16 %v622
    %v910 = vunpack.c.h.b16 %v622
    %v911 = vunpack.c.l.b16 %v623
    %v912 = vunpack.c.h.b16 %v623
    %v913 = vunpack.c.l.b16 %v624
    %v914 = vunpack.c.h.b16 %v624
    %v915 = vunpack.c.l.b16 %v625
    %v916 = vunpack.c.h.b16 %v625
    %v917 = vunpack.c.l.b16 %v626
    %v918 = vunpack.c.h.b16 %v626
    %v919 = vunpack.c.l.b16 %v627
    %v920 = vunpack.c.h.b16 %v627
    %v921 = vunpack.c.l.b16 %v628
    %v922 = vunpack.c.h.b16 %v628
    %v923 = vunpack.c.l.b16 %v629
    %v924 = vunpack.c.h.b16 %v629
    %v925 = vunpack.c.l.b16 %v630
    %v926 = vunpack.c.h.b16 %v630
    %v927 = vunpack.c.l.b16 %v631
    %v928 = vunpack.c.h.b16 %v631
    %v929 = vunpack.c.l.b16 %v632
    %v930 = vunpack.c.h.b16 %v632
    %v931 = vunpack.c.l.b16 %v633
    %v932 = vunpack.c.h.b16 %v633
    %v933 = vunpack.c.l.b16 %v634
    %v934 = vunpack.c.h.b16 %v634
    %v935 = vunpack.c.l.b16 %v635
    %v936 = vunpack.c.h.b16 %v635
    %v937 = vunpack.c.l.b16 %v636
    %v938 = vunpack.c.h.b16 %v636
    %v939 = vunpack.c.l.b16 %v637
    %v940 = vunpack.c.h.b16 %v637
    %v941 = vunpack.c.l.b16 %v638
    %v942 = vunpack.c.h.b16 %v638
    %v943 = vunpack.c.l.b16 %v639
    %v944 = vunpack.c.h.b16 %v639
    %v945 = vunpack.c.l.b16 %v640
    %v946 = vunpack.c.h.b16 %v640
    %v947 = vunpack.c.l.b16 %v641
    %v948 = vunpack.c.h.b16 %v641
    %v949 = vunpack.c.l.b16 %v642
    %v950 = vunpack.c.h.b16 %v642
    %v951 = vunpack.c.l.b16 %v643
    %v952 = vunpack.c.h.b16 %v643
    %v953 = vunpack.c.l.b16 %v644
    %v954 = vunpack.c.h.b16 %v644
    %v955 = vunpack.c.l.b16 %v645
    %v956 = vunpack.c.h.b16 %v645
    %v957 = vunpack.c.l.b16 %v646
    %v958 = vunpack.c.h.b16 %v646
    %v959 = vunpack.c.l.b16 %v647
    %v960 = vunpack.c.h.b16 %v647
    %v961 = vunpack.c.l.b16 %v648
    %v962 = vunpack.c.h.b16 %v648
    %v963 = vunpack.c.l.b16 %v649
    %v964 = vunpack.c.h.b16 %v649
    %v965 = vunpack.c.l.b16 %v650
    %v966 = vunpack.c.h.b16 %v650
    %v967 = vunpack.c.l.b16 %v651
    %v968 = vunpack.c.h.b16 %v651
    %v969 = vunpack.c.l.b16 %v652
    %v970 = vunpack.c.h.b16 %v652
    %v971 = vunpack.c.l.b16 %v653
    %v972 = vunpack.c.h.b16 %v653
    %v973 = vunpack.c.l.b16 %v654
    %v974 = vunpack.c.h.b16 %v654
    %v975 = vpack.c.b16 %v789, %v783
    %v976 = vpack.c.b16 %v790, %v784
    %v977 = vpack.c.b16 %v791, %v785
    %v978 = vpack.c.b16 %v792, %v786
    %v979 = vpack.c.b16 %v793, %v787
    %v980 = vpack.c.b16 %v794, %v788
    %v981 = vpack.c.b16 %v801, %v795
    %v982 = vpack.c.b16 %v802, %v796
    %v983 = vpack.c.b16 %v803, %v797
    %v984 = vpack.c.b16 %v804, %v798
    %v985 = vpack.c.b16 %v805, %v799
    %v986 = vpack.c.b16 %v806, %v800
    %v987 = vpack.c.b16 %v813, %v807
    %v988 = vpack.c.b16 %v814, %v808
    %v989 = vpack.c.b16 %v815, %v809
    %v990 = vpack.c.b16 %v816, %v810
    %v991 = vpack.c.b16 %v817, %v811
    %v992 = vpack.c.b16 %v818, %v812
    %v993 = vpack.c.b16 %v825, %v819
    %v994 = vpack.c.b16 %v826, %v820
    %v995 = vpack.c.b16 %v827, %v821
    %v996 = vpack.c.b16 %v828, %v822
    %v997 = vpack.c.b16 %v829, %v823
    %v998 = vpack.c.b16 %v830, %v824
    %v999 = vpack.c.b16 %v837, %v831
    %v1000 = vpack.c.b16 %v838, %v832
    %v1001 = vpack.c.b16 %v839, %v833
    %v1002 = vpack.c.b16 %v840, %v834
    %v1003 = vpack.c.b16 %v841, %v835
    %v1004 = vpack.c.b16 %v842, %v836
    %v1005 = vpack.c.b16 %v849, %v843
    %v1006 = vpack.c.b16 %v850, %v844
    %v1007 = vpack.c.b16 %v851, %v845
    %v1008 = vpack.c.b16 %v852, %v846
    %v1009 = vpack.c.b16 %v853, %v847
    %v1010 = vpack.c.b16 %v854, %v848
    %v1011 = vpack.c.b16 %v861, %v855
    %v1012 = vpack.c.b16 %v862, %v856
    %v1013 = vpack.c.b16 %v863, %v857
    %v1014 = vpack.c.b16 %v864, %v858
    %v1015 = vpack.c.b16 %v865, %v859
    %v1016 = vpack.c.b16 %v866, %v860
    %v1017 = vpack.c.b16 %v873, %v867
    %v1018 = vpack.c.b16 %v874, %v868
    %v1019 = vpack.c.b16 %v875, %v869
    %v1020 = vpack.c.b16 %v876, %v870
    %v1021 = vpack.c.b16 %v877, %v871
    %v1022 = vpack.c.b16 %v878, %v872
    %v1023 = vpack.c.b16 %v885, %v879
    %v1024 = vpack.c.b16 %v886, %v880
    %v1025 = vpack.c.b16 %v887, %v881
    %v1026 = vpack.c.b16 %v888, %v882
    %v1027 = vpack.c.b16 %v889, %v883
    %v1028 = vpack.c.b16 %v890, %v884
    %v1029 = vpack.c.b16 %v897, %v891
    %v1030 = vpack.c.b16 %v898, %v892
    %v1031 = vpack.c.b16 %v899, %v893
    %v1032 = vpack.c.b16 %v900, %v894
    %v1033 = vpack.c.b16 %v901, %v895
    %v1034 = vpack.c.b16 %v902, %v896
    %v1035 = vpack.c.b16 %v909, %v903
    %v1036 = vpack.c.b16 %v910, %v904
    %v1037 = vpack.c.b16 %v911, %v905
    %v1038 = vpack.c.b16 %v912, %v906
    %v1039 = vpack.c.b16 %v913, %v907
    %v1040 = vpack.c.b16 %v914, %v908
    %v1041 = vpack.c.b16 %v921, %v915
    %v1042 = vpack.c.b16 %v922, %v916
    %v1043 = vpack.c.b16 %v923, %v917
    %v1044 = vpack.c.b16 %v924, %v918
    %v1045 = vpack.c.b16 %v925, %v919
    %v1046 = vpack.c.b16 %v926, %v920
    %v1047 = vpack.c.b16 %v933, %v927
    %v1048 = vpack.c.b16 %v934, %v928
    %v1049 = vpack.c.b16 %v935, %v929
    %v1050 = vpack.c.b16 %v936, %v930
    %v1051 = vpack.c.b16 %v937, %v931
    %v1052 = vpack.c.b16 %v938, %v932
    %v1053 = vpack.c.b16 %v945, %v939
    %v1054 = vpack.c.b16 %v946, %v940
    %v1055 = vpack.c.b16 %v947, %v941
    %v1056 = vpack.c.b16 %v948, %v942
    %v1057 = vpack.c.b16 %v949, %v943
    %v1058 = vpack.c.b16 %v950, %v944
    %v1059 = vpack.c.b16 %v957, %v951
    %v1060 = vpack.c.b16 %v958, %v952
    %v1061 = vpack.c.b16 %v959, %v953
    %v1062 = vpack.c.b16 %v960, %v954
    %v1063 = vpack.c.b16 %v961, %v955
    %v1064 = vpack.c.b16 %v962, %v956
    %v1065 = vpack.c.b16 %v969, %v963
    %v1066 = vpack.c.b16 %v970, %v964
    %v1067 = vpack.c.b16 %v971, %v965
    %v1068 = vpack.c.b16 %v972, %v966
    %v1069 = vpack.c.b16 %v973, %v967
    %v1070 = vpack.c.b16 %v974, %v968
    %1167 = vmatprep.subr.bf16.mxu0 %v976
    %1168 = vmatpush1.bf16.msra.mxu0 %v975
    %1169 = vmatprep.subr.bf16.mxu0 %v982
    %1170 = vmatpush1.bf16.msra.mxu0 %v981
    %1171 = vmatprep.subr.bf16.mxu0 %v988
    %1172 = vmatpush1.bf16.msra.mxu0 %v987
    %1173 = vmatprep.subr.bf16.mxu0 %v994
    %1174 = vmatpush1.bf16.msra.mxu0 %v993
    %1175 = vmatprep.subr.bf16.mxu0 %v1000
    %1176 = vmatpush1.bf16.msra.mxu0 %v999
    %1177 = vmatprep.subr.bf16.mxu0 %v1006
    %1178 = vmatpush1.bf16.msra.mxu0 %v1005
    %1179 = vmatprep.subr.bf16.mxu0 %v1012
    %1180 = vmatpush1.bf16.msra.mxu0 %v1011
    %1181 = vmatprep.subr.bf16.mxu0 %v1018
    %1182 = vmatpush1.bf16.msra.mxu0 %v1017
    %1183 = vmatprep.subr.bf16.mxu0 %v1024
    %1184 = vmatpush1.bf16.msra.mxu0 %v1023
    %1185 = vmatprep.subr.bf16.mxu0 %v1030
    %1186 = vmatpush1.bf16.msra.mxu0 %v1029
    %1187 = vmatprep.subr.bf16.mxu0 %v1036
    %1188 = vmatpush1.bf16.msra.mxu0 %v1035
    %1189 = vmatprep.subr.bf16.mxu0 %v1042
    %1190 = vmatpush1.bf16.msra.mxu0 %v1041
    %1191 = vmatprep.subr.bf16.mxu0 %v1048
    %1192 = vmatpush1.bf16.msra.mxu0 %v1047
    %1193 = vmatprep.subr.bf16.mxu0 %v1054
    %1194 = vmatpush1.bf16.msra.mxu0 %v1053
    %1195 = vmatprep.subr.bf16.mxu0 %v1060
    %1196 = vmatpush1.bf16.msra.mxu0 %v1059
    %1197 = vmatprep.subr.bf16.mxu0 %v1066
    %1198 = vmatpush1.bf16.msra.mxu0 %v1065
    %1199 = vmatprep.mubr.bf16.mxu0 %v558
    %1200 = vmatmul.mubr.bf16.gmra.mrb[0].mxu0 %v557
    %v1201 = vpop.f32.mrb[0].mxu0
    %v1202 = vadd.f32 %v660, %v1201
    %v1203 = vpop.f32.mrb[0].mxu0
    %v1204 = vadd.f32 %v664, %v1203
    %v1205 = vpop.f32.mrb[0].mxu0
    %v1206 = vpop.f32.mrb[0].mxu0
    %1207 = vdwg.mxu0
    %1208 = vmatprep.subr.bf16.mxu0 %v978
    %1209 = vmatpush1.bf16.msra.mxu0 %v977
    %1210 = vmatprep.subr.bf16.mxu0 %v984
    %1211 = vmatpush1.bf16.msra.mxu0 %v983
    %1212 = vmatprep.subr.bf16.mxu0 %v990
    %1213 = vmatpush1.bf16.msra.mxu0 %v989
    %1214 = vmatprep.subr.bf16.mxu0 %v996
    %1215 = vmatpush1.bf16.msra.mxu0 %v995
    %1216 = vmatprep.subr.bf16.mxu0 %v1002
    %1217 = vmatpush1.bf16.msra.mxu0 %v1001
    %1218 = vmatprep.subr.bf16.mxu0 %v1008
    %1219 = vmatpush1.bf16.msra.mxu0 %v1007
    %1220 = vmatprep.subr.bf16.mxu0 %v1014
    %1221 = vmatpush1.bf16.msra.mxu0 %v1013
    %1222 = vmatprep.subr.bf16.mxu0 %v1020
    %1223 = vmatpush1.bf16.msra.mxu0 %v1019
    %1224 = vmatprep.subr.bf16.mxu0 %v1026
    %1225 = vmatpush1.bf16.msra.mxu0 %v1025
    %1226 = vmatprep.subr.bf16.mxu0 %v1032
    %1227 = vmatpush1.bf16.msra.mxu0 %v1031
    %1228 = vmatprep.subr.bf16.mxu0 %v1038
    %1229 = vmatpush1.bf16.msra.mxu0 %v1037
    %1230 = vmatprep.subr.bf16.mxu0 %v1044
    %1231 = vmatpush1.bf16.msra.mxu0 %v1043
    %1232 = vmatprep.subr.bf16.mxu0 %v1050
    %1233 = vmatpush1.bf16.msra.mxu0 %v1049
    %1234 = vmatprep.subr.bf16.mxu0 %v1056
    %1235 = vmatpush1.bf16.msra.mxu0 %v1055
    %1236 = vmatprep.subr.bf16.mxu0 %v1062
    %1237 = vmatpush1.bf16.msra.mxu0 %v1061
    %1238 = vmatprep.subr.bf16.mxu0 %v1068
    %1239 = vmatpush1.bf16.msra.mxu0 %v1067
    %1240 = vmatprep.mubr.bf16.mxu0 %v558
    %1241 = vmatmul.mubr.bf16.gmra.mrb[0].mxu0 %v557
    %v1242 = vpop.f32.mrb[0].mxu0
    %v1243 = vadd.f32 %v668, %v1242
    %v1244 = vpop.f32.mrb[0].mxu0
    %v1245 = vadd.f32 %v672, %v1244
    %v1246 = vpop.f32.mrb[0].mxu0
    %v1247 = vpop.f32.mrb[0].mxu0
    %1248 = vdwg.mxu0
    %1249 = vmatprep.subr.bf16.mxu0 %v980
    %1250 = vmatpush1.bf16.msra.mxu0 %v979
    %1251 = vmatprep.subr.bf16.mxu0 %v986
    %1252 = vmatpush1.bf16.msra.mxu0 %v985
    %1253 = vmatprep.subr.bf16.mxu0 %v992
    %1254 = vmatpush1.bf16.msra.mxu0 %v991
    %1255 = vmatprep.subr.bf16.mxu0 %v998
    %1256 = vmatpush1.bf16.msra.mxu0 %v997
    %1257 = vmatprep.subr.bf16.mxu0 %v1004
    %1258 = vmatpush1.bf16.msra.mxu0 %v1003
    %1259 = vmatprep.subr.bf16.mxu0 %v1010
    %1260 = vmatpush1.bf16.msra.mxu0 %v1009
    %1261 = vmatprep.subr.bf16.mxu0 %v1016
    %1262 = vmatpush1.bf16.msra.mxu0 %v1015
    %1263 = vmatprep.subr.bf16.mxu0 %v1022
    %1264 = vmatpush1.bf16.msra.mxu0 %v1021
    %1265 = vmatprep.subr.bf16.mxu0 %v1028
    %1266 = vmatpush1.bf16.msra.mxu0 %v1027
    %1267 = vmatprep.subr.bf16.mxu0 %v1034
    %1268 = vmatpush1.bf16.msra.mxu0 %v1033
    %1269 = vmatprep.subr.bf16.mxu0 %v1040
    %1270 = vmatpush1.bf16.msra.mxu0 %v1039
    %1271 = vmatprep.subr.bf16.mxu0 %v1046
    %1272 = vmatpush1.bf16.msra.mxu0 %v1045
    %1273 = vmatprep.subr.bf16.mxu0 %v1052
    %1274 = vmatpush1.bf16.msra.mxu0 %v1051
    %1275 = vmatprep.subr.bf16.mxu0 %v1058
    %1276 = vmatpush1.bf16.msra.mxu0 %v1057
    %1277 = vmatprep.subr.bf16.mxu0 %v1064
    %1278 = vmatpush1.bf16.msra.mxu0 %v1063
    %1279 = vmatprep.subr.bf16.mxu0 %v1070
    %1280 = vmatpush1.bf16.msra.mxu0 %v1069
    %1281 = vmatprep.mubr.bf16.mxu0 %v558
    %1282 = vmatmul.mubr.bf16.gmra.mrb[0].mxu0 %v557
    %v1283 = vpop.f32.mrb[0].mxu0
    %v1284 = vadd.f32 %v676, %v1283
    %v1285 = vpop.f32.mrb[0].mxu0
    %v1286 = vadd.f32 %v680, %v1285
    %v1287 = vpop.f32.mrb[0].mxu0
    %v1288 = vpop.f32.mrb[0].mxu0
    %1289 = vdwg.mxu0
    %v1296 = vcombine.low %v1202, %v1204
    %v1297 = vcombine.low %v1243, %v1245
    %v1299 = vunpack.c.l.s4 1983009808
    %v1300 = vunpack.c.0.s8 %v1299
    %v1301 = vlaneseq
    %v1302 = vshrl.u32 %v1301, 7
    %v1303 = vsub.s32 %v1300, %v1302
    %v1304 = vrot.slane %v1296, %v1303
    %v1306 = vunpack.c.l.s4 1983009808
    %v1307 = vunpack.c.0.s8 %v1306
    %v1308 = vlaneseq
    %v1309 = vshrl.u32 %v1308, 7
    %v1310 = vsub.s32 %v1307, %v1309
    %v1311 = vrot.slane %v1297, %v1310
    %v1312 = vcombine.low %v1304, %v1311
    %v1313 = vcombine.low %v1284, %v1286
    %v1315 = vunpack.c.l.s4 1983009808
    %v1316 = vunpack.c.0.s8 %v1315
    %v1317 = vlaneseq
    %v1318 = vshrl.u32 %v1317, 7
    %v1319 = vsub.s32 %v1316, %v1318
    %v1320 = vrot.slane %v1313, %v1319
    %1323 = vst [vmem:[%s6] sm:$0xff] %v1312
    %1324 = vst [vmem:[%s6 + $0x8] sm:$0xf] %v1320
    // Predicated region
    $region42: #{scorenet_forward.8} parent=1 // pred_check
      _
    $region43: #{scorenet_forward.8} parent=1 // pred_check_branch
      %1326 = sbr.rel (0) target = $region45
    $region44: #{scorenet_forward.8} parent=1 // pred_region
      _
    $region45: #{scorenet_forward.8} parent=1 // pred_fallthru
      _
    // Predicated region
    $region46: #{scorenet_forward.8} parent=1 // pred_check
      _
    $region47: #{scorenet_forward.8} parent=1 // pred_check_branch
      %1328 = sbr.rel (0) target = $region49
    $region48: #{scorenet_forward.8} parent=1 // pred_region
      _
    $region49: #{scorenet_forward.8} parent=1 // pred_fallthru
      _
    %1329 = vsyncpa [#allocation3], 1
    %1330 = vsyncpa [#allocation5], 1
    %1331 = vsyncpa [#allocation8], 1

// kernel: scorenet_forward.9
$region0: #{scorenet_forward.9}
  #allocation0 [shape = 'u32[]', space=smem, size = 0x4, offset = 0x4, fixed_abs, tag = 'smem constant byte address 0x4 - core index']
  #allocation1 [shape = 'u32[144,128]{1,0:T(1,128)}', space=vmem, size = 0x12000, scoped, tag = 'internal scratch']
  %s0 = inlined_call_operand.vmem [shape: f32[2,4,2048], index: 0, kind: input, shape index: {}]
  %s1 = inlined_call_operand.vmem [shape: f32[2,4,2048], index: 1, kind: input, shape index: {}]
  %s2 = inlined_call_operand.vmem [shape: f32[1,4,2048], index: 2, kind: input, shape index: {}]
  %s3 = inlined_call_operand.vmem [shape: f32[1,4,2048], index: 3, kind: input, shape index: {}]
  %s4 = inlined_call_operand.vmem [shape: f32[2,4,2048], index: 4, kind: output, shape index: {}]
  %s5 = sld [smem:[#allocation0]]
  $region49: #{scorenet_forward.9} parent=0
    _
  %s7 = ssub.s32 1, %s5
  %s8 = scalar_select 0, %s7, %s5
  loop: start=0, step=1, limit=4
  $region2: #{scorenet_forward.9} parent=0 // loop_pre_header
    _
  $region3: #{scorenet_forward.9} parent=0 // loop_header
    %s10 = sphi 0, %s14
    %p11 = scmp.ge.s32.totalorder %s10, 4
    %s20 = sphi 0, %s22
    %s23 = sphi 0, %s20
    %s24 = sphi 0, %s23
    %s40 = sphi 0, %s24
    %s46 = sphi 0, %s48
    %s49 = sphi 0, %s46
    %s50 = sphi 0, %s49
    %s66 = sphi 0, %s50
    %s70 = sphi 0, %s70
    %s72 = sphi 0, %s70
    %s73 = sphi 0, %s72
    %s87 = sphi 0, %s73
    %s91 = sphi 0, %s91
    %s93 = sphi 0, %s91
    %s94 = sphi 0, %s93
    %s108 = sphi 0, %s94
    %s114 = sphi 0, %s116
    %s117 = sphi 0, %s114
    %s118 = sphi 0, %s117
    %s134 = sphi 0, %s118
  $region4: #{scorenet_forward.9} parent=0 // loop_header_branch
    %13 = sbr.rel (%p11) target = $region8
  $region5: #{scorenet_forward.9} parent=0 // loop_body
    %s15 = ssub.s32 %s10, 1
    %s16 = ssub.s32 %s10, 2
    %s17 = sadd.s32 %s10, 1
    %s18 = ssub.s32 %s10, %s17
    %p19 = scmp.eq.s32.totalorder %s18, 0
    %s21 = sadd.s32 %s20, 1
    %s22 = scalar_select %p19, %s20, %s21
    %p25 = pneg %p19
    %p26 = scmp.eq.s32.totalorder %s10, 1
    %p27 = por %p25, %p26
    %p28 = scmp.ne.s32.totalorder %s20, %s23
    %p29 = scmp.eq.s32.totalorder %s10, 0
    %p30 = por %p28, %p29
    %p31 = scmp.ne.s32.totalorder %s20, %s23
    %p32 = scmp.eq.s32.totalorder %s15, 1
    %p33 = por %p31, %p32
    %p34 = scmp.ne.s32.totalorder %s23, %s24
    %p35 = scmp.eq.s32.totalorder %s15, 0
    %p36 = por %p34, %p35
    %p37 = scmp.ne.s32.totalorder %s23, %s24
    %p38 = scmp.eq.s32.totalorder %s16, 1
    %p39 = por %p37, %p38
    %p41 = scmp.ne.s32.totalorder %s24, %s40
    %p42 = scmp.eq.s32.totalorder %s16, 0
    %p43 = por %p41, %p42
    %s44 = ssub.s32 %s10, %s17
    %p45 = scmp.eq.s32.totalorder %s44, 0
    %s47 = sadd.s32 %s46, 1
    %s48 = scalar_select %p45, %s46, %s47
    %p51 = pneg %p45
    %p52 = scmp.eq.s32.totalorder %s10, 1
    %p53 = por %p51, %p52
    %p54 = scmp.ne.s32.totalorder %s46, %s49
    %p55 = scmp.eq.s32.totalorder %s10, 0
    %p56 = por %p54, %p55
    %p57 = scmp.ne.s32.totalorder %s46, %s49
    %p58 = scmp.eq.s32.totalorder %s15, 1
    %p59 = por %p57, %p58
    %p60 = scmp.ne.s32.totalorder %s49, %s50
    %p61 = scmp.eq.s32.totalorder %s15, 0
    %p62 = por %p60, %p61
    %p63 = scmp.ne.s32.totalorder %s49, %s50
    %p64 = scmp.eq.s32.totalorder %s16, 1
    %p65 = por %p63, %p64
    %p67 = scmp.ne.s32.totalorder %s50, %s66
    %p68 = scmp.eq.s32.totalorder %s16, 0
    %p69 = por %p67, %p68
    %s71 = sadd.s32 %s70, 1
    %p74 = scmp.eq.s32.totalorder %s10, 1
    %p75 = scmp.ne.s32.totalorder %s70, %s72
    %p76 = scmp.eq.s32.totalorder %s10, 0
    %p77 = por %p75, %p76
    %p78 = scmp.ne.s32.totalorder %s70, %s72
    %p79 = scmp.eq.s32.totalorder %s15, 1
    %p80 = por %p78, %p79
    %p81 = scmp.ne.s32.totalorder %s72, %s73
    %p82 = scmp.eq.s32.totalorder %s15, 0
    %p83 = por %p81, %p82
    %p84 = scmp.ne.s32.totalorder %s72, %s73
    %p85 = scmp.eq.s32.totalorder %s16, 1
    %p86 = por %p84, %p85
    %p88 = scmp.ne.s32.totalorder %s73, %s87
    %p89 = scmp.eq.s32.totalorder %s16, 0
    %p90 = por %p88, %p89
    %s92 = sadd.s32 %s91, 1
    %p95 = scmp.eq.s32.totalorder %s10, 1
    %p96 = scmp.ne.s32.totalorder %s91, %s93
    %p97 = scmp.eq.s32.totalorder %s10, 0
    %p98 = por %p96, %p97
    %p99 = scmp.ne.s32.totalorder %s91, %s93
    %p100 = scmp.eq.s32.totalorder %s15, 1
    %p101 = por %p99, %p100
    %p102 = scmp.ne.s32.totalorder %s93, %s94
    %p103 = scmp.eq.s32.totalorder %s15, 0
    %p104 = por %p102, %p103
    %p105 = scmp.ne.s32.totalorder %s93, %s94
    %p106 = scmp.eq.s32.totalorder %s16, 1
    %p107 = por %p105, %p106
    %p109 = scmp.ne.s32.totalorder %s94, %s108
    %p110 = scmp.eq.s32.totalorder %s16, 0
    %p111 = por %p109, %p110
    %s112 = ssub.s32 %s10, %s17
    %p113 = scmp.eq.s32.totalorder %s112, 0
    %s115 = sadd.s32 %s114, 1
    %s116 = scalar_select %p113, %s114, %s115
    %p119 = pneg %p113
    %p120 = scmp.eq.s32.totalorder %s10, 1
    %p121 = por %p119, %p120
    %p122 = scmp.ne.s32.totalorder %s114, %s117
    %p123 = scmp.eq.s32.totalorder %s10, 0
    %p124 = por %p122, %p123
    %p125 = scmp.ne.s32.totalorder %s114, %s117
    %p126 = scmp.eq.s32.totalorder %s15, 1
    %p127 = por %p125, %p126
    %p128 = scmp.ne.s32.totalorder %s117, %s118
    %p129 = scmp.eq.s32.totalorder %s15, 0
    %p130 = por %p128, %p129
    %p131 = scmp.ne.s32.totalorder %s117, %s118
    %p132 = scmp.eq.s32.totalorder %s16, 1
    %p133 = por %p131, %p132
    %p135 = scmp.ne.s32.totalorder %s118, %s134
    %p136 = scmp.eq.s32.totalorder %s16, 0
    %p137 = por %p135, %p136
    %p138 = scmp.le.s32.totalorder 1, %s10
    %p139 = scmp.lt.s32.totalorder %s10, 3
    %p140 = pnand %p138, %p139
    %p141 = pneg %p140
    // Predicated region
    $region9: #{scorenet_forward.9} parent=5 // pred_check
      _
    $region10: #{scorenet_forward.9} parent=5 // pred_check_branch
      %143 = sbr.rel (%p140) target = $region12
    $region11: #{scorenet_forward.9} parent=5 // pred_region
      %s144 = ssub.s32 %s10, 1
      // Predicated region
      $region13: #{scorenet_forward.9} parent=11 // pred_check
        %p145 = pneg %p83
      $region14: #{scorenet_forward.9} parent=11 // pred_check_branch
        %147 = sbr.rel (%p145) target = $region16
      $region15: #{scorenet_forward.9} parent=11 // pred_region
        _
      $region16: #{scorenet_forward.9} parent=11 // pred_fallthru
        _
      // Predicated region
      $region17: #{scorenet_forward.9} parent=11 // pred_check
        %p148 = pneg %p104
      $region18: #{scorenet_forward.9} parent=11 // pred_check_branch
        %150 = sbr.rel (%p148) target = $region20
      $region19: #{scorenet_forward.9} parent=11 // pred_region
        _
      $region20: #{scorenet_forward.9} parent=11 // pred_fallthru
        _
    $region12: #{scorenet_forward.9} parent=5 // pred_fallthru
      _
    %p151 = scmp.lt.s32.totalorder %s10, 2
    // Predicated region
    $region21: #{scorenet_forward.9} parent=5 // pred_check
      %p152 = pneg %p151
    $region22: #{scorenet_forward.9} parent=5 // pred_check_branch
      %154 = sbr.rel (%p152) target = $region24
    $region23: #{scorenet_forward.9} parent=5 // pred_region
      // Predicated region
      $region25: #{scorenet_forward.9} parent=23 // pred_check
        %p155 = pneg %p30
      $region26: #{scorenet_forward.9} parent=23 // pred_check_branch
        %157 = sbr.rel (%p155) target = $region28
      $region27: #{scorenet_forward.9} parent=23 // pred_region
        %p158 = scmp.lt.s32.totalorder %s10, 1
        %s159 = scalar_select %p158, %s10, 1
        %s160 = smul.addr %s159, 16
        %s161 = smul.addr %s160, 4
        %s162 = scalar_lea.vmem %s0, %s161
      $region28: #{scorenet_forward.9} parent=23 // pred_fallthru
        _
      // Predicated region
      $region29: #{scorenet_forward.9} parent=23 // pred_check
        %p163 = pneg %p56
      $region30: #{scorenet_forward.9} parent=23 // pred_check_branch
        %165 = sbr.rel (%p163) target = $region32
      $region31: #{scorenet_forward.9} parent=23 // pred_region
        %p166 = scmp.lt.s32.totalorder %s10, 1
        %s167 = scalar_select %p166, %s10, 1
        %s168 = smul.addr %s167, 16
        %s169 = smul.addr %s168, 4
        %s170 = scalar_lea.vmem %s1, %s169
      $region32: #{scorenet_forward.9} parent=23 // pred_fallthru
        _
    $region24: #{scorenet_forward.9} parent=5 // pred_fallthru
      _
    %p171 = scmp.le.s32.totalorder 1, %s10
    %p172 = scmp.lt.s32.totalorder %s10, 3
    %p173 = pnand %p171, %p172
    %p174 = pneg %p173
    // Predicated region
    $region33: #{scorenet_forward.9} parent=5 // pred_check
      _
    $region34: #{scorenet_forward.9} parent=5 // pred_check_branch
      %176 = sbr.rel (%p173) target = $region36
    $region35: #{scorenet_forward.9} parent=5 // pred_region
      %s177 = ssub.s32 %s10, 1
      %p178 = scmp.lt.s32.totalorder %s15, 1
      %s179 = scalar_select %p178, %s15, 1
      %s180 = smul.addr %s179, 16
      %s181 = smul.addr %s180, 4
      %s182 = scalar_lea.vmem %s0, %s181
      %p183 = pneg %p36
      %p184 = pneg %p33
      %p185 = scmp.lt.s32.totalorder %s15, 1
      %s186 = scalar_select %p185, %s15, 1
      %s187 = smul.addr %s186, 16
      %s188 = smul.addr %s187, 4
      %s189 = scalar_lea.vmem %s1, %s188
      %p190 = pneg %p62
      %p191 = pneg %p59
      %p192 = pneg %p83
      %p193 = pneg %p80
      %p194 = pneg %p104
      %p195 = pneg %p101
      %p196 = pneg %p130
      %p197 = pneg %p127
      %p198 = scmp.lt.s32.totalorder %s15, 1
      %s199 = scalar_select %p198, %s15, 1
      %s200 = smul.addr %s199, 16
      %s201 = smul.addr %s200, 4
      %s202 = scalar_lea.vmem %s4, %s201
      %p203 = scmp.lt.s32.totalorder %s15, 1
      %s204 = scalar_select %p203, %s15, 1
      %s205 = smul.addr %s204, 16
      %s206 = smul.addr %s205, 4
      %s207 = scalar_lea.vmem %s0, %s206
      %p208 = scmp.lt.s32.totalorder %s15, 1
      %s209 = scalar_select %p208, %s15, 1
      %s210 = smul.addr %s209, 16
      %s211 = smul.addr %s210, 4
      %s212 = scalar_lea.vmem %s1, %s211
      %p213 = scmp.lt.s32.totalorder %s15, 1
      %s214 = scalar_select %p213, %s15, 1
      %s215 = smul.addr %s214, 16
      %s216 = smul.addr %s215, 4
      %s217 = scalar_lea.vmem %s4, %s216
      %v218 = vld [vmem:[%s207] sm:$0xff]
      %v219 = vld [vmem:[%s207 + $0x8] sm:$0xff]
      %v220 = vld [vmem:[%s207 + $0x10] sm:$0xff]
      %v221 = vld [vmem:[%s207 + $0x18] sm:$0xff]
      %v222 = vld [vmem:[%s207 + $0x20] sm:$0xff]
      %v223 = vld [vmem:[%s207 + $0x28] sm:$0xff]
      %v224 = vld [vmem:[%s207 + $0x30] sm:$0xff]
      %v225 = vld [vmem:[%s207 + $0x38] sm:$0xff]
      %v226 = vld [vmem:[%s212] sm:$0xff]
      %v227 = vld [vmem:[%s212 + $0x8] sm:$0xff]
      %v228 = vld [vmem:[%s212 + $0x10] sm:$0xff]
      %v229 = vld [vmem:[%s212 + $0x18] sm:$0xff]
      %v230 = vld [vmem:[%s212 + $0x20] sm:$0xff]
      %v231 = vld [vmem:[%s212 + $0x28] sm:$0xff]
      %v232 = vld [vmem:[%s212 + $0x30] sm:$0xff]
      %v233 = vld [vmem:[%s212 + $0x38] sm:$0xff]
      %v234 = vadd.f32 %v218, %v226
      %v235 = vadd.f32 %v219, %v227
      %v236 = vadd.f32 %v220, %v228
      %v237 = vadd.f32 %v221, %v229
      %v238 = vadd.f32 %v222, %v230
      %v239 = vadd.f32 %v223, %v231
      %v240 = vadd.f32 %v224, %v232
      %v241 = vadd.f32 %v225, %v233
      %v250 = vcombine.high %v234, %v234
      %v251 = vcombine.high %v235, %v235
      %v252 = vcombine.high %v236, %v236
      %v253 = vcombine.high %v237, %v237
      %v254 = vcombine.high %v238, %v238
      %v255 = vcombine.high %v239, %v239
      %v256 = vcombine.high %v240, %v240
      %v257 = vcombine.high %v241, %v241
      %vm266 = vcmask 1043456
      %v267 = vsel %vm266, %v234, 0.0
      %v268 = vsel %vm266, %v250, 0.0
      %v269 = vadd.f32 %v267, %v268
      %v270 = vsel %vm266, %v235, 0.0
      %v271 = vadd.f32 %v269, %v270
      %v272 = vsel %vm266, %v251, 0.0
      %v273 = vadd.f32 %v271, %v272
      %v274 = vsel %vm266, %v236, 0.0
      %v275 = vadd.f32 %v273, %v274
      %v276 = vsel %vm266, %v252, 0.0
      %v277 = vadd.f32 %v275, %v276
      %v278 = vsel %vm266, %v237, 0.0
      %v279 = vadd.f32 %v277, %v278
      %v280 = vsel %vm266, %v253, 0.0
      %v281 = vadd.f32 %v279, %v280
      %v282 = vsel %vm266, %v238, 0.0
      %v283 = vadd.f32 %v281, %v282
      %v284 = vsel %vm266, %v254, 0.0
      %v285 = vadd.f32 %v283, %v284
      %v286 = vsel %vm266, %v239, 0.0
      %v287 = vadd.f32 %v285, %v286
      %v288 = vsel %vm266, %v255, 0.0
      %v289 = vadd.f32 %v287, %v288
      %v290 = vsel %vm266, %v240, 0.0
      %v291 = vadd.f32 %v289, %v290
      %v292 = vsel %vm266, %v256, 0.0
      %v293 = vadd.f32 %v291, %v292
      %v294 = vsel %vm266, %v241, 0.0
      %v295 = vadd.f32 %v293, %v294
      %v296 = vsel %vm266, %v257, 0.0
      %v297 = vadd.f32 %v295, %v296
      %298 = vadd.xlane.f32.xlu0 %v297
      %v299 = vpop.xlane.xlu0 %298
      %v300 = vrcp.pop 2048.0
      %v301 = vmul.f32 %v299, %v300
      %v304 = vunpack.c.l.s4 839922192
      %v305 = vunpack.c.0.s8 %v304
      %v306 = vlaneseq
      %v307 = vshrl.u32 %v306, 7
      %v308 = vsub.s32 %v305, %v307
      %v309 = vrot.slane %v301, %v308
      %v311 = vsub.f32 %v234, %v309
      %v312 = vsub.f32 %v235, %v309
      %v313 = vsub.f32 %v236, %v309
      %v314 = vsub.f32 %v237, %v309
      %v315 = vsub.f32 %v238, %v309
      %v316 = vsub.f32 %v239, %v309
      %v317 = vsub.f32 %v240, %v309
      %v318 = vsub.f32 %v241, %v309
      %v319 = vmul.f32 %v311, %v311
      %v320 = vmul.f32 %v312, %v312
      %v321 = vmul.f32 %v313, %v313
      %v322 = vmul.f32 %v314, %v314
      %v323 = vmul.f32 %v315, %v315
      %v324 = vmul.f32 %v316, %v316
      %v325 = vmul.f32 %v317, %v317
      %v326 = vmul.f32 %v318, %v318
      %v335 = vcombine.high %v319, %v319
      %v336 = vcombine.high %v320, %v320
      %v337 = vcombine.high %v321, %v321
      %v338 = vcombine.high %v322, %v322
      %v339 = vcombine.high %v323, %v323
      %v340 = vcombine.high %v324, %v324
      %v341 = vcombine.high %v325, %v325
      %v342 = vcombine.high %v326, %v326
      %v351 = vsel %vm266, %v319, 0.0
      %v352 = vsel %vm266, %v335, 0.0
      %v353 = vadd.f32 %v351, %v352
      %v354 = vsel %vm266, %v320, 0.0
      %v355 = vadd.f32 %v353, %v354
      %v356 = vsel %vm266, %v336, 0.0
      %v357 = vadd.f32 %v355, %v356
      %v358 = vsel %vm266, %v321, 0.0
      %v359 = vadd.f32 %v357, %v358
      %v360 = vsel %vm266, %v337, 0.0
      %v361 = vadd.f32 %v359, %v360
      %v362 = vsel %vm266, %v322, 0.0
      %v363 = vadd.f32 %v361, %v362
      %v364 = vsel %vm266, %v338, 0.0
      %v365 = vadd.f32 %v363, %v364
      %v366 = vsel %vm266, %v323, 0.0
      %v367 = vadd.f32 %v365, %v366
      %v368 = vsel %vm266, %v339, 0.0
      %v369 = vadd.f32 %v367, %v368
      %v370 = vsel %vm266, %v324, 0.0
      %v371 = vadd.f32 %v369, %v370
      %v372 = vsel %vm266, %v340, 0.0
      %v373 = vadd.f32 %v371, %v372
      %v374 = vsel %vm266, %v325, 0.0
      %v375 = vadd.f32 %v373, %v374
      %v376 = vsel %vm266, %v341, 0.0
      %v377 = vadd.f32 %v375, %v376
      %v378 = vsel %vm266, %v326, 0.0
      %v379 = vadd.f32 %v377, %v378
      %v380 = vsel %vm266, %v342, 0.0
      %v381 = vadd.f32 %v379, %v380
      %382 = vadd.xlane.f32.xlu0 %v381
      %v383 = vpop.xlane.xlu0 %382
      %v384 = vmul.f32 %v383, %v300
      %v385 = vadd.f32 %v384, 1e-05
      %v386 = vrsqrt.pop %v385
      %v389 = vunpack.c.l.s4 839922192
      %v390 = vunpack.c.0.s8 %v389
      %v391 = vlaneseq
      %v392 = vshrl.u32 %v391, 7
      %v393 = vsub.s32 %v390, %v392
      %v394 = vrot.slane %v386, %v393
      %v396 = vmul.f32 %v311, %v394
      %v397 = vmul.f32 %v312, %v394
      %v398 = vmul.f32 %v313, %v394
      %v399 = vmul.f32 %v314, %v394
      %v400 = vmul.f32 %v315, %v394
      %v401 = vmul.f32 %v316, %v394
      %v402 = vmul.f32 %v317, %v394
      %v403 = vmul.f32 %v318, %v394
      %v404 = vld [vmem:[%s2] sm:$0xff]
      %v405 = vld [vmem:[%s2 + $0x8] sm:$0xff]
      %v406 = vld [vmem:[%s2 + $0x10] sm:$0xff]
      %v407 = vld [vmem:[%s2 + $0x18] sm:$0xff]
      %v408 = vld [vmem:[%s2 + $0x20] sm:$0xff]
      %v409 = vld [vmem:[%s2 + $0x28] sm:$0xff]
      %v410 = vld [vmem:[%s2 + $0x30] sm:$0xff]
      %v411 = vld [vmem:[%s2 + $0x38] sm:$0xff]
      %v412 = vmul.f32 %v396, %v404
      %v413 = vmul.f32 %v397, %v405
      %v414 = vmul.f32 %v398, %v406
      %v415 = vmul.f32 %v399, %v407
      %v416 = vmul.f32 %v400, %v408
      %v417 = vmul.f32 %v401, %v409
      %v418 = vmul.f32 %v402, %v410
      %v419 = vmul.f32 %v403, %v411
      %v420 = vld [vmem:[%s3] sm:$0xff]
      %v421 = vld [vmem:[%s3 + $0x8] sm:$0xff]
      %v422 = vld [vmem:[%s3 + $0x10] sm:$0xff]
      %v423 = vld [vmem:[%s3 + $0x18] sm:$0xff]
      %v424 = vld [vmem:[%s3 + $0x20] sm:$0xff]
      %v425 = vld [vmem:[%s3 + $0x28] sm:$0xff]
      %v426 = vld [vmem:[%s3 + $0x30] sm:$0xff]
      %v427 = vld [vmem:[%s3 + $0x38] sm:$0xff]
      %v428 = vadd.f32 %v412, %v420
      %v429 = vadd.f32 %v413, %v421
      %v430 = vadd.f32 %v414, %v422
      %v431 = vadd.f32 %v415, %v423
      %v432 = vadd.f32 %v416, %v424
      %v433 = vadd.f32 %v417, %v425
      %v434 = vadd.f32 %v418, %v426
      %v435 = vadd.f32 %v419, %v427
      %v436 = vsub.f32 0.0, %v428
      %v437 = vsub.f32 0.0, %v429
      %v438 = vsub.f32 0.0, %v430
      %v439 = vsub.f32 0.0, %v431
      %v440 = vsub.f32 0.0, %v432
      %v441 = vsub.f32 0.0, %v433
      %v442 = vsub.f32 0.0, %v434
      %v443 = vsub.f32 0.0, %v435
      %v444 = vmul.f32 %v436, 1.442695
      %v445 = vpow.pop %v444
      %v446 = vmul.f32 %v437, 1.442695
      %v447 = vpow.pop %v446
      %v448 = vmul.f32 %v438, 1.442695
      %v449 = vpow.pop %v448
      %v450 = vmul.f32 %v439, 1.442695
      %v451 = vpow.pop %v450
      %v452 = vmul.f32 %v440, 1.442695
      %v453 = vpow.pop %v452
      %v454 = vmul.f32 %v441, 1.442695
      %v455 = vpow.pop %v454
      %v456 = vmul.f32 %v442, 1.442695
      %v457 = vpow.pop %v456
      %v458 = vmul.f32 %v443, 1.442695
      %v459 = vpow.pop %v458
      %v460 = vadd.f32 %v445, 1.0
      %v461 = vadd.f32 %v447, 1.0
      %v462 = vadd.f32 %v449, 1.0
      %v463 = vadd.f32 %v451, 1.0
      %v464 = vadd.f32 %v453, 1.0
      %v465 = vadd.f32 %v455, 1.0
      %v466 = vadd.f32 %v457, 1.0
      %v467 = vadd.f32 %v459, 1.0
      %v468 = vrcp.pop %v460
      %v469 = vmul.f32 1.0, %v468
      %v470 = vrcp.pop %v461
      %v471 = vmul.f32 1.0, %v470
      %v472 = vrcp.pop %v462
      %v473 = vmul.f32 1.0, %v472
      %v474 = vrcp.pop %v463
      %v475 = vmul.f32 1.0, %v474
      %v476 = vrcp.pop %v464
      %v477 = vmul.f32 1.0, %v476
      %v478 = vrcp.pop %v465
      %v479 = vmul.f32 1.0, %v478
      %v480 = vrcp.pop %v466
      %v481 = vmul.f32 1.0, %v480
      %v482 = vrcp.pop %v467
      %v483 = vmul.f32 1.0, %v482
      %v484 = vmul.f32 %v428, %v469
      %v485 = vmul.f32 %v429, %v471
      %v486 = vmul.f32 %v430, %v473
      %v487 = vmul.f32 %v431, %v475
      %v488 = vmul.f32 %v432, %v477
      %v489 = vmul.f32 %v433, %v479
      %v490 = vmul.f32 %v434, %v481
      %v491 = vmul.f32 %v435, %v483
      %492 = vst [vmem:[%s217] sm:$0xff] %v484
      %493 = vst [vmem:[%s217 + $0x8] sm:$0xff] %v485
      %494 = vst [vmem:[%s217 + $0x10] sm:$0xff] %v486
      %495 = vst [vmem:[%s217 + $0x18] sm:$0xff] %v487
      %496 = vst [vmem:[%s217 + $0x20] sm:$0xff] %v488
      %497 = vst [vmem:[%s217 + $0x28] sm:$0xff] %v489
      %498 = vst [vmem:[%s217 + $0x30] sm:$0xff] %v490
      %499 = vst [vmem:[%s217 + $0x38] sm:$0xff] %v491
      %p500 = scmp.lt.s32.totalorder %s15, 1
      %s501 = scalar_select %p500, %s15, 1
      %s502 = smul.addr %s501, 16
      %s503 = smul.addr %s502, 4
      %s504 = scalar_lea.vmem %s4, %s503
      // Predicated region
      $region37: #{scorenet_forward.9} parent=35 // pred_check
        %p505 = pneg %p127
      $region38: #{scorenet_forward.9} parent=35 // pred_check_branch
        %507 = sbr.rel (%p505) target = $region40
      $region39: #{scorenet_forward.9} parent=35 // pred_region
        _
      $region40: #{scorenet_forward.9} parent=35 // pred_fallthru
        _
    $region36: #{scorenet_forward.9} parent=5 // pred_fallthru
      _
    %p508 = scmp.le.s32.totalorder 2, %s10
    // Predicated region
    $region41: #{scorenet_forward.9} parent=5 // pred_check
      %p509 = pneg %p508
    $region42: #{scorenet_forward.9} parent=5 // pred_check_branch
      %511 = sbr.rel (%p509) target = $region44
    $region43: #{scorenet_forward.9} parent=5 // pred_region
      %s512 = ssub.s32 %s10, 2
      // Predicated region
      $region45: #{scorenet_forward.9} parent=43 // pred_check
        %p513 = pneg %p133
      $region46: #{scorenet_forward.9} parent=43 // pred_check_branch
        %515 = sbr.rel (%p513) target = $region48
      $region47: #{scorenet_forward.9} parent=43 // pred_region
        %p516 = scmp.lt.s32.totalorder %s16, 1
        %s517 = scalar_select %p516, %s16, 1
        %s518 = smul.addr %s517, 16
        %s519 = smul.addr %s518, 4
        %s520 = scalar_lea.vmem %s4, %s519
      $region48: #{scorenet_forward.9} parent=43 // pred_fallthru
        _
    $region44: #{scorenet_forward.9} parent=5 // pred_fallthru
      _
  $region6: #{scorenet_forward.9} parent=0 // loop_footer
    %s14 = sadd.s32 1, %s10
  $region7: #{scorenet_forward.9} parent=0 // loop_footer_branch
    %9 = sbr.rel target = $region3
  $region8: #{scorenet_forward.9} parent=0 // loop_exit
    _

// kernel: scorenet_forward.10
$region0: #{scorenet_forward.10}
  #allocation0 [shape = 'u32[]', space=smem, size = 0x4, offset = 0x4, fixed_abs, tag = 'smem constant byte address 0x4 - core index']
  #allocation1 [shape = 'u32[144,128]{1,0:T(1,128)}', space=vmem, size = 0x12000, scoped, tag = 'internal scratch']
  %s0 = inlined_call_operand.vmem [shape: f32[2,32,128], index: 0, kind: input, shape index: {}]
  %s1 = inlined_call_operand.vmem [shape: f32[2,32,128], index: 1, kind: input, shape index: {}]
  %s2 = inlined_call_operand.vmem [shape: f32[1,32,128], index: 2, kind: input, shape index: {}]
  %s3 = inlined_call_operand.vmem [shape: f32[1,32,128], index: 3, kind: input, shape index: {}]
  %s4 = inlined_call_operand.vmem [shape: f32[2,32,128], index: 4, kind: output, shape index: {}]
  %s5 = sld [smem:[#allocation0]]
  $region49: #{scorenet_forward.10} parent=0
    _
  %s7 = ssub.s32 1, %s5
  %s8 = scalar_select 0, %s7, %s5
  loop: start=0, step=1, limit=4
  $region2: #{scorenet_forward.10} parent=0 // loop_pre_header
    _
  $region3: #{scorenet_forward.10} parent=0 // loop_header
    %s10 = sphi 0, %s14
    %p11 = scmp.ge.s32.totalorder %s10, 4
    %s20 = sphi 0, %s22
    %s23 = sphi 0, %s20
    %s24 = sphi 0, %s23
    %s40 = sphi 0, %s24
    %s46 = sphi 0, %s48
    %s49 = sphi 0, %s46
    %s50 = sphi 0, %s49
    %s66 = sphi 0, %s50
    %s70 = sphi 0, %s70
    %s72 = sphi 0, %s70
    %s73 = sphi 0, %s72
    %s87 = sphi 0, %s73
    %s91 = sphi 0, %s91
    %s93 = sphi 0, %s91
    %s94 = sphi 0, %s93
    %s108 = sphi 0, %s94
    %s114 = sphi 0, %s116
    %s117 = sphi 0, %s114
    %s118 = sphi 0, %s117
    %s134 = sphi 0, %s118
  $region4: #{scorenet_forward.10} parent=0 // loop_header_branch
    %13 = sbr.rel (%p11) target = $region8
  $region5: #{scorenet_forward.10} parent=0 // loop_body
    %s15 = ssub.s32 %s10, 1
    %s16 = ssub.s32 %s10, 2
    %s17 = sadd.s32 %s10, 1
    %s18 = ssub.s32 %s10, %s17
    %p19 = scmp.eq.s32.totalorder %s18, 0
    %s21 = sadd.s32 %s20, 1
    %s22 = scalar_select %p19, %s20, %s21
    %p25 = pneg %p19
    %p26 = scmp.eq.s32.totalorder %s10, 1
    %p27 = por %p25, %p26
    %p28 = scmp.ne.s32.totalorder %s20, %s23
    %p29 = scmp.eq.s32.totalorder %s10, 0
    %p30 = por %p28, %p29
    %p31 = scmp.ne.s32.totalorder %s20, %s23
    %p32 = scmp.eq.s32.totalorder %s15, 1
    %p33 = por %p31, %p32
    %p34 = scmp.ne.s32.totalorder %s23, %s24
    %p35 = scmp.eq.s32.totalorder %s15, 0
    %p36 = por %p34, %p35
    %p37 = scmp.ne.s32.totalorder %s23, %s24
    %p38 = scmp.eq.s32.totalorder %s16, 1
    %p39 = por %p37, %p38
    %p41 = scmp.ne.s32.totalorder %s24, %s40
    %p42 = scmp.eq.s32.totalorder %s16, 0
    %p43 = por %p41, %p42
    %s44 = ssub.s32 %s10, %s17
    %p45 = scmp.eq.s32.totalorder %s44, 0
    %s47 = sadd.s32 %s46, 1
    %s48 = scalar_select %p45, %s46, %s47
    %p51 = pneg %p45
    %p52 = scmp.eq.s32.totalorder %s10, 1
    %p53 = por %p51, %p52
    %p54 = scmp.ne.s32.totalorder %s46, %s49
    %p55 = scmp.eq.s32.totalorder %s10, 0
    %p56 = por %p54, %p55
    %p57 = scmp.ne.s32.totalorder %s46, %s49
    %p58 = scmp.eq.s32.totalorder %s15, 1
    %p59 = por %p57, %p58
    %p60 = scmp.ne.s32.totalorder %s49, %s50
    %p61 = scmp.eq.s32.totalorder %s15, 0
    %p62 = por %p60, %p61
    %p63 = scmp.ne.s32.totalorder %s49, %s50
    %p64 = scmp.eq.s32.totalorder %s16, 1
    %p65 = por %p63, %p64
    %p67 = scmp.ne.s32.totalorder %s50, %s66
    %p68 = scmp.eq.s32.totalorder %s16, 0
    %p69 = por %p67, %p68
    %s71 = sadd.s32 %s70, 1
    %p74 = scmp.eq.s32.totalorder %s10, 1
    %p75 = scmp.ne.s32.totalorder %s70, %s72
    %p76 = scmp.eq.s32.totalorder %s10, 0
    %p77 = por %p75, %p76
    %p78 = scmp.ne.s32.totalorder %s70, %s72
    %p79 = scmp.eq.s32.totalorder %s15, 1
    %p80 = por %p78, %p79
    %p81 = scmp.ne.s32.totalorder %s72, %s73
    %p82 = scmp.eq.s32.totalorder %s15, 0
    %p83 = por %p81, %p82
    %p84 = scmp.ne.s32.totalorder %s72, %s73
    %p85 = scmp.eq.s32.totalorder %s16, 1
    %p86 = por %p84, %p85
    %p88 = scmp.ne.s32.totalorder %s73, %s87
    %p89 = scmp.eq.s32.totalorder %s16, 0
    %p90 = por %p88, %p89
    %s92 = sadd.s32 %s91, 1
    %p95 = scmp.eq.s32.totalorder %s10, 1
    %p96 = scmp.ne.s32.totalorder %s91, %s93
    %p97 = scmp.eq.s32.totalorder %s10, 0
    %p98 = por %p96, %p97
    %p99 = scmp.ne.s32.totalorder %s91, %s93
    %p100 = scmp.eq.s32.totalorder %s15, 1
    %p101 = por %p99, %p100
    %p102 = scmp.ne.s32.totalorder %s93, %s94
    %p103 = scmp.eq.s32.totalorder %s15, 0
    %p104 = por %p102, %p103
    %p105 = scmp.ne.s32.totalorder %s93, %s94
    %p106 = scmp.eq.s32.totalorder %s16, 1
    %p107 = por %p105, %p106
    %p109 = scmp.ne.s32.totalorder %s94, %s108
    %p110 = scmp.eq.s32.totalorder %s16, 0
    %p111 = por %p109, %p110
    %s112 = ssub.s32 %s10, %s17
    %p113 = scmp.eq.s32.totalorder %s112, 0
    %s115 = sadd.s32 %s114, 1
    %s116 = scalar_select %p113, %s114, %s115
    %p119 = pneg %p113
    %p120 = scmp.eq.s32.totalorder %s10, 1
    %p121 = por %p119, %p120
    %p122 = scmp.ne.s32.totalorder %s114, %s117
    %p123 = scmp.eq.s32.totalorder %s10, 0
    %p124 = por %p122, %p123
    %p125 = scmp.ne.s32.totalorder %s114, %s117
    %p126 = scmp.eq.s32.totalorder %s15, 1
    %p127 = por %p125, %p126
    %p128 = scmp.ne.s32.totalorder %s117, %s118
    %p129 = scmp.eq.s32.totalorder %s15, 0
    %p130 = por %p128, %p129
    %p131 = scmp.ne.s32.totalorder %s117, %s118
    %p132 = scmp.eq.s32.totalorder %s16, 1
    %p133 = por %p131, %p132
    %p135 = scmp.ne.s32.totalorder %s118, %s134
    %p136 = scmp.eq.s32.totalorder %s16, 0
    %p137 = por %p135, %p136
    %p138 = scmp.le.s32.totalorder 1, %s10
    %p139 = scmp.lt.s32.totalorder %s10, 3
    %p140 = pnand %p138, %p139
    %p141 = pneg %p140
    // Predicated region
    $region9: #{scorenet_forward.10} parent=5 // pred_check
      _
    $region10: #{scorenet_forward.10} parent=5 // pred_check_branch
      %143 = sbr.rel (%p140) target = $region12
    $region11: #{scorenet_forward.10} parent=5 // pred_region
      %s144 = ssub.s32 %s10, 1
      // Predicated region
      $region13: #{scorenet_forward.10} parent=11 // pred_check
        %p145 = pneg %p83
      $region14: #{scorenet_forward.10} parent=11 // pred_check_branch
        %147 = sbr.rel (%p145) target = $region16
      $region15: #{scorenet_forward.10} parent=11 // pred_region
        _
      $region16: #{scorenet_forward.10} parent=11 // pred_fallthru
        _
      // Predicated region
      $region17: #{scorenet_forward.10} parent=11 // pred_check
        %p148 = pneg %p104
      $region18: #{scorenet_forward.10} parent=11 // pred_check_branch
        %150 = sbr.rel (%p148) target = $region20
      $region19: #{scorenet_forward.10} parent=11 // pred_region
        _
      $region20: #{scorenet_forward.10} parent=11 // pred_fallthru
        _
    $region12: #{scorenet_forward.10} parent=5 // pred_fallthru
      _
    %p151 = scmp.lt.s32.totalorder %s10, 2
    // Predicated region
    $region21: #{scorenet_forward.10} parent=5 // pred_check
      %p152 = pneg %p151
    $region22: #{scorenet_forward.10} parent=5 // pred_check_branch
      %154 = sbr.rel (%p152) target = $region24
    $region23: #{scorenet_forward.10} parent=5 // pred_region
      // Predicated region
      $region25: #{scorenet_forward.10} parent=23 // pred_check
        %p155 = pneg %p30
      $region26: #{scorenet_forward.10} parent=23 // pred_check_branch
        %157 = sbr.rel (%p155) target = $region28
      $region27: #{scorenet_forward.10} parent=23 // pred_region
        %p158 = scmp.lt.s32.totalorder %s10, 1
        %s159 = scalar_select %p158, %s10, 1
        %s160 = smul.addr %s159, 4
        %s161 = smul.addr %s160, 8
        %s162 = scalar_lea.vmem %s0, %s161
      $region28: #{scorenet_forward.10} parent=23 // pred_fallthru
        _
      // Predicated region
      $region29: #{scorenet_forward.10} parent=23 // pred_check
        %p163 = pneg %p56
      $region30: #{scorenet_forward.10} parent=23 // pred_check_branch
        %165 = sbr.rel (%p163) target = $region32
      $region31: #{scorenet_forward.10} parent=23 // pred_region
        %p166 = scmp.lt.s32.totalorder %s10, 1
        %s167 = scalar_select %p166, %s10, 1
        %s168 = smul.addr %s167, 4
        %s169 = smul.addr %s168, 8
        %s170 = scalar_lea.vmem %s1, %s169
      $region32: #{scorenet_forward.10} parent=23 // pred_fallthru
        _
    $region24: #{scorenet_forward.10} parent=5 // pred_fallthru
      _
    %p171 = scmp.le.s32.totalorder 1, %s10
    %p172 = scmp.lt.s32.totalorder %s10, 3
    %p173 = pnand %p171, %p172
    %p174 = pneg %p173
    // Predicated region
    $region33: #{scorenet_forward.10} parent=5 // pred_check
      _
    $region34: #{scorenet_forward.10} parent=5 // pred_check_branch
      %176 = sbr.rel (%p173) target = $region36
    $region35: #{scorenet_forward.10} parent=5 // pred_region
      %s177 = ssub.s32 %s10, 1
      %p178 = scmp.lt.s32.totalorder %s15, 1
      %s179 = scalar_select %p178, %s15, 1
      %s180 = smul.addr %s179, 4
      %s181 = smul.addr %s180, 8
      %s182 = scalar_lea.vmem %s0, %s181
      %p183 = pneg %p36
      %p184 = pneg %p33
      %p185 = scmp.lt.s32.totalorder %s15, 1
      %s186 = scalar_select %p185, %s15, 1
      %s187 = smul.addr %s186, 4
      %s188 = smul.addr %s187, 8
      %s189 = scalar_lea.vmem %s1, %s188
      %p190 = pneg %p62
      %p191 = pneg %p59
      %p192 = pneg %p83
      %p193 = pneg %p80
      %p194 = pneg %p104
      %p195 = pneg %p101
      %p196 = pneg %p130
      %p197 = pneg %p127
      %p198 = scmp.lt.s32.totalorder %s15, 1
      %s199 = scalar_select %p198, %s15, 1
      %s200 = smul.addr %s199, 4
      %s201 = smul.addr %s200, 8
      %s202 = scalar_lea.vmem %s4, %s201
      %p203 = scmp.lt.s32.totalorder %s15, 1
      %s204 = scalar_select %p203, %s15, 1
      %s205 = smul.addr %s204, 4
      %s206 = smul.addr %s205, 8
      %s207 = scalar_lea.vmem %s0, %s206
      %p208 = scmp.lt.s32.totalorder %s15, 1
      %s209 = scalar_select %p208, %s15, 1
      %s210 = smul.addr %s209, 4
      %s211 = smul.addr %s210, 8
      %s212 = scalar_lea.vmem %s1, %s211
      %p213 = scmp.lt.s32.totalorder %s15, 1
      %s214 = scalar_select %p213, %s15, 1
      %s215 = smul.addr %s214, 4
      %s216 = smul.addr %s215, 8
      %s217 = scalar_lea.vmem %s4, %s216
      %v218 = vld [vmem:[%s207] sm:$0xff]
      %v219 = vld [vmem:[%s207 + $0x8] sm:$0xff]
      %v220 = vld [vmem:[%s207 + $0x10] sm:$0xff]
      %v221 = vld [vmem:[%s207 + $0x18] sm:$0xff]
      %v222 = vld [vmem:[%s212] sm:$0xff]
      %v223 = vld [vmem:[%s212 + $0x8] sm:$0xff]
      %v224 = vld [vmem:[%s212 + $0x10] sm:$0xff]
      %v225 = vld [vmem:[%s212 + $0x18] sm:$0xff]
      %v226 = vadd.f32 %v218, %v222
      %v227 = vadd.f32 %v219, %v223
      %v228 = vadd.f32 %v220, %v224
      %v229 = vadd.f32 %v221, %v225
      %230 = vadd.xlane.f32.xlu0 %v226
      %v231 = vpop.xlane.xlu0 %230
      %232 = vadd.xlane.f32.xlu0 %v227
      %v233 = vpop.xlane.xlu0 %232
      %234 = vadd.xlane.f32.xlu0 %v228
      %v235 = vpop.xlane.xlu0 %234
      %236 = vadd.xlane.f32.xlu0 %v229
      %v237 = vpop.xlane.xlu0 %236
      %v238 = vrcp.pop 128.0
      %v239 = vmul.f32 %v231, %v238
      %v240 = vmul.f32 %v233, %v238
      %v241 = vmul.f32 %v235, %v238
      %v242 = vmul.f32 %v237, %v238
      %v243 = vsub.f32 %v226, %v239
      %v244 = vsub.f32 %v227, %v240
      %v245 = vsub.f32 %v228, %v241
      %v246 = vsub.f32 %v229, %v242
      %v247 = vmul.f32 %v243, %v243
      %v248 = vmul.f32 %v244, %v244
      %v249 = vmul.f32 %v245, %v245
      %v250 = vmul.f32 %v246, %v246
      %251 = vadd.xlane.f32.xlu0 %v247
      %v252 = vpop.xlane.xlu0 %251
      %253 = vadd.xlane.f32.xlu0 %v248
      %v254 = vpop.xlane.xlu0 %253
      %255 = vadd.xlane.f32.xlu0 %v249
      %v256 = vpop.xlane.xlu0 %255
      %257 = vadd.xlane.f32.xlu0 %v250
      %v258 = vpop.xlane.xlu0 %257
      %v259 = vmul.f32 %v252, %v238
      %v260 = vmul.f32 %v254, %v238
      %v261 = vmul.f32 %v256, %v238
      %v262 = vmul.f32 %v258, %v238
      %v263 = vadd.f32 %v259, 1e-05
      %v264 = vadd.f32 %v260, 1e-05
      %v265 = vadd.f32 %v261, 1e-05
      %v266 = vadd.f32 %v262, 1e-05
      %v267 = vrsqrt.pop %v263
      %v268 = vrsqrt.pop %v264
      %v269 = vrsqrt.pop %v265
      %v270 = vrsqrt.pop %v266
      %v271 = vmul.f32 %v243, %v267
      %v272 = vmul.f32 %v244, %v268
      %v273 = vmul.f32 %v245, %v269
      %v274 = vmul.f32 %v246, %v270
      %v275 = vld [vmem:[%s2] sm:$0xff]
      %v276 = vld [vmem:[%s2 + $0x8] sm:$0xff]
      %v277 = vld [vmem:[%s2 + $0x10] sm:$0xff]
      %v278 = vld [vmem:[%s2 + $0x18] sm:$0xff]
      %v279 = vmul.f32 %v271, %v275
      %v280 = vmul.f32 %v272, %v276
      %v281 = vmul.f32 %v273, %v277
      %v282 = vmul.f32 %v274, %v278
      %v283 = vld [vmem:[%s3] sm:$0xff]
      %v284 = vld [vmem:[%s3 + $0x8] sm:$0xff]
      %v285 = vld [vmem:[%s3 + $0x10] sm:$0xff]
      %v286 = vld [vmem:[%s3 + $0x18] sm:$0xff]
      %v287 = vadd.f32 %v279, %v283
      %v288 = vadd.f32 %v280, %v284
      %v289 = vadd.f32 %v281, %v285
      %v290 = vadd.f32 %v282, %v286
      %v291 = vsub.f32 0.0, %v287
      %v292 = vsub.f32 0.0, %v288
      %v293 = vsub.f32 0.0, %v289
      %v294 = vsub.f32 0.0, %v290
      %v295 = vmul.f32 %v291, 1.442695
      %v296 = vpow.pop %v295
      %v297 = vmul.f32 %v292, 1.442695
      %v298 = vpow.pop %v297
      %v299 = vmul.f32 %v293, 1.442695
      %v300 = vpow.pop %v299
      %v301 = vmul.f32 %v294, 1.442695
      %v302 = vpow.pop %v301
      %v303 = vadd.f32 %v296, 1.0
      %v304 = vadd.f32 %v298, 1.0
      %v305 = vadd.f32 %v300, 1.0
      %v306 = vadd.f32 %v302, 1.0
      %v307 = vrcp.pop %v303
      %v308 = vmul.f32 1.0, %v307
      %v309 = vrcp.pop %v304
      %v310 = vmul.f32 1.0, %v309
      %v311 = vrcp.pop %v305
      %v312 = vmul.f32 1.0, %v311
      %v313 = vrcp.pop %v306
      %v314 = vmul.f32 1.0, %v313
      %v315 = vmul.f32 %v287, %v308
      %v316 = vmul.f32 %v288, %v310
      %v317 = vmul.f32 %v289, %v312
      %v318 = vmul.f32 %v290, %v314
      %319 = vst [vmem:[%s217] sm:$0xff] %v315
      %320 = vst [vmem:[%s217 + $0x8] sm:$0xff] %v316
      %321 = vst [vmem:[%s217 + $0x10] sm:$0xff] %v317
      %322 = vst [vmem:[%s217 + $0x18] sm:$0xff] %v318
      %p323 = scmp.lt.s32.totalorder %s15, 1
      %s324 = scalar_select %p323, %s15, 1
      %s325 = smul.addr %s324, 4
      %s326 = smul.addr %s325, 8
      %s327 = scalar_lea.vmem %s4, %s326
      // Predicated region
      $region37: #{scorenet_forward.10} parent=35 // pred_check
        %p328 = pneg %p127
      $region38: #{scorenet_forward.10} parent=35 // pred_check_branch
        %330 = sbr.rel (%p328) target = $region40
      $region39: #{scorenet_forward.10} parent=35 // pred_region
        _
      $region40: #{scorenet_forward.10} parent=35 // pred_fallthru
        _
    $region36: #{scorenet_forward.10} parent=5 // pred_fallthru
      _
    %p331 = scmp.le.s32.totalorder 2, %s10
    // Predicated region
    $region41: #{scorenet_forward.10} parent=5 // pred_check
      %p332 = pneg %p331
    $region42: #{scorenet_forward.10} parent=5 // pred_check_branch
      %334 = sbr.rel (%p332) target = $region44
    $region43: #{scorenet_forward.10} parent=5 // pred_region
      %s335 = ssub.s32 %s10, 2
      // Predicated region
      $region45: #{scorenet_forward.10} parent=43 // pred_check
        %p336 = pneg %p133
      $region46: #{scorenet_forward.10} parent=43 // pred_check_branch
        %338 = sbr.rel (%p336) target = $region48
      $region47: #{scorenet_forward.10} parent=43 // pred_region
        %p339 = scmp.lt.s32.totalorder %s16, 1
        %s340 = scalar_select %p339, %s16, 1
        %s341 = smul.addr %s340, 4
        %s342 = smul.addr %s341, 8
        %s343 = scalar_lea.vmem %s4, %s342
      $region48: #{scorenet_forward.10} parent=43 // pred_fallthru
        _
    $region44: #{scorenet_forward.10} parent=5 // pred_fallthru
      _
  $region6: #{scorenet_forward.10} parent=0 // loop_footer
    %s14 = sadd.s32 1, %s10
  $region7: #{scorenet_forward.10} parent=0 // loop_footer_branch
    %9 = sbr.rel target = $region3
  $region8: #{scorenet_forward.10} parent=0 // loop_exit
    _

// kernel: scorenet_forward.11
$region0: #{scorenet_forward.11}
  #allocation0 [shape = 'u32[]', space=smem, size = 0x4, offset = 0x4, fixed_abs, tag = 'smem constant byte address 0x4 - core index']
  #allocation1 [shape = 'u32[144,128]{1,0:T(1,128)}', space=vmem, size = 0x12000, scoped, tag = 'internal scratch']
  %s0 = inlined_call_operand.vmem [shape: f32[2,32,64], index: 0, kind: input, shape index: {}]
  %s1 = inlined_call_operand.vmem [shape: f32[2,32,64], index: 1, kind: input, shape index: {}]
  %s2 = inlined_call_operand.vmem [shape: f32[1,32,64], index: 2, kind: input, shape index: {}]
  %s3 = inlined_call_operand.vmem [shape: f32[1,32,64], index: 3, kind: input, shape index: {}]
  %s4 = inlined_call_operand.vmem [shape: f32[2,32,64], index: 4, kind: output, shape index: {}]
  %s5 = sld [smem:[#allocation0]]
  $region49: #{scorenet_forward.11} parent=0
    _
  %s7 = ssub.s32 1, %s5
  %s8 = scalar_select 0, %s7, %s5
  loop: start=0, step=1, limit=4
  $region2: #{scorenet_forward.11} parent=0 // loop_pre_header
    _
  $region3: #{scorenet_forward.11} parent=0 // loop_header
    %s10 = sphi 0, %s14
    %p11 = scmp.ge.s32.totalorder %s10, 4
    %s20 = sphi 0, %s22
    %s23 = sphi 0, %s20
    %s24 = sphi 0, %s23
    %s40 = sphi 0, %s24
    %s46 = sphi 0, %s48
    %s49 = sphi 0, %s46
    %s50 = sphi 0, %s49
    %s66 = sphi 0, %s50
    %s70 = sphi 0, %s70
    %s72 = sphi 0, %s70
    %s73 = sphi 0, %s72
    %s87 = sphi 0, %s73
    %s91 = sphi 0, %s91
    %s93 = sphi 0, %s91
    %s94 = sphi 0, %s93
    %s108 = sphi 0, %s94
    %s114 = sphi 0, %s116
    %s117 = sphi 0, %s114
    %s118 = sphi 0, %s117
    %s134 = sphi 0, %s118
  $region4: #{scorenet_forward.11} parent=0 // loop_header_branch
    %13 = sbr.rel (%p11) target = $region8
  $region5: #{scorenet_forward.11} parent=0 // loop_body
    %s15 = ssub.s32 %s10, 1
    %s16 = ssub.s32 %s10, 2
    %s17 = sadd.s32 %s10, 1
    %s18 = ssub.s32 %s10, %s17
    %p19 = scmp.eq.s32.totalorder %s18, 0
    %s21 = sadd.s32 %s20, 1
    %s22 = scalar_select %p19, %s20, %s21
    %p25 = pneg %p19
    %p26 = scmp.eq.s32.totalorder %s10, 1
    %p27 = por %p25, %p26
    %p28 = scmp.ne.s32.totalorder %s20, %s23
    %p29 = scmp.eq.s32.totalorder %s10, 0
    %p30 = por %p28, %p29
    %p31 = scmp.ne.s32.totalorder %s20, %s23
    %p32 = scmp.eq.s32.totalorder %s15, 1
    %p33 = por %p31, %p32
    %p34 = scmp.ne.s32.totalorder %s23, %s24
    %p35 = scmp.eq.s32.totalorder %s15, 0
    %p36 = por %p34, %p35
    %p37 = scmp.ne.s32.totalorder %s23, %s24
    %p38 = scmp.eq.s32.totalorder %s16, 1
    %p39 = por %p37, %p38
    %p41 = scmp.ne.s32.totalorder %s24, %s40
    %p42 = scmp.eq.s32.totalorder %s16, 0
    %p43 = por %p41, %p42
    %s44 = ssub.s32 %s10, %s17
    %p45 = scmp.eq.s32.totalorder %s44, 0
    %s47 = sadd.s32 %s46, 1
    %s48 = scalar_select %p45, %s46, %s47
    %p51 = pneg %p45
    %p52 = scmp.eq.s32.totalorder %s10, 1
    %p53 = por %p51, %p52
    %p54 = scmp.ne.s32.totalorder %s46, %s49
    %p55 = scmp.eq.s32.totalorder %s10, 0
    %p56 = por %p54, %p55
    %p57 = scmp.ne.s32.totalorder %s46, %s49
    %p58 = scmp.eq.s32.totalorder %s15, 1
    %p59 = por %p57, %p58
    %p60 = scmp.ne.s32.totalorder %s49, %s50
    %p61 = scmp.eq.s32.totalorder %s15, 0
    %p62 = por %p60, %p61
    %p63 = scmp.ne.s32.totalorder %s49, %s50
    %p64 = scmp.eq.s32.totalorder %s16, 1
    %p65 = por %p63, %p64
    %p67 = scmp.ne.s32.totalorder %s50, %s66
    %p68 = scmp.eq.s32.totalorder %s16, 0
    %p69 = por %p67, %p68
    %s71 = sadd.s32 %s70, 1
    %p74 = scmp.eq.s32.totalorder %s10, 1
    %p75 = scmp.ne.s32.totalorder %s70, %s72
    %p76 = scmp.eq.s32.totalorder %s10, 0
    %p77 = por %p75, %p76
    %p78 = scmp.ne.s32.totalorder %s70, %s72
    %p79 = scmp.eq.s32.totalorder %s15, 1
    %p80 = por %p78, %p79
    %p81 = scmp.ne.s32.totalorder %s72, %s73
    %p82 = scmp.eq.s32.totalorder %s15, 0
    %p83 = por %p81, %p82
    %p84 = scmp.ne.s32.totalorder %s72, %s73
    %p85 = scmp.eq.s32.totalorder %s16, 1
    %p86 = por %p84, %p85
    %p88 = scmp.ne.s32.totalorder %s73, %s87
    %p89 = scmp.eq.s32.totalorder %s16, 0
    %p90 = por %p88, %p89
    %s92 = sadd.s32 %s91, 1
    %p95 = scmp.eq.s32.totalorder %s10, 1
    %p96 = scmp.ne.s32.totalorder %s91, %s93
    %p97 = scmp.eq.s32.totalorder %s10, 0
    %p98 = por %p96, %p97
    %p99 = scmp.ne.s32.totalorder %s91, %s93
    %p100 = scmp.eq.s32.totalorder %s15, 1
    %p101 = por %p99, %p100
    %p102 = scmp.ne.s32.totalorder %s93, %s94
    %p103 = scmp.eq.s32.totalorder %s15, 0
    %p104 = por %p102, %p103
    %p105 = scmp.ne.s32.totalorder %s93, %s94
    %p106 = scmp.eq.s32.totalorder %s16, 1
    %p107 = por %p105, %p106
    %p109 = scmp.ne.s32.totalorder %s94, %s108
    %p110 = scmp.eq.s32.totalorder %s16, 0
    %p111 = por %p109, %p110
    %s112 = ssub.s32 %s10, %s17
    %p113 = scmp.eq.s32.totalorder %s112, 0
    %s115 = sadd.s32 %s114, 1
    %s116 = scalar_select %p113, %s114, %s115
    %p119 = pneg %p113
    %p120 = scmp.eq.s32.totalorder %s10, 1
    %p121 = por %p119, %p120
    %p122 = scmp.ne.s32.totalorder %s114, %s117
    %p123 = scmp.eq.s32.totalorder %s10, 0
    %p124 = por %p122, %p123
    %p125 = scmp.ne.s32.totalorder %s114, %s117
    %p126 = scmp.eq.s32.totalorder %s15, 1
    %p127 = por %p125, %p126
    %p128 = scmp.ne.s32.totalorder %s117, %s118
    %p129 = scmp.eq.s32.totalorder %s15, 0
    %p130 = por %p128, %p129
    %p131 = scmp.ne.s32.totalorder %s117, %s118
    %p132 = scmp.eq.s32.totalorder %s16, 1
    %p133 = por %p131, %p132
    %p135 = scmp.ne.s32.totalorder %s118, %s134
    %p136 = scmp.eq.s32.totalorder %s16, 0
    %p137 = por %p135, %p136
    %p138 = scmp.le.s32.totalorder 1, %s10
    %p139 = scmp.lt.s32.totalorder %s10, 3
    %p140 = pnand %p138, %p139
    %p141 = pneg %p140
    // Predicated region
    $region9: #{scorenet_forward.11} parent=5 // pred_check
      _
    $region10: #{scorenet_forward.11} parent=5 // pred_check_branch
      %143 = sbr.rel (%p140) target = $region12
    $region11: #{scorenet_forward.11} parent=5 // pred_region
      %s144 = ssub.s32 %s10, 1
      // Predicated region
      $region13: #{scorenet_forward.11} parent=11 // pred_check
        %p145 = pneg %p83
      $region14: #{scorenet_forward.11} parent=11 // pred_check_branch
        %147 = sbr.rel (%p145) target = $region16
      $region15: #{scorenet_forward.11} parent=11 // pred_region
        _
      $region16: #{scorenet_forward.11} parent=11 // pred_fallthru
        _
      // Predicated region
      $region17: #{scorenet_forward.11} parent=11 // pred_check
        %p148 = pneg %p104
      $region18: #{scorenet_forward.11} parent=11 // pred_check_branch
        %150 = sbr.rel (%p148) target = $region20
      $region19: #{scorenet_forward.11} parent=11 // pred_region
        _
      $region20: #{scorenet_forward.11} parent=11 // pred_fallthru
        _
    $region12: #{scorenet_forward.11} parent=5 // pred_fallthru
      _
    %p151 = scmp.lt.s32.totalorder %s10, 2
    // Predicated region
    $region21: #{scorenet_forward.11} parent=5 // pred_check
      %p152 = pneg %p151
    $region22: #{scorenet_forward.11} parent=5 // pred_check_branch
      %154 = sbr.rel (%p152) target = $region24
    $region23: #{scorenet_forward.11} parent=5 // pred_region
      // Predicated region
      $region25: #{scorenet_forward.11} parent=23 // pred_check
        %p155 = pneg %p30
      $region26: #{scorenet_forward.11} parent=23 // pred_check_branch
        %157 = sbr.rel (%p155) target = $region28
      $region27: #{scorenet_forward.11} parent=23 // pred_region
        %p158 = scmp.lt.s32.totalorder %s10, 1
        %s159 = scalar_select %p158, %s10, 1
        %s160 = smul.addr %s159, 4
        %s161 = smul.addr %s160, 8
        %s162 = scalar_lea.vmem %s0, %s161
      $region28: #{scorenet_forward.11} parent=23 // pred_fallthru
        _
      // Predicated region
      $region29: #{scorenet_forward.11} parent=23 // pred_check
        %p163 = pneg %p56
      $region30: #{scorenet_forward.11} parent=23 // pred_check_branch
        %165 = sbr.rel (%p163) target = $region32
      $region31: #{scorenet_forward.11} parent=23 // pred_region
        %p166 = scmp.lt.s32.totalorder %s10, 1
        %s167 = scalar_select %p166, %s10, 1
        %s168 = smul.addr %s167, 4
        %s169 = smul.addr %s168, 8
        %s170 = scalar_lea.vmem %s1, %s169
      $region32: #{scorenet_forward.11} parent=23 // pred_fallthru
        _
    $region24: #{scorenet_forward.11} parent=5 // pred_fallthru
      _
    %p171 = scmp.le.s32.totalorder 1, %s10
    %p172 = scmp.lt.s32.totalorder %s10, 3
    %p173 = pnand %p171, %p172
    %p174 = pneg %p173
    // Predicated region
    $region33: #{scorenet_forward.11} parent=5 // pred_check
      _
    $region34: #{scorenet_forward.11} parent=5 // pred_check_branch
      %176 = sbr.rel (%p173) target = $region36
    $region35: #{scorenet_forward.11} parent=5 // pred_region
      %s177 = ssub.s32 %s10, 1
      %p178 = scmp.lt.s32.totalorder %s15, 1
      %s179 = scalar_select %p178, %s15, 1
      %s180 = smul.addr %s179, 4
      %s181 = smul.addr %s180, 8
      %s182 = scalar_lea.vmem %s0, %s181
      %p183 = pneg %p36
      %p184 = pneg %p33
      %p185 = scmp.lt.s32.totalorder %s15, 1
      %s186 = scalar_select %p185, %s15, 1
      %s187 = smul.addr %s186, 4
      %s188 = smul.addr %s187, 8
      %s189 = scalar_lea.vmem %s1, %s188
      %p190 = pneg %p62
      %p191 = pneg %p59
      %p192 = pneg %p83
      %p193 = pneg %p80
      %p194 = pneg %p104
      %p195 = pneg %p101
      %p196 = pneg %p130
      %p197 = pneg %p127
      %p198 = scmp.lt.s32.totalorder %s15, 1
      %s199 = scalar_select %p198, %s15, 1
      %s200 = smul.addr %s199, 4
      %s201 = smul.addr %s200, 8
      %s202 = scalar_lea.vmem %s4, %s201
      %p203 = scmp.lt.s32.totalorder %s15, 1
      %s204 = scalar_select %p203, %s15, 1
      %s205 = smul.addr %s204, 4
      %s206 = smul.addr %s205, 8
      %s207 = scalar_lea.vmem %s0, %s206
      %p208 = scmp.lt.s32.totalorder %s15, 1
      %s209 = scalar_select %p208, %s15, 1
      %s210 = smul.addr %s209, 4
      %s211 = smul.addr %s210, 8
      %s212 = scalar_lea.vmem %s1, %s211
      %p213 = scmp.lt.s32.totalorder %s15, 1
      %s214 = scalar_select %p213, %s15, 1
      %s215 = smul.addr %s214, 4
      %s216 = smul.addr %s215, 8
      %s217 = scalar_lea.vmem %s4, %s216
      %v218 = vld [vmem:[%s207] sm:$0xff]
      %v219 = vld [vmem:[%s207 + $0x8] sm:$0xff]
      %v220 = vld [vmem:[%s207 + $0x10] sm:$0xff]
      %v221 = vld [vmem:[%s207 + $0x18] sm:$0xff]
      %v222 = vld [vmem:[%s212] sm:$0xff]
      %v223 = vld [vmem:[%s212 + $0x8] sm:$0xff]
      %v224 = vld [vmem:[%s212 + $0x10] sm:$0xff]
      %v225 = vld [vmem:[%s212 + $0x18] sm:$0xff]
      %v226 = vadd.f32 %v218, %v222
      %v227 = vadd.f32 %v219, %v223
      %v228 = vadd.f32 %v220, %v224
      %v229 = vadd.f32 %v221, %v225
      %vm230 = vcmask 523264
      %v231 = vsel %vm230, %v226, 0.0
      %232 = vadd.xlane.f32.xlu0 %v231
      %v233 = vpop.xlane.xlu0 %232
      %v234 = vsel %vm230, %v227, 0.0
      %235 = vadd.xlane.f32.xlu0 %v234
      %v236 = vpop.xlane.xlu0 %235
      %v237 = vsel %vm230, %v228, 0.0
      %238 = vadd.xlane.f32.xlu0 %v237
      %v239 = vpop.xlane.xlu0 %238
      %v240 = vsel %vm230, %v229, 0.0
      %241 = vadd.xlane.f32.xlu0 %v240
      %v242 = vpop.xlane.xlu0 %241
      %v243 = vrcp.pop 64.0
      %v244 = vmul.f32 %v233, %v243
      %v245 = vmul.f32 %v236, %v243
      %v246 = vmul.f32 %v239, %v243
      %v247 = vmul.f32 %v242, %v243
      %v248 = vsub.f32 %v226, %v244
      %v249 = vsub.f32 %v227, %v245
      %v250 = vsub.f32 %v228, %v246
      %v251 = vsub.f32 %v229, %v247
      %v252 = vmul.f32 %v248, %v248
      %v253 = vmul.f32 %v249, %v249
      %v254 = vmul.f32 %v250, %v250
      %v255 = vmul.f32 %v251, %v251
      %v256 = vsel %vm230, %v252, 0.0
      %257 = vadd.xlane.f32.xlu0 %v256
      %v258 = vpop.xlane.xlu0 %257
      %v259 = vsel %vm230, %v253, 0.0
      %260 = vadd.xlane.f32.xlu0 %v259
      %v261 = vpop.xlane.xlu0 %260
      %v262 = vsel %vm230, %v254, 0.0
      %263 = vadd.xlane.f32.xlu0 %v262
      %v264 = vpop.xlane.xlu0 %263
      %v265 = vsel %vm230, %v255, 0.0
      %266 = vadd.xlane.f32.xlu0 %v265
      %v267 = vpop.xlane.xlu0 %266
      %v268 = vmul.f32 %v258, %v243
      %v269 = vmul.f32 %v261, %v243
      %v270 = vmul.f32 %v264, %v243
      %v271 = vmul.f32 %v267, %v243
      %v272 = vadd.f32 %v268, 1e-05
      %v273 = vadd.f32 %v269, 1e-05
      %v274 = vadd.f32 %v270, 1e-05
      %v275 = vadd.f32 %v271, 1e-05
      %v276 = vrsqrt.pop %v272
      %v277 = vrsqrt.pop %v273
      %v278 = vrsqrt.pop %v274
      %v279 = vrsqrt.pop %v275
      %v280 = vmul.f32 %v248, %v276
      %v281 = vmul.f32 %v249, %v277
      %v282 = vmul.f32 %v250, %v278
      %v283 = vmul.f32 %v251, %v279
      %v284 = vld [vmem:[%s2] sm:$0xff]
      %v285 = vld [vmem:[%s2 + $0x8] sm:$0xff]
      %v286 = vld [vmem:[%s2 + $0x10] sm:$0xff]
      %v287 = vld [vmem:[%s2 + $0x18] sm:$0xff]
      %v288 = vmul.f32 %v280, %v284
      %v289 = vmul.f32 %v281, %v285
      %v290 = vmul.f32 %v282, %v286
      %v291 = vmul.f32 %v283, %v287
      %v292 = vld [vmem:[%s3] sm:$0xff]
      %v293 = vld [vmem:[%s3 + $0x8] sm:$0xff]
      %v294 = vld [vmem:[%s3 + $0x10] sm:$0xff]
      %v295 = vld [vmem:[%s3 + $0x18] sm:$0xff]
      %v296 = vadd.f32 %v288, %v292
      %v297 = vadd.f32 %v289, %v293
      %v298 = vadd.f32 %v290, %v294
      %v299 = vadd.f32 %v291, %v295
      %v300 = vsub.f32 0.0, %v296
      %v301 = vsub.f32 0.0, %v297
      %v302 = vsub.f32 0.0, %v298
      %v303 = vsub.f32 0.0, %v299
      %v304 = vmul.f32 %v300, 1.442695
      %v305 = vpow.pop %v304
      %v306 = vmul.f32 %v301, 1.442695
      %v307 = vpow.pop %v306
      %v308 = vmul.f32 %v302, 1.442695
      %v309 = vpow.pop %v308
      %v310 = vmul.f32 %v303, 1.442695
      %v311 = vpow.pop %v310
      %v312 = vadd.f32 %v305, 1.0
      %v313 = vadd.f32 %v307, 1.0
      %v314 = vadd.f32 %v309, 1.0
      %v315 = vadd.f32 %v311, 1.0
      %v316 = vrcp.pop %v312
      %v317 = vmul.f32 1.0, %v316
      %v318 = vrcp.pop %v313
      %v319 = vmul.f32 1.0, %v318
      %v320 = vrcp.pop %v314
      %v321 = vmul.f32 1.0, %v320
      %v322 = vrcp.pop %v315
      %v323 = vmul.f32 1.0, %v322
      %v324 = vmul.f32 %v296, %v317
      %v325 = vmul.f32 %v297, %v319
      %v326 = vmul.f32 %v298, %v321
      %v327 = vmul.f32 %v299, %v323
      %328 = vst.msk [vmem:[%s217] sm:$0xff] %vm230, %v324
      %329 = vst.msk [vmem:[%s217 + $0x8] sm:$0xff] %vm230, %v325
      %330 = vst.msk [vmem:[%s217 + $0x10] sm:$0xff] %vm230, %v326
      %331 = vst.msk [vmem:[%s217 + $0x18] sm:$0xff] %vm230, %v327
      %p332 = scmp.lt.s32.totalorder %s15, 1
      %s333 = scalar_select %p332, %s15, 1
      %s334 = smul.addr %s333, 4
      %s335 = smul.addr %s334, 8
      %s336 = scalar_lea.vmem %s4, %s335
      // Predicated region
      $region37: #{scorenet_forward.11} parent=35 // pred_check
        %p337 = pneg %p127
      $region38: #{scorenet_forward.11} parent=35 // pred_check_branch
        %339 = sbr.rel (%p337) target = $region40
      $region39: #{scorenet_forward.11} parent=35 // pred_region
        _
      $region40: #{scorenet_forward.11} parent=35 // pred_fallthru
        _
    $region36: #{scorenet_forward.11} parent=5 // pred_fallthru
      _
    %p340 = scmp.le.s32.totalorder 2, %s10
    // Predicated region
    $region41: #{scorenet_forward.11} parent=5 // pred_check
      %p341 = pneg %p340
    $region42: #{scorenet_forward.11} parent=5 // pred_check_branch
      %343 = sbr.rel (%p341) target = $region44
    $region43: #{scorenet_forward.11} parent=5 // pred_region
      %s344 = ssub.s32 %s10, 2
      // Predicated region
      $region45: #{scorenet_forward.11} parent=43 // pred_check
        %p345 = pneg %p133
      $region46: #{scorenet_forward.11} parent=43 // pred_check_branch
        %347 = sbr.rel (%p345) target = $region48
      $region47: #{scorenet_forward.11} parent=43 // pred_region
        %p348 = scmp.lt.s32.totalorder %s16, 1
        %s349 = scalar_select %p348, %s16, 1
        %s350 = smul.addr %s349, 4
        %s351 = smul.addr %s350, 8
        %s352 = scalar_lea.vmem %s4, %s351
      $region48: #{scorenet_forward.11} parent=43 // pred_fallthru
        _
    $region44: #{scorenet_forward.11} parent=5 // pred_fallthru
      _
  $region6: #{scorenet_forward.11} parent=0 // loop_footer
    %s14 = sadd.s32 1, %s10
  $region7: #{scorenet_forward.11} parent=0 // loop_footer_branch
    %9 = sbr.rel target = $region3
  $region8: #{scorenet_forward.11} parent=0 // loop_exit
    _

// kernel: scorenet_forward.12
$region0: #{scorenet_forward.12}
  #allocation0 [shape = 'u32[]', space=smem, size = 0x4, offset = 0x4, fixed_abs, tag = 'smem constant byte address 0x4 - core index']
  #allocation1 [shape = 'u32[144,128]{1,0:T(1,128)}', space=vmem, size = 0x12000, scoped, tag = 'internal scratch']
  %s0 = inlined_call_operand.vmem [shape: f32[2,32,32], index: 0, kind: input, shape index: {}]
  %s1 = inlined_call_operand.vmem [shape: f32[2,32,32], index: 1, kind: input, shape index: {}]
  %s2 = inlined_call_operand.vmem [shape: f32[1,32,32], index: 2, kind: input, shape index: {}]
  %s3 = inlined_call_operand.vmem [shape: f32[1,32,32], index: 3, kind: input, shape index: {}]
  %s4 = inlined_call_operand.vmem [shape: f32[2,32,32], index: 4, kind: output, shape index: {}]
  %s5 = sld [smem:[#allocation0]]
  $region49: #{scorenet_forward.12} parent=0
    _
  %s7 = ssub.s32 1, %s5
  %s8 = scalar_select 0, %s7, %s5
  loop: start=0, step=1, limit=4
  $region2: #{scorenet_forward.12} parent=0 // loop_pre_header
    _
  $region3: #{scorenet_forward.12} parent=0 // loop_header
    %s10 = sphi 0, %s14
    %p11 = scmp.ge.s32.totalorder %s10, 4
    %s20 = sphi 0, %s22
    %s23 = sphi 0, %s20
    %s24 = sphi 0, %s23
    %s40 = sphi 0, %s24
    %s46 = sphi 0, %s48
    %s49 = sphi 0, %s46
    %s50 = sphi 0, %s49
    %s66 = sphi 0, %s50
    %s70 = sphi 0, %s70
    %s72 = sphi 0, %s70
    %s73 = sphi 0, %s72
    %s87 = sphi 0, %s73
    %s91 = sphi 0, %s91
    %s93 = sphi 0, %s91
    %s94 = sphi 0, %s93
    %s108 = sphi 0, %s94
    %s114 = sphi 0, %s116
    %s117 = sphi 0, %s114
    %s118 = sphi 0, %s117
    %s134 = sphi 0, %s118
  $region4: #{scorenet_forward.12} parent=0 // loop_header_branch
    %13 = sbr.rel (%p11) target = $region8
  $region5: #{scorenet_forward.12} parent=0 // loop_body
    %s15 = ssub.s32 %s10, 1
    %s16 = ssub.s32 %s10, 2
    %s17 = sadd.s32 %s10, 1
    %s18 = ssub.s32 %s10, %s17
    %p19 = scmp.eq.s32.totalorder %s18, 0
    %s21 = sadd.s32 %s20, 1
    %s22 = scalar_select %p19, %s20, %s21
    %p25 = pneg %p19
    %p26 = scmp.eq.s32.totalorder %s10, 1
    %p27 = por %p25, %p26
    %p28 = scmp.ne.s32.totalorder %s20, %s23
    %p29 = scmp.eq.s32.totalorder %s10, 0
    %p30 = por %p28, %p29
    %p31 = scmp.ne.s32.totalorder %s20, %s23
    %p32 = scmp.eq.s32.totalorder %s15, 1
    %p33 = por %p31, %p32
    %p34 = scmp.ne.s32.totalorder %s23, %s24
    %p35 = scmp.eq.s32.totalorder %s15, 0
    %p36 = por %p34, %p35
    %p37 = scmp.ne.s32.totalorder %s23, %s24
    %p38 = scmp.eq.s32.totalorder %s16, 1
    %p39 = por %p37, %p38
    %p41 = scmp.ne.s32.totalorder %s24, %s40
    %p42 = scmp.eq.s32.totalorder %s16, 0
    %p43 = por %p41, %p42
    %s44 = ssub.s32 %s10, %s17
    %p45 = scmp.eq.s32.totalorder %s44, 0
    %s47 = sadd.s32 %s46, 1
    %s48 = scalar_select %p45, %s46, %s47
    %p51 = pneg %p45
    %p52 = scmp.eq.s32.totalorder %s10, 1
    %p53 = por %p51, %p52
    %p54 = scmp.ne.s32.totalorder %s46, %s49
    %p55 = scmp.eq.s32.totalorder %s10, 0
    %p56 = por %p54, %p55
    %p57 = scmp.ne.s32.totalorder %s46, %s49
    %p58 = scmp.eq.s32.totalorder %s15, 1
    %p59 = por %p57, %p58
    %p60 = scmp.ne.s32.totalorder %s49, %s50
    %p61 = scmp.eq.s32.totalorder %s15, 0
    %p62 = por %p60, %p61
    %p63 = scmp.ne.s32.totalorder %s49, %s50
    %p64 = scmp.eq.s32.totalorder %s16, 1
    %p65 = por %p63, %p64
    %p67 = scmp.ne.s32.totalorder %s50, %s66
    %p68 = scmp.eq.s32.totalorder %s16, 0
    %p69 = por %p67, %p68
    %s71 = sadd.s32 %s70, 1
    %p74 = scmp.eq.s32.totalorder %s10, 1
    %p75 = scmp.ne.s32.totalorder %s70, %s72
    %p76 = scmp.eq.s32.totalorder %s10, 0
    %p77 = por %p75, %p76
    %p78 = scmp.ne.s32.totalorder %s70, %s72
    %p79 = scmp.eq.s32.totalorder %s15, 1
    %p80 = por %p78, %p79
    %p81 = scmp.ne.s32.totalorder %s72, %s73
    %p82 = scmp.eq.s32.totalorder %s15, 0
    %p83 = por %p81, %p82
    %p84 = scmp.ne.s32.totalorder %s72, %s73
    %p85 = scmp.eq.s32.totalorder %s16, 1
    %p86 = por %p84, %p85
    %p88 = scmp.ne.s32.totalorder %s73, %s87
    %p89 = scmp.eq.s32.totalorder %s16, 0
    %p90 = por %p88, %p89
    %s92 = sadd.s32 %s91, 1
    %p95 = scmp.eq.s32.totalorder %s10, 1
    %p96 = scmp.ne.s32.totalorder %s91, %s93
    %p97 = scmp.eq.s32.totalorder %s10, 0
    %p98 = por %p96, %p97
    %p99 = scmp.ne.s32.totalorder %s91, %s93
    %p100 = scmp.eq.s32.totalorder %s15, 1
    %p101 = por %p99, %p100
    %p102 = scmp.ne.s32.totalorder %s93, %s94
    %p103 = scmp.eq.s32.totalorder %s15, 0
    %p104 = por %p102, %p103
    %p105 = scmp.ne.s32.totalorder %s93, %s94
    %p106 = scmp.eq.s32.totalorder %s16, 1
    %p107 = por %p105, %p106
    %p109 = scmp.ne.s32.totalorder %s94, %s108
    %p110 = scmp.eq.s32.totalorder %s16, 0
    %p111 = por %p109, %p110
    %s112 = ssub.s32 %s10, %s17
    %p113 = scmp.eq.s32.totalorder %s112, 0
    %s115 = sadd.s32 %s114, 1
    %s116 = scalar_select %p113, %s114, %s115
    %p119 = pneg %p113
    %p120 = scmp.eq.s32.totalorder %s10, 1
    %p121 = por %p119, %p120
    %p122 = scmp.ne.s32.totalorder %s114, %s117
    %p123 = scmp.eq.s32.totalorder %s10, 0
    %p124 = por %p122, %p123
    %p125 = scmp.ne.s32.totalorder %s114, %s117
    %p126 = scmp.eq.s32.totalorder %s15, 1
    %p127 = por %p125, %p126
    %p128 = scmp.ne.s32.totalorder %s117, %s118
    %p129 = scmp.eq.s32.totalorder %s15, 0
    %p130 = por %p128, %p129
    %p131 = scmp.ne.s32.totalorder %s117, %s118
    %p132 = scmp.eq.s32.totalorder %s16, 1
    %p133 = por %p131, %p132
    %p135 = scmp.ne.s32.totalorder %s118, %s134
    %p136 = scmp.eq.s32.totalorder %s16, 0
    %p137 = por %p135, %p136
    %p138 = scmp.le.s32.totalorder 1, %s10
    %p139 = scmp.lt.s32.totalorder %s10, 3
    %p140 = pnand %p138, %p139
    %p141 = pneg %p140
    // Predicated region
    $region9: #{scorenet_forward.12} parent=5 // pred_check
      _
    $region10: #{scorenet_forward.12} parent=5 // pred_check_branch
      %143 = sbr.rel (%p140) target = $region12
    $region11: #{scorenet_forward.12} parent=5 // pred_region
      %s144 = ssub.s32 %s10, 1
      // Predicated region
      $region13: #{scorenet_forward.12} parent=11 // pred_check
        %p145 = pneg %p83
      $region14: #{scorenet_forward.12} parent=11 // pred_check_branch
        %147 = sbr.rel (%p145) target = $region16
      $region15: #{scorenet_forward.12} parent=11 // pred_region
        _
      $region16: #{scorenet_forward.12} parent=11 // pred_fallthru
        _
      // Predicated region
      $region17: #{scorenet_forward.12} parent=11 // pred_check
        %p148 = pneg %p104
      $region18: #{scorenet_forward.12} parent=11 // pred_check_branch
        %150 = sbr.rel (%p148) target = $region20
      $region19: #{scorenet_forward.12} parent=11 // pred_region
        _
      $region20: #{scorenet_forward.12} parent=11 // pred_fallthru
        _
    $region12: #{scorenet_forward.12} parent=5 // pred_fallthru
      _
    %p151 = scmp.lt.s32.totalorder %s10, 2
    // Predicated region
    $region21: #{scorenet_forward.12} parent=5 // pred_check
      %p152 = pneg %p151
    $region22: #{scorenet_forward.12} parent=5 // pred_check_branch
      %154 = sbr.rel (%p152) target = $region24
    $region23: #{scorenet_forward.12} parent=5 // pred_region
      // Predicated region
      $region25: #{scorenet_forward.12} parent=23 // pred_check
        %p155 = pneg %p30
      $region26: #{scorenet_forward.12} parent=23 // pred_check_branch
        %157 = sbr.rel (%p155) target = $region28
      $region27: #{scorenet_forward.12} parent=23 // pred_region
        %p158 = scmp.lt.s32.totalorder %s10, 1
        %s159 = scalar_select %p158, %s10, 1
        %s160 = smul.addr %s159, 4
        %s161 = smul.addr %s160, 8
        %s162 = scalar_lea.vmem %s0, %s161
      $region28: #{scorenet_forward.12} parent=23 // pred_fallthru
        _
      // Predicated region
      $region29: #{scorenet_forward.12} parent=23 // pred_check
        %p163 = pneg %p56
      $region30: #{scorenet_forward.12} parent=23 // pred_check_branch
        %165 = sbr.rel (%p163) target = $region32
      $region31: #{scorenet_forward.12} parent=23 // pred_region
        %p166 = scmp.lt.s32.totalorder %s10, 1
        %s167 = scalar_select %p166, %s10, 1
        %s168 = smul.addr %s167, 4
        %s169 = smul.addr %s168, 8
        %s170 = scalar_lea.vmem %s1, %s169
      $region32: #{scorenet_forward.12} parent=23 // pred_fallthru
        _
    $region24: #{scorenet_forward.12} parent=5 // pred_fallthru
      _
    %p171 = scmp.le.s32.totalorder 1, %s10
    %p172 = scmp.lt.s32.totalorder %s10, 3
    %p173 = pnand %p171, %p172
    %p174 = pneg %p173
    // Predicated region
    $region33: #{scorenet_forward.12} parent=5 // pred_check
      _
    $region34: #{scorenet_forward.12} parent=5 // pred_check_branch
      %176 = sbr.rel (%p173) target = $region36
    $region35: #{scorenet_forward.12} parent=5 // pred_region
      %s177 = ssub.s32 %s10, 1
      %p178 = scmp.lt.s32.totalorder %s15, 1
      %s179 = scalar_select %p178, %s15, 1
      %s180 = smul.addr %s179, 4
      %s181 = smul.addr %s180, 8
      %s182 = scalar_lea.vmem %s0, %s181
      %p183 = pneg %p36
      %p184 = pneg %p33
      %p185 = scmp.lt.s32.totalorder %s15, 1
      %s186 = scalar_select %p185, %s15, 1
      %s187 = smul.addr %s186, 4
      %s188 = smul.addr %s187, 8
      %s189 = scalar_lea.vmem %s1, %s188
      %p190 = pneg %p62
      %p191 = pneg %p59
      %p192 = pneg %p83
      %p193 = pneg %p80
      %p194 = pneg %p104
      %p195 = pneg %p101
      %p196 = pneg %p130
      %p197 = pneg %p127
      %p198 = scmp.lt.s32.totalorder %s15, 1
      %s199 = scalar_select %p198, %s15, 1
      %s200 = smul.addr %s199, 4
      %s201 = smul.addr %s200, 8
      %s202 = scalar_lea.vmem %s4, %s201
      %p203 = scmp.lt.s32.totalorder %s15, 1
      %s204 = scalar_select %p203, %s15, 1
      %s205 = smul.addr %s204, 4
      %s206 = smul.addr %s205, 8
      %s207 = scalar_lea.vmem %s0, %s206
      %p208 = scmp.lt.s32.totalorder %s15, 1
      %s209 = scalar_select %p208, %s15, 1
      %s210 = smul.addr %s209, 4
      %s211 = smul.addr %s210, 8
      %s212 = scalar_lea.vmem %s1, %s211
      %p213 = scmp.lt.s32.totalorder %s15, 1
      %s214 = scalar_select %p213, %s15, 1
      %s215 = smul.addr %s214, 4
      %s216 = smul.addr %s215, 8
      %s217 = scalar_lea.vmem %s4, %s216
      %v218 = vld [vmem:[%s207] sm:$0xff]
      %v219 = vld [vmem:[%s207 + $0x8] sm:$0xff]
      %v220 = vld [vmem:[%s207 + $0x10] sm:$0xff]
      %v221 = vld [vmem:[%s207 + $0x18] sm:$0xff]
      %v222 = vld [vmem:[%s212] sm:$0xff]
      %v223 = vld [vmem:[%s212 + $0x8] sm:$0xff]
      %v224 = vld [vmem:[%s212 + $0x10] sm:$0xff]
      %v225 = vld [vmem:[%s212 + $0x18] sm:$0xff]
      %v226 = vadd.f32 %v218, %v222
      %v227 = vadd.f32 %v219, %v223
      %v228 = vadd.f32 %v220, %v224
      %v229 = vadd.f32 %v221, %v225
      %vm230 = vcmask 261120
      %v231 = vsel %vm230, %v226, 0.0
      %232 = vadd.xlane.f32.xlu0 %v231
      %v233 = vpop.xlane.xlu0 %232
      %v234 = vsel %vm230, %v227, 0.0
      %235 = vadd.xlane.f32.xlu0 %v234
      %v236 = vpop.xlane.xlu0 %235
      %v237 = vsel %vm230, %v228, 0.0
      %238 = vadd.xlane.f32.xlu0 %v237
      %v239 = vpop.xlane.xlu0 %238
      %v240 = vsel %vm230, %v229, 0.0
      %241 = vadd.xlane.f32.xlu0 %v240
      %v242 = vpop.xlane.xlu0 %241
      %v243 = vrcp.pop 32.0
      %v244 = vmul.f32 %v233, %v243
      %v245 = vmul.f32 %v236, %v243
      %v246 = vmul.f32 %v239, %v243
      %v247 = vmul.f32 %v242, %v243
      %v248 = vsub.f32 %v226, %v244
      %v249 = vsub.f32 %v227, %v245
      %v250 = vsub.f32 %v228, %v246
      %v251 = vsub.f32 %v229, %v247
      %v252 = vmul.f32 %v248, %v248
      %v253 = vmul.f32 %v249, %v249
      %v254 = vmul.f32 %v250, %v250
      %v255 = vmul.f32 %v251, %v251
      %v256 = vsel %vm230, %v252, 0.0
      %257 = vadd.xlane.f32.xlu0 %v256
      %v258 = vpop.xlane.xlu0 %257
      %v259 = vsel %vm230, %v253, 0.0
      %260 = vadd.xlane.f32.xlu0 %v259
      %v261 = vpop.xlane.xlu0 %260
      %v262 = vsel %vm230, %v254, 0.0
      %263 = vadd.xlane.f32.xlu0 %v262
      %v264 = vpop.xlane.xlu0 %263
      %v265 = vsel %vm230, %v255, 0.0
      %266 = vadd.xlane.f32.xlu0 %v265
      %v267 = vpop.xlane.xlu0 %266
      %v268 = vmul.f32 %v258, %v243
      %v269 = vmul.f32 %v261, %v243
      %v270 = vmul.f32 %v264, %v243
      %v271 = vmul.f32 %v267, %v243
      %v272 = vadd.f32 %v268, 1e-05
      %v273 = vadd.f32 %v269, 1e-05
      %v274 = vadd.f32 %v270, 1e-05
      %v275 = vadd.f32 %v271, 1e-05
      %v276 = vrsqrt.pop %v272
      %v277 = vrsqrt.pop %v273
      %v278 = vrsqrt.pop %v274
      %v279 = vrsqrt.pop %v275
      %v280 = vmul.f32 %v248, %v276
      %v281 = vmul.f32 %v249, %v277
      %v282 = vmul.f32 %v250, %v278
      %v283 = vmul.f32 %v251, %v279
      %v284 = vld [vmem:[%s2] sm:$0xff]
      %v285 = vld [vmem:[%s2 + $0x8] sm:$0xff]
      %v286 = vld [vmem:[%s2 + $0x10] sm:$0xff]
      %v287 = vld [vmem:[%s2 + $0x18] sm:$0xff]
      %v288 = vmul.f32 %v280, %v284
      %v289 = vmul.f32 %v281, %v285
      %v290 = vmul.f32 %v282, %v286
      %v291 = vmul.f32 %v283, %v287
      %v292 = vld [vmem:[%s3] sm:$0xff]
      %v293 = vld [vmem:[%s3 + $0x8] sm:$0xff]
      %v294 = vld [vmem:[%s3 + $0x10] sm:$0xff]
      %v295 = vld [vmem:[%s3 + $0x18] sm:$0xff]
      %v296 = vadd.f32 %v288, %v292
      %v297 = vadd.f32 %v289, %v293
      %v298 = vadd.f32 %v290, %v294
      %v299 = vadd.f32 %v291, %v295
      %v300 = vsub.f32 0.0, %v296
      %v301 = vsub.f32 0.0, %v297
      %v302 = vsub.f32 0.0, %v298
      %v303 = vsub.f32 0.0, %v299
      %v304 = vmul.f32 %v300, 1.442695
      %v305 = vpow.pop %v304
      %v306 = vmul.f32 %v301, 1.442695
      %v307 = vpow.pop %v306
      %v308 = vmul.f32 %v302, 1.442695
      %v309 = vpow.pop %v308
      %v310 = vmul.f32 %v303, 1.442695
      %v311 = vpow.pop %v310
      %v312 = vadd.f32 %v305, 1.0
      %v313 = vadd.f32 %v307, 1.0
      %v314 = vadd.f32 %v309, 1.0
      %v315 = vadd.f32 %v311, 1.0
      %v316 = vrcp.pop %v312
      %v317 = vmul.f32 1.0, %v316
      %v318 = vrcp.pop %v313
      %v319 = vmul.f32 1.0, %v318
      %v320 = vrcp.pop %v314
      %v321 = vmul.f32 1.0, %v320
      %v322 = vrcp.pop %v315
      %v323 = vmul.f32 1.0, %v322
      %v324 = vmul.f32 %v296, %v317
      %v325 = vmul.f32 %v297, %v319
      %v326 = vmul.f32 %v298, %v321
      %v327 = vmul.f32 %v299, %v323
      %328 = vst.msk [vmem:[%s217] sm:$0xff] %vm230, %v324
      %329 = vst.msk [vmem:[%s217 + $0x8] sm:$0xff] %vm230, %v325
      %330 = vst.msk [vmem:[%s217 + $0x10] sm:$0xff] %vm230, %v326
      %331 = vst.msk [vmem:[%s217 + $0x18] sm:$0xff] %vm230, %v327
      %p332 = scmp.lt.s32.totalorder %s15, 1
      %s333 = scalar_select %p332, %s15, 1
      %s334 = smul.addr %s333, 4
      %s335 = smul.addr %s334, 8
      %s336 = scalar_lea.vmem %s4, %s335
      // Predicated region
      $region37: #{scorenet_forward.12} parent=35 // pred_check
        %p337 = pneg %p127
      $region38: #{scorenet_forward.12} parent=35 // pred_check_branch
        %339 = sbr.rel (%p337) target = $region40
      $region39: #{scorenet_forward.12} parent=35 // pred_region
        _
      $region40: #{scorenet_forward.12} parent=35 // pred_fallthru
        _
    $region36: #{scorenet_forward.12} parent=5 // pred_fallthru
      _
    %p340 = scmp.le.s32.totalorder 2, %s10
    // Predicated region
    $region41: #{scorenet_forward.12} parent=5 // pred_check
      %p341 = pneg %p340
    $region42: #{scorenet_forward.12} parent=5 // pred_check_branch
      %343 = sbr.rel (%p341) target = $region44
    $region43: #{scorenet_forward.12} parent=5 // pred_region
      %s344 = ssub.s32 %s10, 2
      // Predicated region
      $region45: #{scorenet_forward.12} parent=43 // pred_check
        %p345 = pneg %p133
      $region46: #{scorenet_forward.12} parent=43 // pred_check_branch
        %347 = sbr.rel (%p345) target = $region48
      $region47: #{scorenet_forward.12} parent=43 // pred_region
        %p348 = scmp.lt.s32.totalorder %s16, 1
        %s349 = scalar_select %p348, %s16, 1
        %s350 = smul.addr %s349, 4
        %s351 = smul.addr %s350, 8
        %s352 = scalar_lea.vmem %s4, %s351
      $region48: #{scorenet_forward.12} parent=43 // pred_fallthru
        _
    $region44: #{scorenet_forward.12} parent=5 // pred_fallthru
      _
  $region6: #{scorenet_forward.12} parent=0 // loop_footer
    %s14 = sadd.s32 1, %s10
  $region7: #{scorenet_forward.12} parent=0 // loop_footer_branch
    %9 = sbr.rel target = $region3
  $region8: #{scorenet_forward.12} parent=0 // loop_exit
    _

// kernel: scorenet_forward.15
$region0: #{scorenet_forward.15}
  #allocation0 [shape = 'u32[]', space=smem, size = 0x4, offset = 0x4, fixed_abs, tag = 'smem constant byte address 0x4 - core index']
  #allocation1 [shape = 'u32[144,128]{1,0:T(1,128)}', space=vmem, size = 0x12000, scoped, tag = 'internal scratch']
  %s0 = inlined_call_operand.vmem [shape: f32[2,32,256], index: 0, kind: input, shape index: {}]
  %s1 = inlined_call_operand.vmem [shape: f32[2,32,256], index: 1, kind: input, shape index: {}]
  %s2 = inlined_call_operand.vmem [shape: f32[1,32,256], index: 2, kind: input, shape index: {}]
  %s3 = inlined_call_operand.vmem [shape: f32[1,32,256], index: 3, kind: input, shape index: {}]
  %s4 = inlined_call_operand.vmem [shape: f32[2,32,256], index: 4, kind: output, shape index: {}]
  %s5 = sld [smem:[#allocation0]]
  $region49: #{scorenet_forward.15} parent=0
    _
  %s7 = ssub.s32 1, %s5
  %s8 = scalar_select 0, %s7, %s5
  loop: start=0, step=1, limit=4
  $region2: #{scorenet_forward.15} parent=0 // loop_pre_header
    _
  $region3: #{scorenet_forward.15} parent=0 // loop_header
    %s10 = sphi 0, %s14
    %p11 = scmp.ge.s32.totalorder %s10, 4
    %s20 = sphi 0, %s22
    %s23 = sphi 0, %s20
    %s24 = sphi 0, %s23
    %s40 = sphi 0, %s24
    %s46 = sphi 0, %s48
    %s49 = sphi 0, %s46
    %s50 = sphi 0, %s49
    %s66 = sphi 0, %s50
    %s70 = sphi 0, %s70
    %s72 = sphi 0, %s70
    %s73 = sphi 0, %s72
    %s87 = sphi 0, %s73
    %s91 = sphi 0, %s91
    %s93 = sphi 0, %s91
    %s94 = sphi 0, %s93
    %s108 = sphi 0, %s94
    %s114 = sphi 0, %s116
    %s117 = sphi 0, %s114
    %s118 = sphi 0, %s117
    %s134 = sphi 0, %s118
  $region4: #{scorenet_forward.15} parent=0 // loop_header_branch
    %13 = sbr.rel (%p11) target = $region8
  $region5: #{scorenet_forward.15} parent=0 // loop_body
    %s15 = ssub.s32 %s10, 1
    %s16 = ssub.s32 %s10, 2
    %s17 = sadd.s32 %s10, 1
    %s18 = ssub.s32 %s10, %s17
    %p19 = scmp.eq.s32.totalorder %s18, 0
    %s21 = sadd.s32 %s20, 1
    %s22 = scalar_select %p19, %s20, %s21
    %p25 = pneg %p19
    %p26 = scmp.eq.s32.totalorder %s10, 1
    %p27 = por %p25, %p26
    %p28 = scmp.ne.s32.totalorder %s20, %s23
    %p29 = scmp.eq.s32.totalorder %s10, 0
    %p30 = por %p28, %p29
    %p31 = scmp.ne.s32.totalorder %s20, %s23
    %p32 = scmp.eq.s32.totalorder %s15, 1
    %p33 = por %p31, %p32
    %p34 = scmp.ne.s32.totalorder %s23, %s24
    %p35 = scmp.eq.s32.totalorder %s15, 0
    %p36 = por %p34, %p35
    %p37 = scmp.ne.s32.totalorder %s23, %s24
    %p38 = scmp.eq.s32.totalorder %s16, 1
    %p39 = por %p37, %p38
    %p41 = scmp.ne.s32.totalorder %s24, %s40
    %p42 = scmp.eq.s32.totalorder %s16, 0
    %p43 = por %p41, %p42
    %s44 = ssub.s32 %s10, %s17
    %p45 = scmp.eq.s32.totalorder %s44, 0
    %s47 = sadd.s32 %s46, 1
    %s48 = scalar_select %p45, %s46, %s47
    %p51 = pneg %p45
    %p52 = scmp.eq.s32.totalorder %s10, 1
    %p53 = por %p51, %p52
    %p54 = scmp.ne.s32.totalorder %s46, %s49
    %p55 = scmp.eq.s32.totalorder %s10, 0
    %p56 = por %p54, %p55
    %p57 = scmp.ne.s32.totalorder %s46, %s49
    %p58 = scmp.eq.s32.totalorder %s15, 1
    %p59 = por %p57, %p58
    %p60 = scmp.ne.s32.totalorder %s49, %s50
    %p61 = scmp.eq.s32.totalorder %s15, 0
    %p62 = por %p60, %p61
    %p63 = scmp.ne.s32.totalorder %s49, %s50
    %p64 = scmp.eq.s32.totalorder %s16, 1
    %p65 = por %p63, %p64
    %p67 = scmp.ne.s32.totalorder %s50, %s66
    %p68 = scmp.eq.s32.totalorder %s16, 0
    %p69 = por %p67, %p68
    %s71 = sadd.s32 %s70, 1
    %p74 = scmp.eq.s32.totalorder %s10, 1
    %p75 = scmp.ne.s32.totalorder %s70, %s72
    %p76 = scmp.eq.s32.totalorder %s10, 0
    %p77 = por %p75, %p76
    %p78 = scmp.ne.s32.totalorder %s70, %s72
    %p79 = scmp.eq.s32.totalorder %s15, 1
    %p80 = por %p78, %p79
    %p81 = scmp.ne.s32.totalorder %s72, %s73
    %p82 = scmp.eq.s32.totalorder %s15, 0
    %p83 = por %p81, %p82
    %p84 = scmp.ne.s32.totalorder %s72, %s73
    %p85 = scmp.eq.s32.totalorder %s16, 1
    %p86 = por %p84, %p85
    %p88 = scmp.ne.s32.totalorder %s73, %s87
    %p89 = scmp.eq.s32.totalorder %s16, 0
    %p90 = por %p88, %p89
    %s92 = sadd.s32 %s91, 1
    %p95 = scmp.eq.s32.totalorder %s10, 1
    %p96 = scmp.ne.s32.totalorder %s91, %s93
    %p97 = scmp.eq.s32.totalorder %s10, 0
    %p98 = por %p96, %p97
    %p99 = scmp.ne.s32.totalorder %s91, %s93
    %p100 = scmp.eq.s32.totalorder %s15, 1
    %p101 = por %p99, %p100
    %p102 = scmp.ne.s32.totalorder %s93, %s94
    %p103 = scmp.eq.s32.totalorder %s15, 0
    %p104 = por %p102, %p103
    %p105 = scmp.ne.s32.totalorder %s93, %s94
    %p106 = scmp.eq.s32.totalorder %s16, 1
    %p107 = por %p105, %p106
    %p109 = scmp.ne.s32.totalorder %s94, %s108
    %p110 = scmp.eq.s32.totalorder %s16, 0
    %p111 = por %p109, %p110
    %s112 = ssub.s32 %s10, %s17
    %p113 = scmp.eq.s32.totalorder %s112, 0
    %s115 = sadd.s32 %s114, 1
    %s116 = scalar_select %p113, %s114, %s115
    %p119 = pneg %p113
    %p120 = scmp.eq.s32.totalorder %s10, 1
    %p121 = por %p119, %p120
    %p122 = scmp.ne.s32.totalorder %s114, %s117
    %p123 = scmp.eq.s32.totalorder %s10, 0
    %p124 = por %p122, %p123
    %p125 = scmp.ne.s32.totalorder %s114, %s117
    %p126 = scmp.eq.s32.totalorder %s15, 1
    %p127 = por %p125, %p126
    %p128 = scmp.ne.s32.totalorder %s117, %s118
    %p129 = scmp.eq.s32.totalorder %s15, 0
    %p130 = por %p128, %p129
    %p131 = scmp.ne.s32.totalorder %s117, %s118
    %p132 = scmp.eq.s32.totalorder %s16, 1
    %p133 = por %p131, %p132
    %p135 = scmp.ne.s32.totalorder %s118, %s134
    %p136 = scmp.eq.s32.totalorder %s16, 0
    %p137 = por %p135, %p136
    %p138 = scmp.le.s32.totalorder 1, %s10
    %p139 = scmp.lt.s32.totalorder %s10, 3
    %p140 = pnand %p138, %p139
    %p141 = pneg %p140
    // Predicated region
    $region9: #{scorenet_forward.15} parent=5 // pred_check
      _
    $region10: #{scorenet_forward.15} parent=5 // pred_check_branch
      %143 = sbr.rel (%p140) target = $region12
    $region11: #{scorenet_forward.15} parent=5 // pred_region
      %s144 = ssub.s32 %s10, 1
      // Predicated region
      $region13: #{scorenet_forward.15} parent=11 // pred_check
        %p145 = pneg %p83
      $region14: #{scorenet_forward.15} parent=11 // pred_check_branch
        %147 = sbr.rel (%p145) target = $region16
      $region15: #{scorenet_forward.15} parent=11 // pred_region
        _
      $region16: #{scorenet_forward.15} parent=11 // pred_fallthru
        _
      // Predicated region
      $region17: #{scorenet_forward.15} parent=11 // pred_check
        %p148 = pneg %p104
      $region18: #{scorenet_forward.15} parent=11 // pred_check_branch
        %150 = sbr.rel (%p148) target = $region20
      $region19: #{scorenet_forward.15} parent=11 // pred_region
        _
      $region20: #{scorenet_forward.15} parent=11 // pred_fallthru
        _
    $region12: #{scorenet_forward.15} parent=5 // pred_fallthru
      _
    %p151 = scmp.lt.s32.totalorder %s10, 2
    // Predicated region
    $region21: #{scorenet_forward.15} parent=5 // pred_check
      %p152 = pneg %p151
    $region22: #{scorenet_forward.15} parent=5 // pred_check_branch
      %154 = sbr.rel (%p152) target = $region24
    $region23: #{scorenet_forward.15} parent=5 // pred_region
      // Predicated region
      $region25: #{scorenet_forward.15} parent=23 // pred_check
        %p155 = pneg %p30
      $region26: #{scorenet_forward.15} parent=23 // pred_check_branch
        %157 = sbr.rel (%p155) target = $region28
      $region27: #{scorenet_forward.15} parent=23 // pred_region
        %p158 = scmp.lt.s32.totalorder %s10, 1
        %s159 = scalar_select %p158, %s10, 1
        %s160 = smul.addr %s159, 8
        %s161 = smul.addr %s160, 8
        %s162 = scalar_lea.vmem %s0, %s161
      $region28: #{scorenet_forward.15} parent=23 // pred_fallthru
        _
      // Predicated region
      $region29: #{scorenet_forward.15} parent=23 // pred_check
        %p163 = pneg %p56
      $region30: #{scorenet_forward.15} parent=23 // pred_check_branch
        %165 = sbr.rel (%p163) target = $region32
      $region31: #{scorenet_forward.15} parent=23 // pred_region
        %p166 = scmp.lt.s32.totalorder %s10, 1
        %s167 = scalar_select %p166, %s10, 1
        %s168 = smul.addr %s167, 8
        %s169 = smul.addr %s168, 8
        %s170 = scalar_lea.vmem %s1, %s169
      $region32: #{scorenet_forward.15} parent=23 // pred_fallthru
        _
    $region24: #{scorenet_forward.15} parent=5 // pred_fallthru
      _
    %p171 = scmp.le.s32.totalorder 1, %s10
    %p172 = scmp.lt.s32.totalorder %s10, 3
    %p173 = pnand %p171, %p172
    %p174 = pneg %p173
    // Predicated region
    $region33: #{scorenet_forward.15} parent=5 // pred_check
      _
    $region34: #{scorenet_forward.15} parent=5 // pred_check_branch
      %176 = sbr.rel (%p173) target = $region36
    $region35: #{scorenet_forward.15} parent=5 // pred_region
      %s177 = ssub.s32 %s10, 1
      %p178 = scmp.lt.s32.totalorder %s15, 1
      %s179 = scalar_select %p178, %s15, 1
      %s180 = smul.addr %s179, 8
      %s181 = smul.addr %s180, 8
      %s182 = scalar_lea.vmem %s0, %s181
      %p183 = pneg %p36
      %p184 = pneg %p33
      %p185 = scmp.lt.s32.totalorder %s15, 1
      %s186 = scalar_select %p185, %s15, 1
      %s187 = smul.addr %s186, 8
      %s188 = smul.addr %s187, 8
      %s189 = scalar_lea.vmem %s1, %s188
      %p190 = pneg %p62
      %p191 = pneg %p59
      %p192 = pneg %p83
      %p193 = pneg %p80
      %p194 = pneg %p104
      %p195 = pneg %p101
      %p196 = pneg %p130
      %p197 = pneg %p127
      %p198 = scmp.lt.s32.totalorder %s15, 1
      %s199 = scalar_select %p198, %s15, 1
      %s200 = smul.addr %s199, 8
      %s201 = smul.addr %s200, 8
      %s202 = scalar_lea.vmem %s4, %s201
      %p203 = scmp.lt.s32.totalorder %s15, 1
      %s204 = scalar_select %p203, %s15, 1
      %s205 = smul.addr %s204, 8
      %s206 = smul.addr %s205, 8
      %s207 = scalar_lea.vmem %s0, %s206
      %p208 = scmp.lt.s32.totalorder %s15, 1
      %s209 = scalar_select %p208, %s15, 1
      %s210 = smul.addr %s209, 8
      %s211 = smul.addr %s210, 8
      %s212 = scalar_lea.vmem %s1, %s211
      %p213 = scmp.lt.s32.totalorder %s15, 1
      %s214 = scalar_select %p213, %s15, 1
      %s215 = smul.addr %s214, 8
      %s216 = smul.addr %s215, 8
      %s217 = scalar_lea.vmem %s4, %s216
      %v218 = vld [vmem:[%s207] sm:$0xff]
      %v219 = vld [vmem:[%s207 + $0x8] sm:$0xff]
      %v220 = vld [vmem:[%s207 + $0x10] sm:$0xff]
      %v221 = vld [vmem:[%s207 + $0x18] sm:$0xff]
      %v222 = vld [vmem:[%s207 + $0x20] sm:$0xff]
      %v223 = vld [vmem:[%s207 + $0x28] sm:$0xff]
      %v224 = vld [vmem:[%s207 + $0x30] sm:$0xff]
      %v225 = vld [vmem:[%s207 + $0x38] sm:$0xff]
      %v226 = vld [vmem:[%s212] sm:$0xff]
      %v227 = vld [vmem:[%s212 + $0x8] sm:$0xff]
      %v228 = vld [vmem:[%s212 + $0x10] sm:$0xff]
      %v229 = vld [vmem:[%s212 + $0x18] sm:$0xff]
      %v230 = vld [vmem:[%s212 + $0x20] sm:$0xff]
      %v231 = vld [vmem:[%s212 + $0x28] sm:$0xff]
      %v232 = vld [vmem:[%s212 + $0x30] sm:$0xff]
      %v233 = vld [vmem:[%s212 + $0x38] sm:$0xff]
      %v234 = vadd.f32 %v218, %v226
      %v235 = vadd.f32 %v219, %v227
      %v236 = vadd.f32 %v220, %v228
      %v237 = vadd.f32 %v221, %v229
      %v238 = vadd.f32 %v222, %v230
      %v239 = vadd.f32 %v223, %v231
      %v240 = vadd.f32 %v224, %v232
      %v241 = vadd.f32 %v225, %v233
      %v242 = vadd.f32 %v234, %v235
      %243 = vadd.xlane.f32.xlu0 %v242
      %v244 = vpop.xlane.xlu0 %243
      %v245 = vadd.f32 %v236, %v237
      %246 = vadd.xlane.f32.xlu0 %v245
      %v247 = vpop.xlane.xlu0 %246
      %v248 = vadd.f32 %v238, %v239
      %249 = vadd.xlane.f32.xlu0 %v248
      %v250 = vpop.xlane.xlu0 %249
      %v251 = vadd.f32 %v240, %v241
      %252 = vadd.xlane.f32.xlu0 %v251
      %v253 = vpop.xlane.xlu0 %252
      %v254 = vrcp.pop 256.0
      %v255 = vmul.f32 %v244, %v254
      %v256 = vmul.f32 %v247, %v254
      %v257 = vmul.f32 %v250, %v254
      %v258 = vmul.f32 %v253, %v254
      %v259 = vsub.f32 %v234, %v255
      %v260 = vsub.f32 %v235, %v255
      %v261 = vsub.f32 %v236, %v256
      %v262 = vsub.f32 %v237, %v256
      %v263 = vsub.f32 %v238, %v257
      %v264 = vsub.f32 %v239, %v257
      %v265 = vsub.f32 %v240, %v258
      %v266 = vsub.f32 %v241, %v258
      %v267 = vmul.f32 %v259, %v259
      %v268 = vmul.f32 %v260, %v260
      %v269 = vmul.f32 %v261, %v261
      %v270 = vmul.f32 %v262, %v262
      %v271 = vmul.f32 %v263, %v263
      %v272 = vmul.f32 %v264, %v264
      %v273 = vmul.f32 %v265, %v265
      %v274 = vmul.f32 %v266, %v266
      %v275 = vadd.f32 %v267, %v268
      %276 = vadd.xlane.f32.xlu0 %v275
      %v277 = vpop.xlane.xlu0 %276
      %v278 = vadd.f32 %v269, %v270
      %279 = vadd.xlane.f32.xlu0 %v278
      %v280 = vpop.xlane.xlu0 %279
      %v281 = vadd.f32 %v271, %v272
      %282 = vadd.xlane.f32.xlu0 %v281
      %v283 = vpop.xlane.xlu0 %282
      %v284 = vadd.f32 %v273, %v274
      %285 = vadd.xlane.f32.xlu0 %v284
      %v286 = vpop.xlane.xlu0 %285
      %v287 = vmul.f32 %v277, %v254
      %v288 = vmul.f32 %v280, %v254
      %v289 = vmul.f32 %v283, %v254
      %v290 = vmul.f32 %v286, %v254
      %v291 = vadd.f32 %v287, 1e-05
      %v292 = vadd.f32 %v288, 1e-05
      %v293 = vadd.f32 %v289, 1e-05
      %v294 = vadd.f32 %v290, 1e-05
      %v295 = vrsqrt.pop %v291
      %v296 = vrsqrt.pop %v292
      %v297 = vrsqrt.pop %v293
      %v298 = vrsqrt.pop %v294
      %v299 = vmul.f32 %v259, %v295
      %v300 = vmul.f32 %v260, %v295
      %v301 = vmul.f32 %v261, %v296
      %v302 = vmul.f32 %v262, %v296
      %v303 = vmul.f32 %v263, %v297
      %v304 = vmul.f32 %v264, %v297
      %v305 = vmul.f32 %v265, %v298
      %v306 = vmul.f32 %v266, %v298
      %v307 = vld [vmem:[%s2] sm:$0xff]
      %v308 = vld [vmem:[%s2 + $0x8] sm:$0xff]
      %v309 = vld [vmem:[%s2 + $0x10] sm:$0xff]
      %v310 = vld [vmem:[%s2 + $0x18] sm:$0xff]
      %v311 = vld [vmem:[%s2 + $0x20] sm:$0xff]
      %v312 = vld [vmem:[%s2 + $0x28] sm:$0xff]
      %v313 = vld [vmem:[%s2 + $0x30] sm:$0xff]
      %v314 = vld [vmem:[%s2 + $0x38] sm:$0xff]
      %v315 = vmul.f32 %v299, %v307
      %v316 = vmul.f32 %v300, %v308
      %v317 = vmul.f32 %v301, %v309
      %v318 = vmul.f32 %v302, %v310
      %v319 = vmul.f32 %v303, %v311
      %v320 = vmul.f32 %v304, %v312
      %v321 = vmul.f32 %v305, %v313
      %v322 = vmul.f32 %v306, %v314
      %v323 = vld [vmem:[%s3] sm:$0xff]
      %v324 = vld [vmem:[%s3 + $0x8] sm:$0xff]
      %v325 = vld [vmem:[%s3 + $0x10] sm:$0xff]
      %v326 = vld [vmem:[%s3 + $0x18] sm:$0xff]
      %v327 = vld [vmem:[%s3 + $0x20] sm:$0xff]
      %v328 = vld [vmem:[%s3 + $0x28] sm:$0xff]
      %v329 = vld [vmem:[%s3 + $0x30] sm:$0xff]
      %v330 = vld [vmem:[%s3 + $0x38] sm:$0xff]
      %v331 = vadd.f32 %v315, %v323
      %v332 = vadd.f32 %v316, %v324
      %v333 = vadd.f32 %v317, %v325
      %v334 = vadd.f32 %v318, %v326
      %v335 = vadd.f32 %v319, %v327
      %v336 = vadd.f32 %v320, %v328
      %v337 = vadd.f32 %v321, %v329
      %v338 = vadd.f32 %v322, %v330
      %v339 = vsub.f32 0.0, %v331
      %v340 = vsub.f32 0.0, %v332
      %v341 = vsub.f32 0.0, %v333
      %v342 = vsub.f32 0.0, %v334
      %v343 = vsub.f32 0.0, %v335
      %v344 = vsub.f32 0.0, %v336
      %v345 = vsub.f32 0.0, %v337
      %v346 = vsub.f32 0.0, %v338
      %v347 = vmul.f32 %v339, 1.442695
      %v348 = vpow.pop %v347
      %v349 = vmul.f32 %v340, 1.442695
      %v350 = vpow.pop %v349
      %v351 = vmul.f32 %v341, 1.442695
      %v352 = vpow.pop %v351
      %v353 = vmul.f32 %v342, 1.442695
      %v354 = vpow.pop %v353
      %v355 = vmul.f32 %v343, 1.442695
      %v356 = vpow.pop %v355
      %v357 = vmul.f32 %v344, 1.442695
      %v358 = vpow.pop %v357
      %v359 = vmul.f32 %v345, 1.442695
      %v360 = vpow.pop %v359
      %v361 = vmul.f32 %v346, 1.442695
      %v362 = vpow.pop %v361
      %v363 = vadd.f32 %v348, 1.0
      %v364 = vadd.f32 %v350, 1.0
      %v365 = vadd.f32 %v352, 1.0
      %v366 = vadd.f32 %v354, 1.0
      %v367 = vadd.f32 %v356, 1.0
      %v368 = vadd.f32 %v358, 1.0
      %v369 = vadd.f32 %v360, 1.0
      %v370 = vadd.f32 %v362, 1.0
      %v371 = vrcp.pop %v363
      %v372 = vmul.f32 1.0, %v371
      %v373 = vrcp.pop %v364
      %v374 = vmul.f32 1.0, %v373
      %v375 = vrcp.pop %v365
      %v376 = vmul.f32 1.0, %v375
      %v377 = vrcp.pop %v366
      %v378 = vmul.f32 1.0, %v377
      %v379 = vrcp.pop %v367
      %v380 = vmul.f32 1.0, %v379
      %v381 = vrcp.pop %v368
      %v382 = vmul.f32 1.0, %v381
      %v383 = vrcp.pop %v369
      %v384 = vmul.f32 1.0, %v383
      %v385 = vrcp.pop %v370
      %v386 = vmul.f32 1.0, %v385
      %v387 = vmul.f32 %v331, %v372
      %v388 = vmul.f32 %v332, %v374
      %v389 = vmul.f32 %v333, %v376
      %v390 = vmul.f32 %v334, %v378
      %v391 = vmul.f32 %v335, %v380
      %v392 = vmul.f32 %v336, %v382
      %v393 = vmul.f32 %v337, %v384
      %v394 = vmul.f32 %v338, %v386
      %395 = vst [vmem:[%s217] sm:$0xff] %v387
      %396 = vst [vmem:[%s217 + $0x8] sm:$0xff] %v388
      %397 = vst [vmem:[%s217 + $0x10] sm:$0xff] %v389
      %398 = vst [vmem:[%s217 + $0x18] sm:$0xff] %v390
      %399 = vst [vmem:[%s217 + $0x20] sm:$0xff] %v391
      %400 = vst [vmem:[%s217 + $0x28] sm:$0xff] %v392
      %401 = vst [vmem:[%s217 + $0x30] sm:$0xff] %v393
      %402 = vst [vmem:[%s217 + $0x38] sm:$0xff] %v394
      %p403 = scmp.lt.s32.totalorder %s15, 1
      %s404 = scalar_select %p403, %s15, 1
      %s405 = smul.addr %s404, 8
      %s406 = smul.addr %s405, 8
      %s407 = scalar_lea.vmem %s4, %s406
      // Predicated region
      $region37: #{scorenet_forward.15} parent=35 // pred_check
        %p408 = pneg %p127
      $region38: #{scorenet_forward.15} parent=35 // pred_check_branch
        %410 = sbr.rel (%p408) target = $region40
      $region39: #{scorenet_forward.15} parent=35 // pred_region
        _
      $region40: #{scorenet_forward.15} parent=35 // pred_fallthru
        _
    $region36: #{scorenet_forward.15} parent=5 // pred_fallthru
      _
    %p411 = scmp.le.s32.totalorder 2, %s10
    // Predicated region
    $region41: #{scorenet_forward.15} parent=5 // pred_check
      %p412 = pneg %p411
    $region42: #{scorenet_forward.15} parent=5 // pred_check_branch
      %414 = sbr.rel (%p412) target = $region44
    $region43: #{scorenet_forward.15} parent=5 // pred_region
      %s415 = ssub.s32 %s10, 2
      // Predicated region
      $region45: #{scorenet_forward.15} parent=43 // pred_check
        %p416 = pneg %p133
      $region46: #{scorenet_forward.15} parent=43 // pred_check_branch
        %418 = sbr.rel (%p416) target = $region48
      $region47: #{scorenet_forward.15} parent=43 // pred_region
        %p419 = scmp.lt.s32.totalorder %s16, 1
        %s420 = scalar_select %p419, %s16, 1
        %s421 = smul.addr %s420, 8
        %s422 = smul.addr %s421, 8
        %s423 = scalar_lea.vmem %s4, %s422
      $region48: #{scorenet_forward.15} parent=43 // pred_fallthru
        _
    $region44: #{scorenet_forward.15} parent=5 // pred_fallthru
      _
  $region6: #{scorenet_forward.15} parent=0 // loop_footer
    %s14 = sadd.s32 1, %s10
  $region7: #{scorenet_forward.15} parent=0 // loop_footer_branch
    %9 = sbr.rel target = $region3
  $region8: #{scorenet_forward.15} parent=0 // loop_exit
    _

</llo_original>
